<compile_context>
chip_gen: v7x
topology: tpu7x:2x2x1
jax: 0.10.0
libtpu: 0.0.40
codegen_flags: <defaults>
</compile_context>

<pallas_src>
from dataclasses import dataclass

import numpy as np
import jax
import jax.numpy as jnp
from jax.experimental import pallas as pl
from jax.experimental.pallas import tpu as pltpu


def _round_up(x, m):
    return ((x + m - 1) // m) * m


# ----------------------------------------------------------------------------
# Config
# ----------------------------------------------------------------------------
@dataclass
class Args:
    num_max_nodes: int = 8
    edge_unroll: int = 4
    node_dim: int = 9
    edge_dim: int = 4
    num_flow_layer: int = 2
    num_rgcn_layer: int = 2
    nhid: int = 32
    nout: int = 32


# ----------------------------------------------------------------------------
# Mask construction (port of GraphFlowModel.initialize_masks, numpy / static)
# ----------------------------------------------------------------------------
def initialize_masks(max_node_unroll, max_edge_unroll):
    num_masks = int(max_node_unroll
                    + (max_edge_unroll - 1) * max_edge_unroll / 2
                    + (max_node_unroll - max_edge_unroll) * max_edge_unroll)
    num_mask_edge = int(num_masks - max_node_unroll)

    node_masks1 = np.zeros((max_node_unroll, max_node_unroll), dtype=bool)
    adj_masks1 = np.zeros((max_node_unroll, max_node_unroll, max_node_unroll), dtype=bool)
    node_masks2 = np.zeros((num_mask_edge, max_node_unroll), dtype=bool)
    adj_masks2 = np.zeros((num_mask_edge, max_node_unroll, max_node_unroll), dtype=bool)
    link_prediction_index = np.zeros((num_mask_edge, 2), dtype=np.int32)
    flow_core_edge_masks = np.zeros((max_node_unroll, max_node_unroll), dtype=bool)

    cnt = cnt_node = cnt_edge = 0
    for i in range(max_node_unroll):
        node_masks1[cnt_node][:i] = 1
        adj_masks1[cnt_node][:i, :i] = 1
        cnt += 1
        cnt_node += 1
        if i < max_edge_unroll:
            start, edge_total = 0, i
        else:
            start, edge_total = i - max_edge_unroll, max_edge_unroll
        for j in range(edge_total):
            if j == 0:
                node_masks2[cnt_edge][:i + 1] = 1
                adj_masks2[cnt_edge] = adj_masks1[cnt_node - 1].copy()
                adj_masks2[cnt_edge][i, i] = 1
            else:
                node_masks2[cnt_edge][:i + 1] = 1
                adj_masks2[cnt_edge] = adj_masks2[cnt_edge - 1].copy()
                adj_masks2[cnt_edge][i, start + j - 1] = 1
                adj_masks2[cnt_edge][start + j - 1, i] = 1
            cnt += 1
            cnt_edge += 1
    assert cnt == num_masks and cnt_node == max_node_unroll and cnt_edge == num_mask_edge

    cnt = 0
    for i in range(max_node_unroll):
        if i < max_edge_unroll:
            start, edge_total = 0, i
        else:
            start, edge_total = i - max_edge_unroll, max_edge_unroll
        for j in range(edge_total):
            link_prediction_index[cnt][0] = start + j
            link_prediction_index[cnt][1] = i
            cnt += 1
    assert cnt == num_mask_edge

    for i in range(max_node_unroll):
        if i == 0:
            continue
        if i < max_edge_unroll:
            start, end = 0, i
        else:
            start, end = i - max_edge_unroll, i
        flow_core_edge_masks[i][start:end] = 1

    node_masks = np.concatenate((node_masks1, node_masks2), axis=0)
    adj_masks = np.concatenate((adj_masks1, adj_masks2), axis=0)
    return node_masks, adj_masks, link_prediction_index, flow_core_edge_masks


# ----------------------------------------------------------------------------
# In-kernel helper: first-occurrence argmax along the last (lane) dim
# ----------------------------------------------------------------------------
def _first_argmax(v, k):
    m = jnp.max(v, axis=-1, keepdims=True)
    iota = jax.lax.broadcasted_iota(jnp.int32, v.shape, v.ndim - 1)
    cand = jnp.where(v >= m, iota, k)
    return jnp.min(cand, axis=-1, keepdims=True)


# ----------------------------------------------------------------------------
# The fused kernel (one grid step == one batch element):
#   RGCN (block-diag adjacency matmuls) -> pooling/pair-gather (one selection
#   matmul) -> stacked ST nets -> discrete mod-K coupling -> one-hot outputs.
# ----------------------------------------------------------------------------
def make_fused_kernel(n_mid, n_rel, n_flow, pool_pad, pair_pad):
    def kernel(*refs):
        (x_rep_ref, adj_bd_ref, x_cont_ref, adj_cont_ref, sel_ref, gc1_ref) = refs[:6]
        idx = 6
        gc2_ref = None
        if n_mid > 0:
            gc2_ref = refs[idx]
            idx += 1
        (gc3_ref,
         nw1_ref, nb1_ref, nw2_ref, nb2_ref,
         ew1_ref, eb1_ref, ew2_ref, eb2_ref,
         x_deq_ref, adj_deq_ref, feat_ref) = refs[idx:idx + 12]

        f32, bf16 = jnp.float32, jnp.bfloat16

        rn, nd = x_rep_ref.shape            # (R*N, node_dim) = (240, 9)
        n = x_cont_ref.shape[0]             # N = 8
        es, ed = adj_cont_ref.shape         # (Es, edge_dim) = (22, 4)
        nout = gc3_ref.shape[1] // n_rel

        # ---- RGCN layer: 1 fused weight matmul + n_rel block-diag matmuls ----
        def rgcn_layer(h_bf, w, relu):
            # h_bf: (rn, din) bf16;  w: (din, n_rel*dout) bf16
            s = jnp.dot(h_bf, w, preferred_element_type=f32)        # (rn, n_rel*dout)
            dout = s.shape[-1] // n_rel
            s = s.astype(bf16)
            out = None
            for e in range(n_rel):
                part = jnp.dot(adj_bd_ref[e], s[:, e * dout:(e + 1) * dout],
                               preferred_element_type=f32)          # (rn, dout) f32
                out = part if out is None else out + part
            if relu:
                out = jnp.maximum(out, 0.0)
            return out

        # NOTE: RGCN layers have no bias, so masked-out rows stay exactly 0 and
        # summing over all N nodes during pooling is correct.
        h = rgcn_layer(x_rep_ref[...], gc1_ref[...], relu=True)       # (rn, nhid)
        for j in range(n_mid):
            h = rgcn_layer(h.astype(bf16), gc2_ref[j], relu=True)
        node_emb = rgcn_layer(h.astype(bf16), gc3_ref[...], relu=False)  # (rn, nout) f32

        # ---- graph pooling + (node_i, node_j) pair gather: one MXU call ----
        ctx = jnp.dot(sel_ref[...], node_emb.astype(bf16),
                      preferred_element_type=f32)                     # (pool_pad+2*pair_pad, nout)
        gn = ctx[0:n]                                                 # node-step graph ctx (N, nout)
        ge = ctx[n:n + es]                                            # edge-step graph ctx (Es, nout)
        p0 = ctx[pool_pad:pool_pad + es]                              # node_i emb (Es, nout)
        p1 = ctx[pool_pad + pair_pad:pool_pad + pair_pad + es]        # node_j emb (Es, nout)

        # assemble [node_i | node_j | graph] at static lane offsets (K=96 fused W1)
        feat_ref[:, 0:nout] = p0
        feat_ref[:, nout:2 * nout] = p1
        feat_ref[:, 2 * nout:3 * nout] = ge

        # ---- ST nets for ALL flow layers at once (W1 concatenated, W2 block-diag).
        # Exact: the ST inputs do not depend on the running discrete latent.
        hn = jnp.tanh(jnp.dot(gn.astype(bf16), nw1_ref[...],
                              preferred_element_type=f32) + nb1_ref[...])      # (N, n_flow*nhid)
        tn = jnp.dot(hn.astype(bf16), nw2_ref[...],
                     preferred_element_type=f32) + nb2_ref[...]                # (N, n_flow*nd)
        he = jnp.tanh(jnp.dot(feat_ref[...].astype(bf16), ew1_ref[...],
                              preferred_element_type=f32) + eb1_ref[...])      # (Es, n_flow*nhid)
        te = jnp.dot(he.astype(bf16), ew2_ref[...],
                     preferred_element_type=f32) + eb2_ref[...]                # (Es, n_flow*ed)

        # ---- discrete flow coupling: z = (x + argmax(t_i)) mod K, per layer ----
        x_idx = _first_argmax(x_cont_ref[...], nd)                    # (N, 1) int32
        a_idx = _first_argmax(adj_cont_ref[...], ed)                  # (Es, 1) int32
        for i in range(n_flow):
            x_idx = x_idx + _first_argmax(tn[:, i * nd:(i + 1) * nd], nd)
            x_idx = jnp.where(x_idx >= nd, x_idx - nd, x_idx)
            a_idx = a_idx + _first_argmax(te[:, i * ed:(i + 1) * ed], ed)
            a_idx = jnp.where(a_idx >= ed, a_idx - ed, a_idx)

        # ---- one-hot outputs (flattened to (B, N*nd)/(B, Es*ed) in the wrapper) ----
        col_n = jax.lax.broadcasted_iota(jnp.int32, (n, nd), 1)
        x_deq_ref[...] = (col_n == x_idx).astype(f32)
        col_e = jax.lax.broadcasted_iota(jnp.int32, (es, ed), 1)
        adj_deq_ref[...] = (col_e == a_idx).astype(f32)

    return kernel


# ----------------------------------------------------------------------------
# Parameter init (deterministic, synthetic weights)
# ----------------------------------------------------------------------------
def init_params(key, cfg, latent_step):
    nd, ed, nhid, nout = cfg.node_dim, cfg.edge_dim, cfg.nhid, cfg.nout
    e_rgcn = ed - 1
    keys = iter(jax.random.split(key, 128))

    def nrm(shape, scale=0.1):
        return scale * jax.random.normal(next(keys), shape, dtype=jnp.float32)

    params = {
        "rgcn_emb_w": nrm((nd, nd)),
        "gc1_w": nrm((e_rgcn, nd, nhid)),
        "gc2_ws": [nrm((e_rgcn, nhid, nhid)) for _ in range(cfg.num_rgcn_layer - 2)],
        "gc3_w": nrm((e_rgcn, nhid, nout)),
        "node_st": [],
        "edge_st": [],
        # discrete-prior base log-probs (unused in forward, kept for fidelity)
        "node_base_log_probs": nrm((cfg.num_max_nodes, nd), 1.0),
        "edge_base_log_probs": nrm((latent_step - cfg.num_max_nodes, ed), 1.0),
    }
    for _ in range(cfg.num_flow_layer):
        params["node_st"].append(dict(
            w1=nrm((nout, nhid)), b1=nrm((1, nhid)),
            w2=nrm((nhid, nd)), b2=nrm((1, nd))))
        params["edge_st"].append(dict(
            w1=nrm((3 * nout, nhid)), b1=nrm((1, nhid)),
            w2=nrm((nhid, ed)), b2=nrm((1, ed))))
    return params


# ----------------------------------------------------------------------------
# Weight packing: fuse per-relation / per-flow-layer weights, cast MXU
# operands to bf16 (biases stay f32).
# ----------------------------------------------------------------------------
def pack_params(params, cfg):
    bf16, f32 = jnp.bfloat16, jnp.float32
    n_rel = cfg.edge_dim - 1
    n_flow = cfg.num_flow_layer

    def pack_rgcn(w):  # (n_rel, din, dout) -> (din, n_rel*dout), col = e*dout + h
        return jnp.transpose(w, (1, 0, 2)).reshape(w.shape[1], n_rel * w.shape[2])

    def cat_cols(ws):  # per-flow-layer first linear / biases, packed on lanes
        return jnp.concatenate(list(ws), axis=1)

    def block_diag(ws):  # per-flow-layer second linear, block-diag across layers
        din, dout = ws[0].shape
        big = jnp.zeros((n_flow * din, n_flow * dout), f32)
        for i, w in enumerate(ws):
            big = big.at[i * din:(i + 1) * din, i * dout:(i + 1) * dout].set(w)
        return big

    # emb is linear with no bias/activation before gc1 -> fold it in (exact).
    gc1 = jnp.dot(params["rgcn_emb_w"], pack_rgcn(params["gc1_w"]))

    packed = {
        "gc1": gc1.astype(bf16),
        "gc3": pack_rgcn(params["gc3_w"]).astype(bf16),
        "nw1": cat_cols(p["w1"] for p in params["node_st"]).astype(bf16),
        "nb1": cat_cols(p["b1"] for p in params["node_st"]).astype(f32),
        "nw2": block_diag([p["w2"] for p in params["node_st"]]).astype(bf16),
        "nb2": cat_cols(p["b2"] for p in params["node_st"]).astype(f32),
        "ew1": cat_cols(p["w1"] for p in params["edge_st"]).astype(bf16),
        "eb1": cat_cols(p["b1"] for p in params["edge_st"]).astype(f32),
        "ew2": block_diag([p["w2"] for p in params["edge_st"]]).astype(bf16),
        "eb2": cat_cols(p["b2"] for p in params["edge_st"]).astype(f32),
    }
    if len(params["gc2_ws"]) > 0:
        packed["gc2"] = jnp.stack([pack_rgcn(w) for w in params["gc2_ws"]]).astype(bf16)
    return packed


# ----------------------------------------------------------------------------
# GraphFlowModel.forward — one fused Pallas kernel, gridded over the batch
# ----------------------------------------------------------------------------
@jax.jit
def graphflow_forward(packed, masks, inp_node_features, inp_adj_features):
    f32, bf16 = jnp.float32, jnp.bfloat16
    B, N, nd = inp_node_features.shape
    ed = inp_adj_features.shape[1]
    R = masks["node_masks"].shape[0]
    Es = R - N
    n_rel = ed - 1
    n_flow = packed["nb2"].shape[1] // nd
    n_mid = packed["gc2"].shape[0] if "gc2" in packed else 0
    pool_pad = _round_up(R, 8)
    pair_pad = _round_up(Es, 8)
    assert masks["sel"].shape == (pool_pad + 2 * pair_pad, R * N)

    x = inp_node_features.astype(f32)
    adj = inp_adj_features.astype(f32)

    # -------- one-time plain-XLA input prep (masked replicas + block-diag adj) --------
    node_mask = masks["node_masks"].astype(f32)                          # (R, N)
    x_rep = (x[:, None, :, :] * node_mask[None, :, :, None]
             ).reshape(B, R * N, nd).astype(bf16)                        # (B, R*N, nd)

    adj3 = adj[:, :n_rel]                                                # (B, 3, N, N)
    adj_mask = masks["adj_masks"].astype(f32)                            # (R, N, N)
    adj_rep = adj3[:, None] * adj_mask[None, :, None]                    # (B, R, 3, N, N)
    ae = jnp.transpose(adj_rep, (0, 2, 1, 3, 4))                         # (B, 3, R, N, N)
    eye_r = jnp.eye(R, dtype=f32)
    # adj_bd[b, e, g*N+n, g'*N+m] = adj_rep[b, g, e, n, m] * (g == g')  (exact 0/1 in bf16)
    adj_bd = (ae[:, :, :, :, None, :] * eye_r[None, None, :, None, :, None]
              ).reshape(B, n_rel, R * N, R * N).astype(bf16)

    # inp_adj_features[:, :, flow_core_edge_masks] -> (B, ed, Es) -> (B, Es, ed)
    adj_cont = jnp.transpose(
        adj[:, :, masks["edge_sel_rows"], masks["edge_sel_cols"]], (0, 2, 1))

    # -------- BlockSpecs: grid over batch; weights resident via constant index maps --------
    b3 = lambda b: (b, 0, 0)
    b4 = lambda b: (b, 0, 0, 0)
    c2 = lambda b: (0, 0)
    c3 = lambda b: (0, 0, 0)

    inputs = [x_rep, adj_bd, x, adj_cont, masks["sel"], packed["gc1"]]
    in_specs = [
        pl.BlockSpec((None, R * N, nd), b3),
        pl.BlockSpec((None, n_rel, R * N, R * N), b4),
        pl.BlockSpec((None, N, nd), b3),
        pl.BlockSpec((None, Es, ed), b3),
        pl.BlockSpec(masks["sel"].shape, c2),
        pl.BlockSpec(packed["gc1"].shape, c2),
    ]
    if n_mid > 0:
        inputs.append(packed["gc2"])
        in_specs.append(pl.BlockSpec(packed["gc2"].shape, c3))
    for name in ("gc3", "nw1", "nb1", "nw2", "nb2", "ew1", "eb1", "ew2", "eb2"):
        inputs.append(packed[name])
        in_specs.append(pl.BlockSpec(packed[name].shape, c2))

    x_deq, adj_deq = pl.pallas_call(
        make_fused_kernel(n_mid, n_rel, n_flow, pool_pad, pair_pad),
        grid=(B,),
        out_shape=(jax.ShapeDtypeStruct((B, N, nd), f32),
                   jax.ShapeDtypeStruct((B, Es, ed), f32)),
        in_specs=in_specs,
        out_specs=(pl.BlockSpec((None, N, nd), b3),
                   pl.BlockSpec((None, Es, ed), b3)),
        scratch_shapes=[pltpu.VMEM((Es, packed["ew1"].shape[0]), jnp.float32)],
        compiler_params=pltpu.CompilerParams(
            dimension_semantics=("parallel",)),   # v7x: 2 TCs, one batch element each
    )(*inputs)

    return [x_deq.reshape(B, N * nd), adj_deq.reshape(B, Es * ed)]


# ----------------------------------------------------------------------------
# main
# ----------------------------------------------------------------------------
if __name__ == "__main__":
    cfg = Args(num_max_nodes=8, edge_unroll=4, node_dim=9, edge_dim=4,
               num_flow_layer=2, num_rgcn_layer=2, nhid=32, nout=32)

    node_masks_np, adj_masks_np, link_idx_np, fcem_np = initialize_masks(
        cfg.num_max_nodes, cfg.edge_unroll)
    R = node_masks_np.shape[0]                       # latent_step = 30
    N = cfg.num_max_nodes
    Es = R - N                                       # 22
    sel_rows, sel_cols = np.nonzero(fcem_np)         # row-major == torch bool index

    # Static selection matrix: [graph pooling | node_i gather | node_j gather],
    # each section padded to a multiple of 8 rows for aligned sublane slicing.
    POOL_PAD = _round_up(R, 8)
    PAIR_PAD = _round_up(Es, 8)
    SEL = np.zeros((POOL_PAD + 2 * PAIR_PAD, R * N), dtype=np.float32)
    for g in range(R):
        SEL[g, g * N:(g + 1) * N] = 1.0
    for e in range(Es):
        g = N + e
        SEL[POOL_PAD + e, g * N + int(link_idx_np[e, 0])] = 1.0
        SEL[POOL_PAD + PAIR_PAD + e, g * N + int(link_idx_np[e, 1])] = 1.0

    masks = {
        "node_masks": jnp.asarray(node_masks_np.astype(np.float32)),
        "adj_masks": jnp.asarray(adj_masks_np.astype(np.float32)),
        "edge_sel_rows": jnp.asarray(sel_rows, dtype=jnp.int32),
        "edge_sel_cols": jnp.asarray(sel_cols, dtype=jnp.int32),
        "sel": jnp.asarray(SEL).astype(jnp.bfloat16),
    }

    key = jax.random.PRNGKey(0)
    k_node, k_edge, k_param = jax.random.split(key, 3)

    B = 2
    node_types = jax.random.randint(k_node, (B, N), 0, cfg.node_dim)
    inp_node_features = jax.nn.one_hot(node_types, cfg.node_dim, dtype=jnp.float32)     # (B, N, 9)

    edge_types = jax.random.randint(k_edge, (B, N, N), 0, cfg.edge_dim)
    edge_types = jnp.triu(edge_types, 1)
    edge_types = jnp.maximum(edge_types, jnp.transpose(edge_types, (0, 2, 1)))
    inp_adj_features = jnp.transpose(
        jax.nn.one_hot(edge_types, cfg.edge_dim, dtype=jnp.float32), (0, 3, 1, 2))      # (B, 4, N, N)

    params = init_params(k_param, cfg, R)
    packed = pack_params(params, cfg)

    z_node, z_edge = graphflow_forward(packed, masks, inp_node_features, inp_adj_features)
    jax.block_until_ready((z_node, z_edge))

    assert z_node.shape == (B, N * cfg.node_dim)
    assert z_edge.shape == (B, Es * cfg.edge_dim)
    assert bool(jnp.all(jnp.isfinite(z_node))) and bool(jnp.all(jnp.isfinite(z_edge)))
    print("KERNEL_OK")
</pallas_src>

<mosaic_0001>
module attributes {stable_mosaic.version = 11 : i64} {
  func.func @kernel(%arg0: i32, %arg1: memref<1x240x9xbf16, #tpu.memory_space<vmem>>, %arg2: memref<1x3x240x240xbf16, #tpu.memory_space<vmem>>, %arg3: memref<1x8x9xf32, #tpu.memory_space<vmem>>, %arg4: memref<1x22x4xf32, #tpu.memory_space<vmem>>, %arg5: memref<80x240xbf16, #tpu.memory_space<vmem>>, %arg6: memref<9x96xbf16, #tpu.memory_space<vmem>>, %arg7: memref<32x96xbf16, #tpu.memory_space<vmem>>, %arg8: memref<32x64xbf16, #tpu.memory_space<vmem>>, %arg9: memref<1x64xf32, #tpu.memory_space<vmem>>, %arg10: memref<64x18xbf16, #tpu.memory_space<vmem>>, %arg11: memref<1x18xf32, #tpu.memory_space<vmem>>, %arg12: memref<96x64xbf16, #tpu.memory_space<vmem>>, %arg13: memref<1x64xf32, #tpu.memory_space<vmem>>, %arg14: memref<64x8xbf16, #tpu.memory_space<vmem>>, %arg15: memref<1x8xf32, #tpu.memory_space<vmem>>, %arg16: memref<1x8x9xf32, #tpu.memory_space<vmem>>, %arg17: memref<1x22x4xf32, #tpu.memory_space<vmem>>, %arg18: memref<22x96xf32, #tpu.memory_space<vmem>>) attributes {dimension_semantics = [#tpu.dimension_semantics<parallel>], iteration_bounds = array<i64: 2>, scalar_prefetch = 0 : i64, scratch_operands = 1 : i64, tpu.core_type = #tpu.core_type<tc>, window_params = [{transform_indices = @transform_0, window_bounds = array<i64: 1, 240, 9>}, {transform_indices = @transform_1, window_bounds = array<i64: 1, 3, 240, 240>}, {transform_indices = @transform_2, window_bounds = array<i64: 1, 8, 9>}, {transform_indices = @transform_3, window_bounds = array<i64: 1, 22, 4>}, {pipeline_mode = #tpu.pipeline_mode<synchronous>, transform_indices = @transform_4, window_bounds = array<i64: 80, 240>}, {pipeline_mode = #tpu.pipeline_mode<synchronous>, transform_indices = @transform_5, window_bounds = array<i64: 9, 96>}, {pipeline_mode = #tpu.pipeline_mode<synchronous>, transform_indices = @transform_6, window_bounds = array<i64: 32, 96>}, {pipeline_mode = #tpu.pipeline_mode<synchronous>, transform_indices = @transform_7, window_bounds = array<i64: 32, 64>}, {pipeline_mode = #tpu.pipeline_mode<synchronous>, transform_indices = @transform_8, window_bounds = array<i64: 1, 64>}, {pipeline_mode = #tpu.pipeline_mode<synchronous>, transform_indices = @transform_9, window_bounds = array<i64: 64, 18>}, {pipeline_mode = #tpu.pipeline_mode<synchronous>, transform_indices = @transform_10, window_bounds = array<i64: 1, 18>}, {pipeline_mode = #tpu.pipeline_mode<synchronous>, transform_indices = @transform_11, window_bounds = array<i64: 96, 64>}, {pipeline_mode = #tpu.pipeline_mode<synchronous>, transform_indices = @transform_12, window_bounds = array<i64: 1, 64>}, {pipeline_mode = #tpu.pipeline_mode<synchronous>, transform_indices = @transform_13, window_bounds = array<i64: 64, 8>}, {pipeline_mode = #tpu.pipeline_mode<synchronous>, transform_indices = @transform_14, window_bounds = array<i64: 1, 8>}, {transform_indices = @transform_15, window_bounds = array<i64: 1, 8, 9>}, {transform_indices = @transform_16, window_bounds = array<i64: 1, 22, 4>}]} {
    %c0 = arith.constant 0 : index
    %c0_0 = arith.constant 0 : index
    %c0_1 = arith.constant 0 : index
    %0 = vector.load %arg1[%c0, %c0_0, %c0_1] : memref<1x240x9xbf16, #tpu.memory_space<vmem>>, vector<1x240x9xbf16>
    %1 = vector.shape_cast %0 : vector<1x240x9xbf16> to vector<240x9xbf16>
    %c0_2 = arith.constant 0 : index
    %c0_3 = arith.constant 0 : index
    %2 = vector.load %arg6[%c0_2, %c0_3] : memref<9x96xbf16, #tpu.memory_space<vmem>>, vector<9x96xbf16>
    %cst = arith.constant dense<0.000000e+00> : vector<240x96xf32>
    %3 = tpu.matmul %1, %2, %cst {dimension_numbers = #tpu.dot_dimension_numbers<[1], [0], [0], [1], [0, 0, 1, 1], [], []>} : vector<240x9xbf16>, vector<9x96xbf16>, vector<240x96xf32> -> vector<240x96xf32>
    %4 = arith.truncf %3 : vector<240x96xf32> to vector<240x96xbf16>
    %c0_4 = arith.constant 0 : index
    %c0_5 = arith.constant 0 : index
    %c0_6 = arith.constant 0 : index
    %c0_7 = arith.constant 0 : index
    %5 = vector.load %arg2[%c0_4, %c0_5, %c0_6, %c0_7] : memref<1x3x240x240xbf16, #tpu.memory_space<vmem>>, vector<1x1x240x240xbf16>
    %6 = vector.shape_cast %5 : vector<1x1x240x240xbf16> to vector<240x240xbf16>
    %7 = vector.extract_strided_slice %4 {offsets = [0, 0], sizes = [240, 32], strides = [1, 1]} : vector<240x96xbf16> to vector<240x32xbf16>
    %cst_8 = arith.constant dense<0.000000e+00> : vector<240x32xf32>
    %8 = tpu.matmul %6, %7, %cst_8 {dimension_numbers = #tpu.dot_dimension_numbers<[1], [0], [0], [1], [0, 0, 1, 1], [], []>} : vector<240x240xbf16>, vector<240x32xbf16>, vector<240x32xf32> -> vector<240x32xf32>
    %c0_9 = arith.constant 0 : index
    %c1 = arith.constant 1 : index
    %c0_10 = arith.constant 0 : index
    %c0_11 = arith.constant 0 : index
    %9 = vector.load %arg2[%c0_9, %c1, %c0_10, %c0_11] : memref<1x3x240x240xbf16, #tpu.memory_space<vmem>>, vector<1x1x240x240xbf16>
    %10 = vector.shape_cast %9 : vector<1x1x240x240xbf16> to vector<240x240xbf16>
    %11 = vector.extract_strided_slice %4 {offsets = [0, 32], sizes = [240, 32], strides = [1, 1]} : vector<240x96xbf16> to vector<240x32xbf16>
    %cst_12 = arith.constant dense<0.000000e+00> : vector<240x32xf32>
    %12 = tpu.matmul %10, %11, %cst_12 {dimension_numbers = #tpu.dot_dimension_numbers<[1], [0], [0], [1], [0, 0, 1, 1], [], []>} : vector<240x240xbf16>, vector<240x32xbf16>, vector<240x32xf32> -> vector<240x32xf32>
    %13 = arith.addf %8, %12 : vector<240x32xf32>
    %c0_13 = arith.constant 0 : index
    %c2 = arith.constant 2 : index
    %c0_14 = arith.constant 0 : index
    %c0_15 = arith.constant 0 : index
    %14 = vector.load %arg2[%c0_13, %c2, %c0_14, %c0_15] : memref<1x3x240x240xbf16, #tpu.memory_space<vmem>>, vector<1x1x240x240xbf16>
    %15 = vector.shape_cast %14 : vector<1x1x240x240xbf16> to vector<240x240xbf16>
    %16 = vector.extract_strided_slice %4 {offsets = [0, 64], sizes = [240, 32], strides = [1, 1]} : vector<240x96xbf16> to vector<240x32xbf16>
    %cst_16 = arith.constant dense<0.000000e+00> : vector<240x32xf32>
    %17 = tpu.matmul %15, %16, %cst_16 {dimension_numbers = #tpu.dot_dimension_numbers<[1], [0], [0], [1], [0, 0, 1, 1], [], []>} : vector<240x240xbf16>, vector<240x32xbf16>, vector<240x32xf32> -> vector<240x32xf32>
    %18 = arith.addf %13, %17 : vector<240x32xf32>
    %cst_17 = arith.constant 0.000000e+00 : f32
    %19 = vector.broadcast %cst_17 : f32 to vector<240x32xf32>
    %20 = arith.maximumf %18, %19 : vector<240x32xf32>
    %21 = arith.truncf %20 : vector<240x32xf32> to vector<240x32xbf16>
    %c0_18 = arith.constant 0 : index
    %c0_19 = arith.constant 0 : index
    %22 = vector.load %arg7[%c0_18, %c0_19] : memref<32x96xbf16, #tpu.memory_space<vmem>>, vector<32x96xbf16>
    %cst_20 = arith.constant dense<0.000000e+00> : vector<240x96xf32>
    %23 = tpu.matmul %21, %22, %cst_20 {dimension_numbers = #tpu.dot_dimension_numbers<[1], [0], [0], [1], [0, 0, 1, 1], [], []>} : vector<240x32xbf16>, vector<32x96xbf16>, vector<240x96xf32> -> vector<240x96xf32>
    %24 = arith.truncf %23 : vector<240x96xf32> to vector<240x96xbf16>
    %c0_21 = arith.constant 0 : index
    %c0_22 = arith.constant 0 : index
    %c0_23 = arith.constant 0 : index
    %c0_24 = arith.constant 0 : index
    %25 = vector.load %arg2[%c0_21, %c0_22, %c0_23, %c0_24] : memref<1x3x240x240xbf16, #tpu.memory_space<vmem>>, vector<1x1x240x240xbf16>
    %26 = vector.shape_cast %25 : vector<1x1x240x240xbf16> to vector<240x240xbf16>
    %27 = vector.extract_strided_slice %24 {offsets = [0, 0], sizes = [240, 32], strides = [1, 1]} : vector<240x96xbf16> to vector<240x32xbf16>
    %cst_25 = arith.constant dense<0.000000e+00> : vector<240x32xf32>
    %28 = tpu.matmul %26, %27, %cst_25 {dimension_numbers = #tpu.dot_dimension_numbers<[1], [0], [0], [1], [0, 0, 1, 1], [], []>} : vector<240x240xbf16>, vector<240x32xbf16>, vector<240x32xf32> -> vector<240x32xf32>
    %c0_26 = arith.constant 0 : index
    %c1_27 = arith.constant 1 : index
    %c0_28 = arith.constant 0 : index
    %c0_29 = arith.constant 0 : index
    %29 = vector.load %arg2[%c0_26, %c1_27, %c0_28, %c0_29] : memref<1x3x240x240xbf16, #tpu.memory_space<vmem>>, vector<1x1x240x240xbf16>
    %30 = vector.shape_cast %29 : vector<1x1x240x240xbf16> to vector<240x240xbf16>
    %31 = vector.extract_strided_slice %24 {offsets = [0, 32], sizes = [240, 32], strides = [1, 1]} : vector<240x96xbf16> to vector<240x32xbf16>
    %cst_30 = arith.constant dense<0.000000e+00> : vector<240x32xf32>
    %32 = tpu.matmul %30, %31, %cst_30 {dimension_numbers = #tpu.dot_dimension_numbers<[1], [0], [0], [1], [0, 0, 1, 1], [], []>} : vector<240x240xbf16>, vector<240x32xbf16>, vector<240x32xf32> -> vector<240x32xf32>
    %33 = arith.addf %28, %32 : vector<240x32xf32>
    %c0_31 = arith.constant 0 : index
    %c2_32 = arith.constant 2 : index
    %c0_33 = arith.constant 0 : index
    %c0_34 = arith.constant 0 : index
    %34 = vector.load %arg2[%c0_31, %c2_32, %c0_33, %c0_34] : memref<1x3x240x240xbf16, #tpu.memory_space<vmem>>, vector<1x1x240x240xbf16>
    %35 = vector.shape_cast %34 : vector<1x1x240x240xbf16> to vector<240x240xbf16>
    %36 = vector.extract_strided_slice %24 {offsets = [0, 64], sizes = [240, 32], strides = [1, 1]} : vector<240x96xbf16> to vector<240x32xbf16>
    %cst_35 = arith.constant dense<0.000000e+00> : vector<240x32xf32>
    %37 = tpu.matmul %35, %36, %cst_35 {dimension_numbers = #tpu.dot_dimension_numbers<[1], [0], [0], [1], [0, 0, 1, 1], [], []>} : vector<240x240xbf16>, vector<240x32xbf16>, vector<240x32xf32> -> vector<240x32xf32>
    %38 = arith.addf %33, %37 : vector<240x32xf32>
    %c0_36 = arith.constant 0 : index
    %c0_37 = arith.constant 0 : index
    %39 = vector.load %arg5[%c0_36, %c0_37] : memref<80x240xbf16, #tpu.memory_space<vmem>>, vector<80x240xbf16>
    %40 = arith.truncf %38 : vector<240x32xf32> to vector<240x32xbf16>
    %cst_38 = arith.constant dense<0.000000e+00> : vector<80x32xf32>
    %41 = tpu.matmul %39, %40, %cst_38 {dimension_numbers = #tpu.dot_dimension_numbers<[1], [0], [0], [1], [0, 0, 1, 1], [], []>} : vector<80x240xbf16>, vector<240x32xbf16>, vector<80x32xf32> -> vector<80x32xf32>
    %42 = vector.extract_strided_slice %41 {offsets = [0, 0], sizes = [8, 32], strides = [1, 1]} : vector<80x32xf32> to vector<8x32xf32>
    %43 = vector.extract_strided_slice %41 {offsets = [8, 0], sizes = [22, 32], strides = [1, 1]} : vector<80x32xf32> to vector<22x32xf32>
    %44 = vector.extract_strided_slice %41 {offsets = [32, 0], sizes = [22, 32], strides = [1, 1]} : vector<80x32xf32> to vector<22x32xf32>
    %45 = vector.extract_strided_slice %41 {offsets = [56, 0], sizes = [22, 32], strides = [1, 1]} : vector<80x32xf32> to vector<22x32xf32>
    %c0_39 = arith.constant 0 : index
    %c0_40 = arith.constant 0 : index
    %46 = vector.load %arg18[%c0_39, %c0_40] : memref<22x96xf32, #tpu.memory_space<vmem>>, vector<22x32xf32>
    tpu.vector_store %arg18[%c0_39, %c0_40], %44 {strides = array<i32>} : memref<22x96xf32, #tpu.memory_space<vmem>>, vector<22x32xf32>,
    %c0_41 = arith.constant 0 : index
    %c32 = arith.constant 32 : index
    %47 = vector.load %arg18[%c0_41, %c32] : memref<22x96xf32, #tpu.memory_space<vmem>>, vector<22x32xf32>
    tpu.vector_store %arg18[%c0_41, %c32], %45 {strides = array<i32>} : memref<22x96xf32, #tpu.memory_space<vmem>>, vector<22x32xf32>,
    %c0_42 = arith.constant 0 : index
    %c64 = arith.constant 64 : index
    %48 = vector.load %arg18[%c0_42, %c64] : memref<22x96xf32, #tpu.memory_space<vmem>>, vector<22x32xf32>
    tpu.vector_store %arg18[%c0_42, %c64], %43 {strides = array<i32>} : memref<22x96xf32, #tpu.memory_space<vmem>>, vector<22x32xf32>,
    %49 = arith.truncf %42 : vector<8x32xf32> to vector<8x32xbf16>
    %c0_43 = arith.constant 0 : index
    %c0_44 = arith.constant 0 : index
    %50 = vector.load %arg8[%c0_43, %c0_44] : memref<32x64xbf16, #tpu.memory_space<vmem>>, vector<32x64xbf16>
    %cst_45 = arith.constant dense<0.000000e+00> : vector<8x64xf32>
    %51 = tpu.matmul %49, %50, %cst_45 {dimension_numbers = #tpu.dot_dimension_numbers<[1], [0], [0], [1], [0, 0, 1, 1], [], []>} : vector<8x32xbf16>, vector<32x64xbf16>, vector<8x64xf32> -> vector<8x64xf32>
    %c0_46 = arith.constant 0 : index
    %c0_47 = arith.constant 0 : index
    %52 = vector.load %arg9[%c0_46, %c0_47] : memref<1x64xf32, #tpu.memory_space<vmem>>, vector<1x64xf32>
    %53 = vector.broadcast %52 : vector<1x64xf32> to vector<8x64xf32>
    %54 = arith.addf %51, %53 : vector<8x64xf32>
    %55 = math.tanh %54 : vector<8x64xf32>
    %56 = arith.truncf %55 : vector<8x64xf32> to vector<8x64xbf16>
    %c0_48 = arith.constant 0 : index
    %c0_49 = arith.constant 0 : index
    %57 = vector.load %arg10[%c0_48, %c0_49] : memref<64x18xbf16, #tpu.memory_space<vmem>>, vector<64x18xbf16>
    %cst_50 = arith.constant dense<0.000000e+00> : vector<8x18xf32>
    %58 = tpu.matmul %56, %57, %cst_50 {dimension_numbers = #tpu.dot_dimension_numbers<[1], [0], [0], [1], [0, 0, 1, 1], [], []>} : vector<8x64xbf16>, vector<64x18xbf16>, vector<8x18xf32> -> vector<8x18xf32>
    %c0_51 = arith.constant 0 : index
    %c0_52 = arith.constant 0 : index
    %59 = vector.load %arg11[%c0_51, %c0_52] : memref<1x18xf32, #tpu.memory_space<vmem>>, vector<1x18xf32>
    %60 = vector.broadcast %59 : vector<1x18xf32> to vector<8x18xf32>
    %61 = arith.addf %58, %60 : vector<8x18xf32>
    %c0_53 = arith.constant 0 : index
    %c0_54 = arith.constant 0 : index
    %62 = vector.load %arg18[%c0_53, %c0_54] : memref<22x96xf32, #tpu.memory_space<vmem>>, vector<22x96xf32>
    %63 = arith.truncf %62 : vector<22x96xf32> to vector<22x96xbf16>
    %c0_55 = arith.constant 0 : index
    %c0_56 = arith.constant 0 : index
    %64 = vector.load %arg12[%c0_55, %c0_56] : memref<96x64xbf16, #tpu.memory_space<vmem>>, vector<96x64xbf16>
    %cst_57 = arith.constant dense<0.000000e+00> : vector<22x64xf32>
    %65 = tpu.matmul %63, %64, %cst_57 {dimension_numbers = #tpu.dot_dimension_numbers<[1], [0], [0], [1], [0, 0, 1, 1], [], []>} : vector<22x96xbf16>, vector<96x64xbf16>, vector<22x64xf32> -> vector<22x64xf32>
    %c0_58 = arith.constant 0 : index
    %c0_59 = arith.constant 0 : index
    %66 = vector.load %arg13[%c0_58, %c0_59] : memref<1x64xf32, #tpu.memory_space<vmem>>, vector<1x64xf32>
    %67 = vector.broadcast %66 : vector<1x64xf32> to vector<22x64xf32>
    %68 = arith.addf %65, %67 : vector<22x64xf32>
    %69 = math.tanh %68 : vector<22x64xf32>
    %70 = arith.truncf %69 : vector<22x64xf32> to vector<22x64xbf16>
    %c0_60 = arith.constant 0 : index
    %c0_61 = arith.constant 0 : index
    %71 = vector.load %arg14[%c0_60, %c0_61] : memref<64x8xbf16, #tpu.memory_space<vmem>>, vector<64x8xbf16>
    %cst_62 = arith.constant dense<0.000000e+00> : vector<22x8xf32>
    %72 = tpu.matmul %70, %71, %cst_62 {dimension_numbers = #tpu.dot_dimension_numbers<[1], [0], [0], [1], [0, 0, 1, 1], [], []>} : vector<22x64xbf16>, vector<64x8xbf16>, vector<22x8xf32> -> vector<22x8xf32>
    %c0_63 = arith.constant 0 : index
    %c0_64 = arith.constant 0 : index
    %73 = vector.load %arg15[%c0_63, %c0_64] : memref<1x8xf32, #tpu.memory_space<vmem>>, vector<1x8xf32>
    %74 = vector.broadcast %73 : vector<1x8xf32> to vector<22x8xf32>
    %75 = arith.addf %72, %74 : vector<22x8xf32>
    %c0_65 = arith.constant 0 : index
    %c0_66 = arith.constant 0 : index
    %c0_67 = arith.constant 0 : index
    %76 = vector.load %arg3[%c0_65, %c0_66, %c0_67] : memref<1x8x9xf32, #tpu.memory_space<vmem>>, vector<1x8x9xf32>
    %77 = vector.shape_cast %76 : vector<1x8x9xf32> to vector<8x9xf32>
    %cst_68 = arith.constant dense<0xFF800000> : vector<8xf32>
    %78 = vector.multi_reduction <maximumf>, %77, %cst_68 [1] : vector<8x9xf32> to vector<8xf32>
    %79 = vector.shape_cast %78 : vector<8xf32> to vector<8x1xf32>
    %80 = tpu.iota {dimensions = array<i32: 1>} : vector<8x9xi32>
    %81 = vector.broadcast %79 : vector<8x1xf32> to vector<8x9xf32>
    %82 = arith.cmpf oge, %77, %81 : vector<8x9xf32>
    %c9_i32 = arith.constant 9 : i32
    %83 = vector.broadcast %c9_i32 : i32 to vector<8x9xi32>
    %84 = arith.select %82, %80, %83 : vector<8x9xi1>, vector<8x9xi32>
    %cst_69 = arith.constant dense<2147483647> : vector<8xi32>
    %85 = vector.multi_reduction <minsi>, %84, %cst_69 [1] : vector<8x9xi32> to vector<8xi32>
    %86 = vector.shape_cast %85 : vector<8xi32> to vector<8x1xi32>
    %c0_70 = arith.constant 0 : index
    %c0_71 = arith.constant 0 : index
    %c0_72 = arith.constant 0 : index
    %87 = vector.load %arg4[%c0_70, %c0_71, %c0_72] : memref<1x22x4xf32, #tpu.memory_space<vmem>>, vector<1x22x4xf32>
    %88 = vector.shape_cast %87 : vector<1x22x4xf32> to vector<22x4xf32>
    %cst_73 = arith.constant dense<0xFF800000> : vector<22xf32>
    %89 = vector.multi_reduction <maximumf>, %88, %cst_73 [1] : vector<22x4xf32> to vector<22xf32>
    %90 = vector.shape_cast %89 : vector<22xf32> to vector<22x1xf32>
    %91 = tpu.iota {dimensions = array<i32: 1>} : vector<22x4xi32>
    %92 = vector.broadcast %90 : vector<22x1xf32> to vector<22x4xf32>
    %93 = arith.cmpf oge, %88, %92 : vector<22x4xf32>
    %c4_i32 = arith.constant 4 : i32
    %94 = vector.broadcast %c4_i32 : i32 to vector<22x4xi32>
    %95 = arith.select %93, %91, %94 : vector<22x4xi1>, vector<22x4xi32>
    %cst_74 = arith.constant dense<2147483647> : vector<22xi32>
    %96 = vector.multi_reduction <minsi>, %95, %cst_74 [1] : vector<22x4xi32> to vector<22xi32>
    %97 = vector.shape_cast %96 : vector<22xi32> to vector<22x1xi32>
    %98 = vector.extract_strided_slice %61 {offsets = [0, 0], sizes = [8, 9], strides = [1, 1]} : vector<8x18xf32> to vector<8x9xf32>
    %cst_75 = arith.constant dense<0xFF800000> : vector<8xf32>
    %99 = vector.multi_reduction <maximumf>, %98, %cst_75 [1] : vector<8x9xf32> to vector<8xf32>
    %100 = vector.shape_cast %99 : vector<8xf32> to vector<8x1xf32>
    %101 = tpu.iota {dimensions = array<i32: 1>} : vector<8x9xi32>
    %102 = vector.broadcast %100 : vector<8x1xf32> to vector<8x9xf32>
    %103 = arith.cmpf oge, %98, %102 : vector<8x9xf32>
    %c9_i32_76 = arith.constant 9 : i32
    %104 = vector.broadcast %c9_i32_76 : i32 to vector<8x9xi32>
    %105 = arith.select %103, %101, %104 : vector<8x9xi1>, vector<8x9xi32>
    %cst_77 = arith.constant dense<2147483647> : vector<8xi32>
    %106 = vector.multi_reduction <minsi>, %105, %cst_77 [1] : vector<8x9xi32> to vector<8xi32>
    %107 = vector.shape_cast %106 : vector<8xi32> to vector<8x1xi32>
    %108 = arith.addi %86, %107 : vector<8x1xi32>
    %c9_i32_78 = arith.constant 9 : i32
    %109 = vector.broadcast %c9_i32_78 : i32 to vector<8x1xi32>
    %110 = arith.cmpi sge, %108, %109 : vector<8x1xi32>
    %c9_i32_79 = arith.constant 9 : i32
    %111 = vector.broadcast %c9_i32_79 : i32 to vector<8x1xi32>
    %112 = arith.subi %108, %111 : vector<8x1xi32>
    %113 = arith.select %110, %112, %108 : vector<8x1xi1>, vector<8x1xi32>
    %114 = vector.extract_strided_slice %75 {offsets = [0, 0], sizes = [22, 4], strides = [1, 1]} : vector<22x8xf32> to vector<22x4xf32>
    %cst_80 = arith.constant dense<0xFF800000> : vector<22xf32>
    %115 = vector.multi_reduction <maximumf>, %114, %cst_80 [1] : vector<22x4xf32> to vector<22xf32>
    %116 = vector.shape_cast %115 : vector<22xf32> to vector<22x1xf32>
    %117 = tpu.iota {dimensions = array<i32: 1>} : vector<22x4xi32>
    %118 = vector.broadcast %116 : vector<22x1xf32> to vector<22x4xf32>
    %119 = arith.cmpf oge, %114, %118 : vector<22x4xf32>
    %c4_i32_81 = arith.constant 4 : i32
    %120 = vector.broadcast %c4_i32_81 : i32 to vector<22x4xi32>
    %121 = arith.select %119, %117, %120 : vector<22x4xi1>, vector<22x4xi32>
    %cst_82 = arith.constant dense<2147483647> : vector<22xi32>
    %122 = vector.multi_reduction <minsi>, %121, %cst_82 [1] : vector<22x4xi32> to vector<22xi32>
    %123 = vector.shape_cast %122 : vector<22xi32> to vector<22x1xi32>
    %124 = arith.addi %97, %123 : vector<22x1xi32>
    %c4_i32_83 = arith.constant 4 : i32
    %125 = vector.broadcast %c4_i32_83 : i32 to vector<22x1xi32>
    %126 = arith.cmpi sge, %124, %125 : vector<22x1xi32>
    %c4_i32_84 = arith.constant 4 : i32
    %127 = vector.broadcast %c4_i32_84 : i32 to vector<22x1xi32>
    %128 = arith.subi %124, %127 : vector<22x1xi32>
    %129 = arith.select %126, %128, %124 : vector<22x1xi1>, vector<22x1xi32>
    %130 = vector.extract_strided_slice %61 {offsets = [0, 9], sizes = [8, 9], strides = [1, 1]} : vector<8x18xf32> to vector<8x9xf32>
    %cst_85 = arith.constant dense<0xFF800000> : vector<8xf32>
    %131 = vector.multi_reduction <maximumf>, %130, %cst_85 [1] : vector<8x9xf32> to vector<8xf32>
    %132 = vector.shape_cast %131 : vector<8xf32> to vector<8x1xf32>
    %133 = tpu.iota {dimensions = array<i32: 1>} : vector<8x9xi32>
    %134 = vector.broadcast %132 : vector<8x1xf32> to vector<8x9xf32>
    %135 = arith.cmpf oge, %130, %134 : vector<8x9xf32>
    %c9_i32_86 = arith.constant 9 : i32
    %136 = vector.broadcast %c9_i32_86 : i32 to vector<8x9xi32>
    %137 = arith.select %135, %133, %136 : vector<8x9xi1>, vector<8x9xi32>
    %cst_87 = arith.constant dense<2147483647> : vector<8xi32>
    %138 = vector.multi_reduction <minsi>, %137, %cst_87 [1] : vector<8x9xi32> to vector<8xi32>
    %139 = vector.shape_cast %138 : vector<8xi32> to vector<8x1xi32>
    %140 = arith.addi %113, %139 : vector<8x1xi32>
    %c9_i32_88 = arith.constant 9 : i32
    %141 = vector.broadcast %c9_i32_88 : i32 to vector<8x1xi32>
    %142 = arith.cmpi sge, %140, %141 : vector<8x1xi32>
    %c9_i32_89 = arith.constant 9 : i32
    %143 = vector.broadcast %c9_i32_89 : i32 to vector<8x1xi32>
    %144 = arith.subi %140, %143 : vector<8x1xi32>
    %145 = arith.select %142, %144, %140 : vector<8x1xi1>, vector<8x1xi32>
    %146 = vector.extract_strided_slice %75 {offsets = [0, 4], sizes = [22, 4], strides = [1, 1]} : vector<22x8xf32> to vector<22x4xf32>
    %cst_90 = arith.constant dense<0xFF800000> : vector<22xf32>
    %147 = vector.multi_reduction <maximumf>, %146, %cst_90 [1] : vector<22x4xf32> to vector<22xf32>
    %148 = vector.shape_cast %147 : vector<22xf32> to vector<22x1xf32>
    %149 = tpu.iota {dimensions = array<i32: 1>} : vector<22x4xi32>
    %150 = vector.broadcast %148 : vector<22x1xf32> to vector<22x4xf32>
    %151 = arith.cmpf oge, %146, %150 : vector<22x4xf32>
    %c4_i32_91 = arith.constant 4 : i32
    %152 = vector.broadcast %c4_i32_91 : i32 to vector<22x4xi32>
    %153 = arith.select %151, %149, %152 : vector<22x4xi1>, vector<22x4xi32>
    %cst_92 = arith.constant dense<2147483647> : vector<22xi32>
    %154 = vector.multi_reduction <minsi>, %153, %cst_92 [1] : vector<22x4xi32> to vector<22xi32>
    %155 = vector.shape_cast %154 : vector<22xi32> to vector<22x1xi32>
    %156 = arith.addi %129, %155 : vector<22x1xi32>
    %c4_i32_93 = arith.constant 4 : i32
    %157 = vector.broadcast %c4_i32_93 : i32 to vector<22x1xi32>
    %158 = arith.cmpi sge, %156, %157 : vector<22x1xi32>
    %c4_i32_94 = arith.constant 4 : i32
    %159 = vector.broadcast %c4_i32_94 : i32 to vector<22x1xi32>
    %160 = arith.subi %156, %159 : vector<22x1xi32>
    %161 = arith.select %158, %160, %156 : vector<22x1xi1>, vector<22x1xi32>
    %162 = tpu.iota {dimensions = array<i32: 1>} : vector<8x9xi32>
    %163 = vector.broadcast %145 : vector<8x1xi32> to vector<8x9xi32>
    %164 = arith.cmpi eq, %162, %163 : vector<8x9xi32>
    %165 = arith.extui %164 : vector<8x9xi1> to vector<8x9xi32>
    %166 = arith.sitofp %165 : vector<8x9xi32> to vector<8x9xf32>
    %c0_95 = arith.constant 0 : index
    %c0_96 = arith.constant 0 : index
    %c0_97 = arith.constant 0 : index
    %167 = vector.load %arg16[%c0_95, %c0_96, %c0_97] : memref<1x8x9xf32, #tpu.memory_space<vmem>>, vector<1x8x9xf32>
    %168 = vector.shape_cast %167 : vector<1x8x9xf32> to vector<8x9xf32>
    %169 = vector.shape_cast %166 : vector<8x9xf32> to vector<1x8x9xf32>
    tpu.vector_store %arg16[%c0_95, %c0_96, %c0_97], %169 {strides = array<i32>} : memref<1x8x9xf32, #tpu.memory_space<vmem>>, vector<1x8x9xf32>,
    %170 = tpu.iota {dimensions = array<i32: 1>} : vector<22x4xi32>
    %171 = vector.broadcast %161 : vector<22x1xi32> to vector<22x4xi32>
    %172 = arith.cmpi eq, %170, %171 : vector<22x4xi32>
    %173 = arith.extui %172 : vector<22x4xi1> to vector<22x4xi32>
    %174 = arith.sitofp %173 : vector<22x4xi32> to vector<22x4xf32>
    %c0_98 = arith.constant 0 : index
    %c0_99 = arith.constant 0 : index
    %c0_100 = arith.constant 0 : index
    %175 = vector.load %arg17[%c0_98, %c0_99, %c0_100] : memref<1x22x4xf32, #tpu.memory_space<vmem>>, vector<1x22x4xf32>
    %176 = vector.shape_cast %175 : vector<1x22x4xf32> to vector<22x4xf32>
    %177 = vector.shape_cast %174 : vector<22x4xf32> to vector<1x22x4xf32>
    tpu.vector_store %arg17[%c0_98, %c0_99, %c0_100], %177 {strides = array<i32>} : memref<1x22x4xf32, #tpu.memory_space<vmem>>, vector<1x22x4xf32>,
    return
  }
  func.func @transform_0(%arg0: i32) -> (i32, i32, i32) {
    %c0_i32 = arith.constant 0 : i32
    %c0_i32_0 = arith.constant 0 : i32
    %c0_i32_1 = arith.constant 0 : i32
    return %arg0, %c0_i32, %c0_i32_0 : i32, i32, i32
  }
  func.func @transform_1(%arg0: i32) -> (i32, i32, i32, i32) {
    %c0_i32 = arith.constant 0 : i32
    %c0_i32_0 = arith.constant 0 : i32
    %c0_i32_1 = arith.constant 0 : i32
    %c0_i32_2 = arith.constant 0 : i32
    return %arg0, %c0_i32, %c0_i32_0, %c0_i32_1 : i32, i32, i32, i32
  }
  func.func @transform_2(%arg0: i32) -> (i32, i32, i32) {
    %c0_i32 = arith.constant 0 : i32
    %c0_i32_0 = arith.constant 0 : i32
    %c0_i32_1 = arith.constant 0 : i32
    return %arg0, %c0_i32, %c0_i32_0 : i32, i32, i32
  }
  func.func @transform_3(%arg0: i32) -> (i32, i32, i32) {
    %c0_i32 = arith.constant 0 : i32
    %c0_i32_0 = arith.constant 0 : i32
    %c0_i32_1 = arith.constant 0 : i32
    return %arg0, %c0_i32, %c0_i32_0 : i32, i32, i32
  }
  func.func @transform_4(%arg0: i32) -> (i32, i32) {
    %c0_i32 = arith.constant 0 : i32
    %c0_i32_0 = arith.constant 0 : i32
    %c0_i32_1 = arith.constant 0 : i32
    return %c0_i32, %c0_i32_0 : i32, i32
  }
  func.func @transform_5(%arg0: i32) -> (i32, i32) {
    %c0_i32 = arith.constant 0 : i32
    %c0_i32_0 = arith.constant 0 : i32
    %c0_i32_1 = arith.constant 0 : i32
    return %c0_i32, %c0_i32_0 : i32, i32
  }
  func.func @transform_6(%arg0: i32) -> (i32, i32) {
    %c0_i32 = arith.constant 0 : i32
    %c0_i32_0 = arith.constant 0 : i32
    %c0_i32_1 = arith.constant 0 : i32
    return %c0_i32, %c0_i32_0 : i32, i32
  }
  func.func @transform_7(%arg0: i32) -> (i32, i32) {
    %c0_i32 = arith.constant 0 : i32
    %c0_i32_0 = arith.constant 0 : i32
    %c0_i32_1 = arith.constant 0 : i32
    return %c0_i32, %c0_i32_0 : i32, i32
  }
  func.func @transform_8(%arg0: i32) -> (i32, i32) {
    %c0_i32 = arith.constant 0 : i32
    %c0_i32_0 = arith.constant 0 : i32
    %c0_i32_1 = arith.constant 0 : i32
    return %c0_i32, %c0_i32_0 : i32, i32
  }
  func.func @transform_9(%arg0: i32) -> (i32, i32) {
    %c0_i32 = arith.constant 0 : i32
    %c0_i32_0 = arith.constant 0 : i32
    %c0_i32_1 = arith.constant 0 : i32
    return %c0_i32, %c0_i32_0 : i32, i32
  }
  func.func @transform_10(%arg0: i32) -> (i32, i32) {
    %c0_i32 = arith.constant 0 : i32
    %c0_i32_0 = arith.constant 0 : i32
    %c0_i32_1 = arith.constant 0 : i32
    return %c0_i32, %c0_i32_0 : i32, i32
  }
  func.func @transform_11(%arg0: i32) -> (i32, i32) {
    %c0_i32 = arith.constant 0 : i32
    %c0_i32_0 = arith.constant 0 : i32
    %c0_i32_1 = arith.constant 0 : i32
    return %c0_i32, %c0_i32_0 : i32, i32
  }
  func.func @transform_12(%arg0: i32) -> (i32, i32) {
    %c0_i32 = arith.constant 0 : i32
    %c0_i32_0 = arith.constant 0 : i32
    %c0_i32_1 = arith.constant 0 : i32
    return %c0_i32, %c0_i32_0 : i32, i32
  }
  func.func @transform_13(%arg0: i32) -> (i32, i32) {
    %c0_i32 = arith.constant 0 : i32
    %c0_i32_0 = arith.constant 0 : i32
    %c0_i32_1 = arith.constant 0 : i32
    return %c0_i32, %c0_i32_0 : i32, i32
  }
  func.func @transform_14(%arg0: i32) -> (i32, i32) {
    %c0_i32 = arith.constant 0 : i32
    %c0_i32_0 = arith.constant 0 : i32
    %c0_i32_1 = arith.constant 0 : i32
    return %c0_i32, %c0_i32_0 : i32, i32
  }
  func.func @transform_15(%arg0: i32) -> (i32, i32, i32) {
    %c0_i32 = arith.constant 0 : i32
    %c0_i32_0 = arith.constant 0 : i32
    %c0_i32_1 = arith.constant 0 : i32
    return %arg0, %c0_i32, %c0_i32_0 : i32, i32, i32
  }
  func.func @transform_16(%arg0: i32) -> (i32, i32, i32) {
    %c0_i32 = arith.constant 0 : i32
    %c0_i32_0 = arith.constant 0 : i32
    %c0_i32_1 = arith.constant 0 : i32
    return %arg0, %c0_i32, %c0_i32_0 : i32, i32, i32
  }
}

</mosaic_0001>

<llo_original>
// kernel: graphflow_forward.1
$region0: #{graphflow_forward.1}
  #allocation0 [shape = 'u32[]', space=smem, size = 0x4, offset = 0x4, fixed_abs, tag = 'smem constant byte address 0x4 - core index']
  #allocation1 [shape = 'u32[144,128]{1,0:T(1,128)}', space=vmem, size = 0x12000, scoped, tag = 'internal scratch']
  #allocation2 [shape = 'f32[22,96]{1,0:T(8,128)}', space=vmem, size = 0x3000, scoped, tag = 'scratch operand']
  %s0 = inlined_call_operand.vmem [shape: bf16[2,240,9], index: 0, kind: input, shape index: {}]
  %s1 = inlined_call_operand.vmem [shape: bf16[2,3,240,240], index: 1, kind: input, shape index: {}]
  %s2 = inlined_call_operand.vmem [shape: f32[2,8,9], index: 2, kind: input, shape index: {}]
  %s3 = inlined_call_operand.vmem [shape: f32[2,22,4], index: 3, kind: input, shape index: {}]
  %s4 = inlined_call_operand.vmem [shape: bf16[80,240], index: 4, kind: input, shape index: {}]
  %s5 = inlined_call_operand.vmem [shape: bf16[9,96], index: 5, kind: input, shape index: {}]
  %s6 = inlined_call_operand.vmem [shape: bf16[32,96], index: 6, kind: input, shape index: {}]
  %s7 = inlined_call_operand.vmem [shape: bf16[32,64], index: 7, kind: input, shape index: {}]
  %s8 = inlined_call_operand.vmem [shape: f32[1,64], index: 8, kind: input, shape index: {}]
  %s9 = inlined_call_operand.vmem [shape: bf16[64,18], index: 9, kind: input, shape index: {}]
  %s10 = inlined_call_operand.vmem [shape: f32[1,18], index: 10, kind: input, shape index: {}]
  %s11 = inlined_call_operand.vmem [shape: bf16[96,64], index: 11, kind: input, shape index: {}]
  %s12 = inlined_call_operand.vmem [shape: f32[1,64], index: 12, kind: input, shape index: {}]
  %s13 = inlined_call_operand.vmem [shape: bf16[64,8], index: 13, kind: input, shape index: {}]
  %s14 = inlined_call_operand.vmem [shape: f32[1,8], index: 14, kind: input, shape index: {}]
  %s15 = inlined_call_operand.vmem [shape: f32[2,8,9], index: 15, kind: output, shape index: {0}]
  %s16 = inlined_call_operand.vmem [shape: f32[2,22,4], index: 16, kind: output, shape index: {1}]
  %17 = xla_tuple %s15, %s16
  %s18 = sld [smem:[#allocation0]]
  $region101: #{graphflow_forward.1} parent=0
    _
  %s20 = ssub.s32 1, %s18
  %s21 = scalar_select 0, %s20, %s18
  loop: start=0, step=1, limit=4
  $region2: #{graphflow_forward.1} parent=0 // loop_pre_header
    _
  $region3: #{graphflow_forward.1} parent=0 // loop_header
    %s23 = sphi 0, %s27
    %p24 = scmp.ge.s32.totalorder %s23, 4
    %s33 = sphi 0, %s35
    %s36 = sphi 0, %s33
    %s37 = sphi 0, %s36
    %s53 = sphi 0, %s37
    %s59 = sphi 0, %s61
    %s62 = sphi 0, %s59
    %s63 = sphi 0, %s62
    %s79 = sphi 0, %s63
    %s85 = sphi 0, %s87
    %s88 = sphi 0, %s85
    %s89 = sphi 0, %s88
    %s105 = sphi 0, %s89
    %s111 = sphi 0, %s113
    %s114 = sphi 0, %s111
    %s115 = sphi 0, %s114
    %s131 = sphi 0, %s115
    %s135 = sphi 0, %s135
    %s137 = sphi 0, %s135
    %s138 = sphi 0, %s137
    %s152 = sphi 0, %s138
    %s156 = sphi 0, %s156
    %s158 = sphi 0, %s156
    %s159 = sphi 0, %s158
    %s173 = sphi 0, %s159
    %s177 = sphi 0, %s177
    %s179 = sphi 0, %s177
    %s180 = sphi 0, %s179
    %s194 = sphi 0, %s180
    %s198 = sphi 0, %s198
    %s200 = sphi 0, %s198
    %s201 = sphi 0, %s200
    %s215 = sphi 0, %s201
    %s219 = sphi 0, %s219
    %s221 = sphi 0, %s219
    %s222 = sphi 0, %s221
    %s236 = sphi 0, %s222
    %s240 = sphi 0, %s240
    %s242 = sphi 0, %s240
    %s243 = sphi 0, %s242
    %s257 = sphi 0, %s243
    %s261 = sphi 0, %s261
    %s263 = sphi 0, %s261
    %s264 = sphi 0, %s263
    %s278 = sphi 0, %s264
    %s282 = sphi 0, %s282
    %s284 = sphi 0, %s282
    %s285 = sphi 0, %s284
    %s299 = sphi 0, %s285
    %s303 = sphi 0, %s303
    %s305 = sphi 0, %s303
    %s306 = sphi 0, %s305
    %s320 = sphi 0, %s306
    %s324 = sphi 0, %s324
    %s326 = sphi 0, %s324
    %s327 = sphi 0, %s326
    %s341 = sphi 0, %s327
    %s345 = sphi 0, %s345
    %s347 = sphi 0, %s345
    %s348 = sphi 0, %s347
    %s362 = sphi 0, %s348
    %s368 = sphi 0, %s370
    %s371 = sphi 0, %s368
    %s372 = sphi 0, %s371
    %s388 = sphi 0, %s372
    %s394 = sphi 0, %s396
    %s397 = sphi 0, %s394
    %s398 = sphi 0, %s397
    %s414 = sphi 0, %s398
  $region4: #{graphflow_forward.1} parent=0 // loop_header_branch
    %26 = sbr.rel (%p24) target = $region8
  $region5: #{graphflow_forward.1} parent=0 // loop_body
    %s28 = ssub.s32 %s23, 1
    %s29 = ssub.s32 %s23, 2
    %s30 = sadd.s32 %s23, 1
    %s31 = ssub.s32 %s23, %s30
    %p32 = scmp.eq.s32.totalorder %s31, 0
    %s34 = sadd.s32 %s33, 1
    %s35 = scalar_select %p32, %s33, %s34
    %p38 = pneg %p32
    %p39 = scmp.eq.s32.totalorder %s23, 1
    %p40 = por %p38, %p39
    %p41 = scmp.ne.s32.totalorder %s33, %s36
    %p42 = scmp.eq.s32.totalorder %s23, 0
    %p43 = por %p41, %p42
    %p44 = scmp.ne.s32.totalorder %s33, %s36
    %p45 = scmp.eq.s32.totalorder %s28, 1
    %p46 = por %p44, %p45
    %p47 = scmp.ne.s32.totalorder %s36, %s37
    %p48 = scmp.eq.s32.totalorder %s28, 0
    %p49 = por %p47, %p48
    %p50 = scmp.ne.s32.totalorder %s36, %s37
    %p51 = scmp.eq.s32.totalorder %s29, 1
    %p52 = por %p50, %p51
    %p54 = scmp.ne.s32.totalorder %s37, %s53
    %p55 = scmp.eq.s32.totalorder %s29, 0
    %p56 = por %p54, %p55
    %s57 = ssub.s32 %s23, %s30
    %p58 = scmp.eq.s32.totalorder %s57, 0
    %s60 = sadd.s32 %s59, 1
    %s61 = scalar_select %p58, %s59, %s60
    %p64 = pneg %p58
    %p65 = scmp.eq.s32.totalorder %s23, 1
    %p66 = por %p64, %p65
    %p67 = scmp.ne.s32.totalorder %s59, %s62
    %p68 = scmp.eq.s32.totalorder %s23, 0
    %p69 = por %p67, %p68
    %p70 = scmp.ne.s32.totalorder %s59, %s62
    %p71 = scmp.eq.s32.totalorder %s28, 1
    %p72 = por %p70, %p71
    %p73 = scmp.ne.s32.totalorder %s62, %s63
    %p74 = scmp.eq.s32.totalorder %s28, 0
    %p75 = por %p73, %p74
    %p76 = scmp.ne.s32.totalorder %s62, %s63
    %p77 = scmp.eq.s32.totalorder %s29, 1
    %p78 = por %p76, %p77
    %p80 = scmp.ne.s32.totalorder %s63, %s79
    %p81 = scmp.eq.s32.totalorder %s29, 0
    %p82 = por %p80, %p81
    %s83 = ssub.s32 %s23, %s30
    %p84 = scmp.eq.s32.totalorder %s83, 0
    %s86 = sadd.s32 %s85, 1
    %s87 = scalar_select %p84, %s85, %s86
    %p90 = pneg %p84
    %p91 = scmp.eq.s32.totalorder %s23, 1
    %p92 = por %p90, %p91
    %p93 = scmp.ne.s32.totalorder %s85, %s88
    %p94 = scmp.eq.s32.totalorder %s23, 0
    %p95 = por %p93, %p94
    %p96 = scmp.ne.s32.totalorder %s85, %s88
    %p97 = scmp.eq.s32.totalorder %s28, 1
    %p98 = por %p96, %p97
    %p99 = scmp.ne.s32.totalorder %s88, %s89
    %p100 = scmp.eq.s32.totalorder %s28, 0
    %p101 = por %p99, %p100
    %p102 = scmp.ne.s32.totalorder %s88, %s89
    %p103 = scmp.eq.s32.totalorder %s29, 1
    %p104 = por %p102, %p103
    %p106 = scmp.ne.s32.totalorder %s89, %s105
    %p107 = scmp.eq.s32.totalorder %s29, 0
    %p108 = por %p106, %p107
    %s109 = ssub.s32 %s23, %s30
    %p110 = scmp.eq.s32.totalorder %s109, 0
    %s112 = sadd.s32 %s111, 1
    %s113 = scalar_select %p110, %s111, %s112
    %p116 = pneg %p110
    %p117 = scmp.eq.s32.totalorder %s23, 1
    %p118 = por %p116, %p117
    %p119 = scmp.ne.s32.totalorder %s111, %s114
    %p120 = scmp.eq.s32.totalorder %s23, 0
    %p121 = por %p119, %p120
    %p122 = scmp.ne.s32.totalorder %s111, %s114
    %p123 = scmp.eq.s32.totalorder %s28, 1
    %p124 = por %p122, %p123
    %p125 = scmp.ne.s32.totalorder %s114, %s115
    %p126 = scmp.eq.s32.totalorder %s28, 0
    %p127 = por %p125, %p126
    %p128 = scmp.ne.s32.totalorder %s114, %s115
    %p129 = scmp.eq.s32.totalorder %s29, 1
    %p130 = por %p128, %p129
    %p132 = scmp.ne.s32.totalorder %s115, %s131
    %p133 = scmp.eq.s32.totalorder %s29, 0
    %p134 = por %p132, %p133
    %s136 = sadd.s32 %s135, 1
    %p139 = scmp.eq.s32.totalorder %s23, 1
    %p140 = scmp.ne.s32.totalorder %s135, %s137
    %p141 = scmp.eq.s32.totalorder %s23, 0
    %p142 = por %p140, %p141
    %p143 = scmp.ne.s32.totalorder %s135, %s137
    %p144 = scmp.eq.s32.totalorder %s28, 1
    %p145 = por %p143, %p144
    %p146 = scmp.ne.s32.totalorder %s137, %s138
    %p147 = scmp.eq.s32.totalorder %s28, 0
    %p148 = por %p146, %p147
    %p149 = scmp.ne.s32.totalorder %s137, %s138
    %p150 = scmp.eq.s32.totalorder %s29, 1
    %p151 = por %p149, %p150
    %p153 = scmp.ne.s32.totalorder %s138, %s152
    %p154 = scmp.eq.s32.totalorder %s29, 0
    %p155 = por %p153, %p154
    %s157 = sadd.s32 %s156, 1
    %p160 = scmp.eq.s32.totalorder %s23, 1
    %p161 = scmp.ne.s32.totalorder %s156, %s158
    %p162 = scmp.eq.s32.totalorder %s23, 0
    %p163 = por %p161, %p162
    %p164 = scmp.ne.s32.totalorder %s156, %s158
    %p165 = scmp.eq.s32.totalorder %s28, 1
    %p166 = por %p164, %p165
    %p167 = scmp.ne.s32.totalorder %s158, %s159
    %p168 = scmp.eq.s32.totalorder %s28, 0
    %p169 = por %p167, %p168
    %p170 = scmp.ne.s32.totalorder %s158, %s159
    %p171 = scmp.eq.s32.totalorder %s29, 1
    %p172 = por %p170, %p171
    %p174 = scmp.ne.s32.totalorder %s159, %s173
    %p175 = scmp.eq.s32.totalorder %s29, 0
    %p176 = por %p174, %p175
    %s178 = sadd.s32 %s177, 1
    %p181 = scmp.eq.s32.totalorder %s23, 1
    %p182 = scmp.ne.s32.totalorder %s177, %s179
    %p183 = scmp.eq.s32.totalorder %s23, 0
    %p184 = por %p182, %p183
    %p185 = scmp.ne.s32.totalorder %s177, %s179
    %p186 = scmp.eq.s32.totalorder %s28, 1
    %p187 = por %p185, %p186
    %p188 = scmp.ne.s32.totalorder %s179, %s180
    %p189 = scmp.eq.s32.totalorder %s28, 0
    %p190 = por %p188, %p189
    %p191 = scmp.ne.s32.totalorder %s179, %s180
    %p192 = scmp.eq.s32.totalorder %s29, 1
    %p193 = por %p191, %p192
    %p195 = scmp.ne.s32.totalorder %s180, %s194
    %p196 = scmp.eq.s32.totalorder %s29, 0
    %p197 = por %p195, %p196
    %s199 = sadd.s32 %s198, 1
    %p202 = scmp.eq.s32.totalorder %s23, 1
    %p203 = scmp.ne.s32.totalorder %s198, %s200
    %p204 = scmp.eq.s32.totalorder %s23, 0
    %p205 = por %p203, %p204
    %p206 = scmp.ne.s32.totalorder %s198, %s200
    %p207 = scmp.eq.s32.totalorder %s28, 1
    %p208 = por %p206, %p207
    %p209 = scmp.ne.s32.totalorder %s200, %s201
    %p210 = scmp.eq.s32.totalorder %s28, 0
    %p211 = por %p209, %p210
    %p212 = scmp.ne.s32.totalorder %s200, %s201
    %p213 = scmp.eq.s32.totalorder %s29, 1
    %p214 = por %p212, %p213
    %p216 = scmp.ne.s32.totalorder %s201, %s215
    %p217 = scmp.eq.s32.totalorder %s29, 0
    %p218 = por %p216, %p217
    %s220 = sadd.s32 %s219, 1
    %p223 = scmp.eq.s32.totalorder %s23, 1
    %p224 = scmp.ne.s32.totalorder %s219, %s221
    %p225 = scmp.eq.s32.totalorder %s23, 0
    %p226 = por %p224, %p225
    %p227 = scmp.ne.s32.totalorder %s219, %s221
    %p228 = scmp.eq.s32.totalorder %s28, 1
    %p229 = por %p227, %p228
    %p230 = scmp.ne.s32.totalorder %s221, %s222
    %p231 = scmp.eq.s32.totalorder %s28, 0
    %p232 = por %p230, %p231
    %p233 = scmp.ne.s32.totalorder %s221, %s222
    %p234 = scmp.eq.s32.totalorder %s29, 1
    %p235 = por %p233, %p234
    %p237 = scmp.ne.s32.totalorder %s222, %s236
    %p238 = scmp.eq.s32.totalorder %s29, 0
    %p239 = por %p237, %p238
    %s241 = sadd.s32 %s240, 1
    %p244 = scmp.eq.s32.totalorder %s23, 1
    %p245 = scmp.ne.s32.totalorder %s240, %s242
    %p246 = scmp.eq.s32.totalorder %s23, 0
    %p247 = por %p245, %p246
    %p248 = scmp.ne.s32.totalorder %s240, %s242
    %p249 = scmp.eq.s32.totalorder %s28, 1
    %p250 = por %p248, %p249
    %p251 = scmp.ne.s32.totalorder %s242, %s243
    %p252 = scmp.eq.s32.totalorder %s28, 0
    %p253 = por %p251, %p252
    %p254 = scmp.ne.s32.totalorder %s242, %s243
    %p255 = scmp.eq.s32.totalorder %s29, 1
    %p256 = por %p254, %p255
    %p258 = scmp.ne.s32.totalorder %s243, %s257
    %p259 = scmp.eq.s32.totalorder %s29, 0
    %p260 = por %p258, %p259
    %s262 = sadd.s32 %s261, 1
    %p265 = scmp.eq.s32.totalorder %s23, 1
    %p266 = scmp.ne.s32.totalorder %s261, %s263
    %p267 = scmp.eq.s32.totalorder %s23, 0
    %p268 = por %p266, %p267
    %p269 = scmp.ne.s32.totalorder %s261, %s263
    %p270 = scmp.eq.s32.totalorder %s28, 1
    %p271 = por %p269, %p270
    %p272 = scmp.ne.s32.totalorder %s263, %s264
    %p273 = scmp.eq.s32.totalorder %s28, 0
    %p274 = por %p272, %p273
    %p275 = scmp.ne.s32.totalorder %s263, %s264
    %p276 = scmp.eq.s32.totalorder %s29, 1
    %p277 = por %p275, %p276
    %p279 = scmp.ne.s32.totalorder %s264, %s278
    %p280 = scmp.eq.s32.totalorder %s29, 0
    %p281 = por %p279, %p280
    %s283 = sadd.s32 %s282, 1
    %p286 = scmp.eq.s32.totalorder %s23, 1
    %p287 = scmp.ne.s32.totalorder %s282, %s284
    %p288 = scmp.eq.s32.totalorder %s23, 0
    %p289 = por %p287, %p288
    %p290 = scmp.ne.s32.totalorder %s282, %s284
    %p291 = scmp.eq.s32.totalorder %s28, 1
    %p292 = por %p290, %p291
    %p293 = scmp.ne.s32.totalorder %s284, %s285
    %p294 = scmp.eq.s32.totalorder %s28, 0
    %p295 = por %p293, %p294
    %p296 = scmp.ne.s32.totalorder %s284, %s285
    %p297 = scmp.eq.s32.totalorder %s29, 1
    %p298 = por %p296, %p297
    %p300 = scmp.ne.s32.totalorder %s285, %s299
    %p301 = scmp.eq.s32.totalorder %s29, 0
    %p302 = por %p300, %p301
    %s304 = sadd.s32 %s303, 1
    %p307 = scmp.eq.s32.totalorder %s23, 1
    %p308 = scmp.ne.s32.totalorder %s303, %s305
    %p309 = scmp.eq.s32.totalorder %s23, 0
    %p310 = por %p308, %p309
    %p311 = scmp.ne.s32.totalorder %s303, %s305
    %p312 = scmp.eq.s32.totalorder %s28, 1
    %p313 = por %p311, %p312
    %p314 = scmp.ne.s32.totalorder %s305, %s306
    %p315 = scmp.eq.s32.totalorder %s28, 0
    %p316 = por %p314, %p315
    %p317 = scmp.ne.s32.totalorder %s305, %s306
    %p318 = scmp.eq.s32.totalorder %s29, 1
    %p319 = por %p317, %p318
    %p321 = scmp.ne.s32.totalorder %s306, %s320
    %p322 = scmp.eq.s32.totalorder %s29, 0
    %p323 = por %p321, %p322
    %s325 = sadd.s32 %s324, 1
    %p328 = scmp.eq.s32.totalorder %s23, 1
    %p329 = scmp.ne.s32.totalorder %s324, %s326
    %p330 = scmp.eq.s32.totalorder %s23, 0
    %p331 = por %p329, %p330
    %p332 = scmp.ne.s32.totalorder %s324, %s326
    %p333 = scmp.eq.s32.totalorder %s28, 1
    %p334 = por %p332, %p333
    %p335 = scmp.ne.s32.totalorder %s326, %s327
    %p336 = scmp.eq.s32.totalorder %s28, 0
    %p337 = por %p335, %p336
    %p338 = scmp.ne.s32.totalorder %s326, %s327
    %p339 = scmp.eq.s32.totalorder %s29, 1
    %p340 = por %p338, %p339
    %p342 = scmp.ne.s32.totalorder %s327, %s341
    %p343 = scmp.eq.s32.totalorder %s29, 0
    %p344 = por %p342, %p343
    %s346 = sadd.s32 %s345, 1
    %p349 = scmp.eq.s32.totalorder %s23, 1
    %p350 = scmp.ne.s32.totalorder %s345, %s347
    %p351 = scmp.eq.s32.totalorder %s23, 0
    %p352 = por %p350, %p351
    %p353 = scmp.ne.s32.totalorder %s345, %s347
    %p354 = scmp.eq.s32.totalorder %s28, 1
    %p355 = por %p353, %p354
    %p356 = scmp.ne.s32.totalorder %s347, %s348
    %p357 = scmp.eq.s32.totalorder %s28, 0
    %p358 = por %p356, %p357
    %p359 = scmp.ne.s32.totalorder %s347, %s348
    %p360 = scmp.eq.s32.totalorder %s29, 1
    %p361 = por %p359, %p360
    %p363 = scmp.ne.s32.totalorder %s348, %s362
    %p364 = scmp.eq.s32.totalorder %s29, 0
    %p365 = por %p363, %p364
    %s366 = ssub.s32 %s23, %s30
    %p367 = scmp.eq.s32.totalorder %s366, 0
    %s369 = sadd.s32 %s368, 1
    %s370 = scalar_select %p367, %s368, %s369
    %p373 = pneg %p367
    %p374 = scmp.eq.s32.totalorder %s23, 1
    %p375 = por %p373, %p374
    %p376 = scmp.ne.s32.totalorder %s368, %s371
    %p377 = scmp.eq.s32.totalorder %s23, 0
    %p378 = por %p376, %p377
    %p379 = scmp.ne.s32.totalorder %s368, %s371
    %p380 = scmp.eq.s32.totalorder %s28, 1
    %p381 = por %p379, %p380
    %p382 = scmp.ne.s32.totalorder %s371, %s372
    %p383 = scmp.eq.s32.totalorder %s28, 0
    %p384 = por %p382, %p383
    %p385 = scmp.ne.s32.totalorder %s371, %s372
    %p386 = scmp.eq.s32.totalorder %s29, 1
    %p387 = por %p385, %p386
    %p389 = scmp.ne.s32.totalorder %s372, %s388
    %p390 = scmp.eq.s32.totalorder %s29, 0
    %p391 = por %p389, %p390
    %s392 = ssub.s32 %s23, %s30
    %p393 = scmp.eq.s32.totalorder %s392, 0
    %s395 = sadd.s32 %s394, 1
    %s396 = scalar_select %p393, %s394, %s395
    %p399 = pneg %p393
    %p400 = scmp.eq.s32.totalorder %s23, 1
    %p401 = por %p399, %p400
    %p402 = scmp.ne.s32.totalorder %s394, %s397
    %p403 = scmp.eq.s32.totalorder %s23, 0
    %p404 = por %p402, %p403
    %p405 = scmp.ne.s32.totalorder %s394, %s397
    %p406 = scmp.eq.s32.totalorder %s28, 1
    %p407 = por %p405, %p406
    %p408 = scmp.ne.s32.totalorder %s397, %s398
    %p409 = scmp.eq.s32.totalorder %s28, 0
    %p410 = por %p408, %p409
    %p411 = scmp.ne.s32.totalorder %s397, %s398
    %p412 = scmp.eq.s32.totalorder %s29, 1
    %p413 = por %p411, %p412
    %p415 = scmp.ne.s32.totalorder %s398, %s414
    %p416 = scmp.eq.s32.totalorder %s29, 0
    %p417 = por %p415, %p416
    %p418 = scmp.le.s32.totalorder 1, %s23
    %p419 = scmp.lt.s32.totalorder %s23, 3
    %p420 = pnand %p418, %p419
    %p421 = pneg %p420
    // Predicated region
    $region9: #{graphflow_forward.1} parent=5 // pred_check
      _
    $region10: #{graphflow_forward.1} parent=5 // pred_check_branch
      %423 = sbr.rel (%p420) target = $region12
    $region11: #{graphflow_forward.1} parent=5 // pred_region
      %s424 = ssub.s32 %s23, 1
      // Predicated region
      $region13: #{graphflow_forward.1} parent=11 // pred_check
        %p425 = pneg %p148
      $region14: #{graphflow_forward.1} parent=11 // pred_check_branch
        %427 = sbr.rel (%p425) target = $region16
      $region15: #{graphflow_forward.1} parent=11 // pred_region
        _
      $region16: #{graphflow_forward.1} parent=11 // pred_fallthru
        _
      // Predicated region
      $region17: #{graphflow_forward.1} parent=11 // pred_check
        %p428 = pneg %p169
      $region18: #{graphflow_forward.1} parent=11 // pred_check_branch
        %430 = sbr.rel (%p428) target = $region20
      $region19: #{graphflow_forward.1} parent=11 // pred_region
        _
      $region20: #{graphflow_forward.1} parent=11 // pred_fallthru
        _
      // Predicated region
      $region21: #{graphflow_forward.1} parent=11 // pred_check
        %p431 = pneg %p190
      $region22: #{graphflow_forward.1} parent=11 // pred_check_branch
        %433 = sbr.rel (%p431) target = $region24
      $region23: #{graphflow_forward.1} parent=11 // pred_region
        _
      $region24: #{graphflow_forward.1} parent=11 // pred_fallthru
        _
      // Predicated region
      $region25: #{graphflow_forward.1} parent=11 // pred_check
        %p434 = pneg %p211
      $region26: #{graphflow_forward.1} parent=11 // pred_check_branch
        %436 = sbr.rel (%p434) target = $region28
      $region27: #{graphflow_forward.1} parent=11 // pred_region
        _
      $region28: #{graphflow_forward.1} parent=11 // pred_fallthru
        _
      // Predicated region
      $region29: #{graphflow_forward.1} parent=11 // pred_check
        %p437 = pneg %p232
      $region30: #{graphflow_forward.1} parent=11 // pred_check_branch
        %439 = sbr.rel (%p437) target = $region32
      $region31: #{graphflow_forward.1} parent=11 // pred_region
        _
      $region32: #{graphflow_forward.1} parent=11 // pred_fallthru
        _
      // Predicated region
      $region33: #{graphflow_forward.1} parent=11 // pred_check
        %p440 = pneg %p253
      $region34: #{graphflow_forward.1} parent=11 // pred_check_branch
        %442 = sbr.rel (%p440) target = $region36
      $region35: #{graphflow_forward.1} parent=11 // pred_region
        _
      $region36: #{graphflow_forward.1} parent=11 // pred_fallthru
        _
      // Predicated region
      $region37: #{graphflow_forward.1} parent=11 // pred_check
        %p443 = pneg %p274
      $region38: #{graphflow_forward.1} parent=11 // pred_check_branch
        %445 = sbr.rel (%p443) target = $region40
      $region39: #{graphflow_forward.1} parent=11 // pred_region
        _
      $region40: #{graphflow_forward.1} parent=11 // pred_fallthru
        _
      // Predicated region
      $region41: #{graphflow_forward.1} parent=11 // pred_check
        %p446 = pneg %p295
      $region42: #{graphflow_forward.1} parent=11 // pred_check_branch
        %448 = sbr.rel (%p446) target = $region44
      $region43: #{graphflow_forward.1} parent=11 // pred_region
        _
      $region44: #{graphflow_forward.1} parent=11 // pred_fallthru
        _
      // Predicated region
      $region45: #{graphflow_forward.1} parent=11 // pred_check
        %p449 = pneg %p316
      $region46: #{graphflow_forward.1} parent=11 // pred_check_branch
        %451 = sbr.rel (%p449) target = $region48
      $region47: #{graphflow_forward.1} parent=11 // pred_region
        _
      $region48: #{graphflow_forward.1} parent=11 // pred_fallthru
        _
      // Predicated region
      $region49: #{graphflow_forward.1} parent=11 // pred_check
        %p452 = pneg %p337
      $region50: #{graphflow_forward.1} parent=11 // pred_check_branch
        %454 = sbr.rel (%p452) target = $region52
      $region51: #{graphflow_forward.1} parent=11 // pred_region
        _
      $region52: #{graphflow_forward.1} parent=11 // pred_fallthru
        _
      // Predicated region
      $region53: #{graphflow_forward.1} parent=11 // pred_check
        %p455 = pneg %p358
      $region54: #{graphflow_forward.1} parent=11 // pred_check_branch
        %457 = sbr.rel (%p455) target = $region56
      $region55: #{graphflow_forward.1} parent=11 // pred_region
        _
      $region56: #{graphflow_forward.1} parent=11 // pred_fallthru
        _
    $region12: #{graphflow_forward.1} parent=5 // pred_fallthru
      _
    %p458 = scmp.lt.s32.totalorder %s23, 2
    // Predicated region
    $region57: #{graphflow_forward.1} parent=5 // pred_check
      %p459 = pneg %p458
    $region58: #{graphflow_forward.1} parent=5 // pred_check_branch
      %461 = sbr.rel (%p459) target = $region60
    $region59: #{graphflow_forward.1} parent=5 // pred_region
      // Predicated region
      $region61: #{graphflow_forward.1} parent=59 // pred_check
        %p462 = pneg %p43
      $region62: #{graphflow_forward.1} parent=59 // pred_check_branch
        %464 = sbr.rel (%p462) target = $region64
      $region63: #{graphflow_forward.1} parent=59 // pred_region
        %p465 = scmp.lt.s32.totalorder %s23, 1
        %s466 = scalar_select %p465, %s23, 1
        %s467 = smul.addr %s466, 30
        %s468 = smul.addr %s467, 4
        %s469 = scalar_lea.vmem %s0, %s468
      $region64: #{graphflow_forward.1} parent=59 // pred_fallthru
        _
      // Predicated region
      $region65: #{graphflow_forward.1} parent=59 // pred_check
        %p470 = pneg %p69
      $region66: #{graphflow_forward.1} parent=59 // pred_check_branch
        %472 = sbr.rel (%p470) target = $region68
      $region67: #{graphflow_forward.1} parent=59 // pred_region
        %p473 = scmp.lt.s32.totalorder %s23, 1
        %s474 = scalar_select %p473, %s23, 1
        %s475 = smul.addr %s474, 180
        %s476 = smul.addr %s475, 4
        %s477 = scalar_lea.vmem %s1, %s476
      $region68: #{graphflow_forward.1} parent=59 // pred_fallthru
        _
      // Predicated region
      $region69: #{graphflow_forward.1} parent=59 // pred_check
        %p478 = pneg %p95
      $region70: #{graphflow_forward.1} parent=59 // pred_check_branch
        %480 = sbr.rel (%p478) target = $region72
      $region71: #{graphflow_forward.1} parent=59 // pred_region
        %p481 = scmp.lt.s32.totalorder %s23, 1
        %s482 = scalar_select %p481, %s23, 1
        %s483 = smul.addr %s482, 8
        %s484 = scalar_lea.vmem %s2, %s483
      $region72: #{graphflow_forward.1} parent=59 // pred_fallthru
        _
      // Predicated region
      $region73: #{graphflow_forward.1} parent=59 // pred_check
        %p485 = pneg %p121
      $region74: #{graphflow_forward.1} parent=59 // pred_check_branch
        %487 = sbr.rel (%p485) target = $region76
      $region75: #{graphflow_forward.1} parent=59 // pred_region
        %p488 = scmp.lt.s32.totalorder %s23, 1
        %s489 = scalar_select %p488, %s23, 1
        %s490 = smul.addr %s489, 3
        %s491 = smul.addr %s490, 8
        %s492 = scalar_lea.vmem %s3, %s491
      $region76: #{graphflow_forward.1} parent=59 // pred_fallthru
        _
    $region60: #{graphflow_forward.1} parent=5 // pred_fallthru
      _
    %p493 = scmp.le.s32.totalorder 1, %s23
    %p494 = scmp.lt.s32.totalorder %s23, 3
    %p495 = pnand %p493, %p494
    %p496 = pneg %p495
    // Predicated region
    $region77: #{graphflow_forward.1} parent=5 // pred_check
      _
    $region78: #{graphflow_forward.1} parent=5 // pred_check_branch
      %498 = sbr.rel (%p495) target = $region80
    $region79: #{graphflow_forward.1} parent=5 // pred_region
      %s499 = ssub.s32 %s23, 1
      %p500 = scmp.lt.s32.totalorder %s28, 1
      %s501 = scalar_select %p500, %s28, 1
      %s502 = smul.addr %s501, 30
      %s503 = smul.addr %s502, 4
      %s504 = scalar_lea.vmem %s0, %s503
      %p505 = pneg %p49
      %p506 = pneg %p46
      %p507 = scmp.lt.s32.totalorder %s28, 1
      %s508 = scalar_select %p507, %s28, 1
      %s509 = smul.addr %s508, 180
      %s510 = smul.addr %s509, 4
      %s511 = scalar_lea.vmem %s1, %s510
      %p512 = pneg %p75
      %p513 = pneg %p72
      %p514 = scmp.lt.s32.totalorder %s28, 1
      %s515 = scalar_select %p514, %s28, 1
      %s516 = smul.addr %s515, 8
      %s517 = scalar_lea.vmem %s2, %s516
      %p518 = pneg %p101
      %p519 = pneg %p98
      %p520 = scmp.lt.s32.totalorder %s28, 1
      %s521 = scalar_select %p520, %s28, 1
      %s522 = smul.addr %s521, 3
      %s523 = smul.addr %s522, 8
      %s524 = scalar_lea.vmem %s3, %s523
      %p525 = pneg %p127
      %p526 = pneg %p124
      %p527 = pneg %p148
      %p528 = pneg %p145
      %p529 = pneg %p169
      %p530 = pneg %p166
      %p531 = pneg %p190
      %p532 = pneg %p187
      %p533 = pneg %p211
      %p534 = pneg %p208
      %p535 = pneg %p232
      %p536 = pneg %p229
      %p537 = pneg %p253
      %p538 = pneg %p250
      %p539 = pneg %p274
      %p540 = pneg %p271
      %p541 = pneg %p295
      %p542 = pneg %p292
      %p543 = pneg %p316
      %p544 = pneg %p313
      %p545 = pneg %p337
      %p546 = pneg %p334
      %p547 = pneg %p358
      %p548 = pneg %p355
      %p549 = pneg %p384
      %p550 = pneg %p381
      %p551 = scmp.lt.s32.totalorder %s28, 1
      %s552 = scalar_select %p551, %s28, 1
      %s553 = smul.addr %s552, 8
      %s554 = scalar_lea.vmem %s15, %s553
      %p555 = pneg %p410
      %p556 = pneg %p407
      %p557 = scmp.lt.s32.totalorder %s28, 1
      %s558 = scalar_select %p557, %s28, 1
      %s559 = smul.addr %s558, 3
      %s560 = smul.addr %s559, 8
      %s561 = scalar_lea.vmem %s16, %s560
      %p562 = scmp.lt.s32.totalorder %s28, 1
      %s563 = scalar_select %p562, %s28, 1
      %s564 = smul.addr %s563, 30
      %s565 = smul.addr %s564, 4
      %s566 = scalar_lea.vmem %s0, %s565
      %p567 = scmp.lt.s32.totalorder %s28, 1
      %s568 = scalar_select %p567, %s28, 1
      %s569 = smul.addr %s568, 180
      %s570 = smul.addr %s569, 4
      %s571 = scalar_lea.vmem %s1, %s570
      %p572 = scmp.lt.s32.totalorder %s28, 1
      %s573 = scalar_select %p572, %s28, 1
      %s574 = smul.addr %s573, 8
      %s575 = scalar_lea.vmem %s2, %s574
      %p576 = scmp.lt.s32.totalorder %s28, 1
      %s577 = scalar_select %p576, %s28, 1
      %s578 = smul.addr %s577, 3
      %s579 = smul.addr %s578, 8
      %s580 = scalar_lea.vmem %s3, %s579
      %p581 = scmp.lt.s32.totalorder %s28, 1
      %s582 = scalar_select %p581, %s28, 1
      %s583 = smul.addr %s582, 8
      %s584 = scalar_lea.vmem %s15, %s583
      %p585 = scmp.lt.s32.totalorder %s28, 1
      %s586 = scalar_select %p585, %s28, 1
      %s587 = smul.addr %s586, 3
      %s588 = smul.addr %s587, 8
      %s589 = scalar_lea.vmem %s16, %s588
      %v591 = vld [vmem:[%s566] sm:$0xf]
      %v592 = vld [vmem:[%s566 + $0x4] sm:$0xf]
      %v593 = vld [vmem:[%s566 + $0x8] sm:$0xf]
      %v594 = vld [vmem:[%s566 + $0xc] sm:$0xf]
      %v595 = vld [vmem:[%s566 + $0x10] sm:$0xf]
      %v596 = vld [vmem:[%s566 + $0x14] sm:$0xf]
      %v597 = vld [vmem:[%s566 + $0x18] sm:$0xf]
      %v598 = vld [vmem:[%s566 + $0x1c] sm:$0xf]
      %v599 = vld [vmem:[%s566 + $0x20] sm:$0xf]
      %v600 = vld [vmem:[%s566 + $0x24] sm:$0xf]
      %v601 = vld [vmem:[%s566 + $0x28] sm:$0xf]
      %v602 = vld [vmem:[%s566 + $0x2c] sm:$0xf]
      %v603 = vld [vmem:[%s566 + $0x30] sm:$0xf]
      %v604 = vld [vmem:[%s566 + $0x34] sm:$0xf]
      %v605 = vld [vmem:[%s566 + $0x38] sm:$0xf]
      %v606 = vld [vmem:[%s566 + $0x3c] sm:$0xf]
      %v607 = vld [vmem:[%s566 + $0x40] sm:$0xf]
      %v608 = vld [vmem:[%s566 + $0x44] sm:$0xf]
      %v609 = vld [vmem:[%s566 + $0x48] sm:$0xf]
      %v610 = vld [vmem:[%s566 + $0x4c] sm:$0xf]
      %v611 = vld [vmem:[%s566 + $0x50] sm:$0xf]
      %v612 = vld [vmem:[%s566 + $0x54] sm:$0xf]
      %v613 = vld [vmem:[%s566 + $0x58] sm:$0xf]
      %v614 = vld [vmem:[%s566 + $0x5c] sm:$0xf]
      %v615 = vld [vmem:[%s566 + $0x60] sm:$0xf]
      %v616 = vld [vmem:[%s566 + $0x64] sm:$0xf]
      %v617 = vld [vmem:[%s566 + $0x68] sm:$0xf]
      %v618 = vld [vmem:[%s566 + $0x6c] sm:$0xf]
      %v619 = vld [vmem:[%s566 + $0x70] sm:$0xf]
      %v620 = vld [vmem:[%s566 + $0x74] sm:$0xf]
      %v621 = vld [vmem:[%s5] sm:$0xf]
      %v622 = vld [vmem:[%s5 + $0x4] sm:$0x1]
      %v653 = vunpack.c.l.b16 %v591
      %v654 = vunpack.c.l.b16 %v592
      %v655 = vunpack.c.l.b16 %v593
      %v656 = vunpack.c.l.b16 %v594
      %v657 = vunpack.c.l.b16 %v595
      %v658 = vunpack.c.l.b16 %v596
      %v659 = vunpack.c.l.b16 %v597
      %v660 = vunpack.c.l.b16 %v598
      %v661 = vunpack.c.l.b16 %v599
      %v662 = vunpack.c.l.b16 %v600
      %v663 = vunpack.c.l.b16 %v601
      %v664 = vunpack.c.l.b16 %v602
      %v665 = vunpack.c.l.b16 %v603
      %v666 = vunpack.c.l.b16 %v604
      %v667 = vunpack.c.l.b16 %v605
      %v668 = vunpack.c.l.b16 %v606
      %v669 = vunpack.c.l.b16 %v607
      %v670 = vunpack.c.l.b16 %v608
      %v671 = vunpack.c.l.b16 %v609
      %v672 = vunpack.c.l.b16 %v610
      %v673 = vunpack.c.l.b16 %v611
      %v674 = vunpack.c.l.b16 %v612
      %v675 = vunpack.c.l.b16 %v613
      %v676 = vunpack.c.l.b16 %v614
      %v677 = vunpack.c.l.b16 %v615
      %v678 = vunpack.c.l.b16 %v616
      %v679 = vunpack.c.l.b16 %v617
      %v680 = vunpack.c.l.b16 %v618
      %v681 = vunpack.c.l.b16 %v619
      %v682 = vunpack.c.l.b16 %v620
      %v683 = vpack.c.b16 %v654, %v653
      %v684 = vpack.c.b16 %v656, %v655
      %v685 = vpack.c.b16 %v658, %v657
      %v686 = vpack.c.b16 %v660, %v659
      %v687 = vpack.c.b16 %v662, %v661
      %v688 = vpack.c.b16 %v664, %v663
      %v689 = vpack.c.b16 %v666, %v665
      %v690 = vpack.c.b16 %v668, %v667
      %v691 = vpack.c.b16 %v670, %v669
      %v692 = vpack.c.b16 %v672, %v671
      %v693 = vpack.c.b16 %v674, %v673
      %v694 = vpack.c.b16 %v676, %v675
      %v695 = vpack.c.b16 %v678, %v677
      %v696 = vpack.c.b16 %v680, %v679
      %v697 = vpack.c.b16 %v682, %v681
      %v700 = vunpack.c.l.b16 %v621
      %v701 = vunpack.c.l.b16 %v622
      %v702 = vpack.c.b16 %v701, %v700
      %vm703 = vcmask 72704
      %v705 = vsel %vm703, %v683, 0
      %v708 = vsel %vm703, %v684, 0
      %v711 = vsel %vm703, %v685, 0
      %v714 = vsel %vm703, %v686, 0
      %v717 = vsel %vm703, %v687, 0
      %v720 = vsel %vm703, %v688, 0
      %v723 = vsel %vm703, %v689, 0
      %v726 = vsel %vm703, %v690, 0
      %v729 = vsel %vm703, %v691, 0
      %v732 = vsel %vm703, %v692, 0
      %v735 = vsel %vm703, %v693, 0
      %v738 = vsel %vm703, %v694, 0
      %v741 = vsel %vm703, %v695, 0
      %v744 = vsel %vm703, %v696, 0
      %v747 = vsel %vm703, %v697, 0
      %vm749 = vcmask 1043456
      %vm750 = vcmask 1044480
      %v751 = vsel %vm749, 4294967295, 65535
      %v752 = vsel %vm750, %v751, 0
      %v754 = vand.u32 %v702, %v752
      %756 = vmatprep.subr.bf16.mxu0 0
      %757 = vmatpush1.bf16.msra.mxu0 %v754
      %758 = vmatprep.subr.bf16.mxu0 0
      %759 = vmatpush1.bf16.msra.mxu0 0
      %760 = vmatprep.subr.bf16.mxu0 0
      %761 = vmatpush1.bf16.msra.mxu0 0
      %762 = vmatprep.subr.bf16.mxu0 0
      %763 = vmatpush1.bf16.msra.mxu0 0
      %764 = vmatprep.subr.bf16.mxu0 0
      %765 = vmatpush1.bf16.msra.mxu0 0
      %766 = vmatprep.subr.bf16.mxu0 0
      %767 = vmatpush1.bf16.msra.mxu0 0
      %768 = vmatprep.subr.bf16.mxu0 0
      %769 = vmatpush1.bf16.msra.mxu0 0
      %770 = vmatprep.subr.bf16.mxu0 0
      %771 = vmatpush1.bf16.msra.mxu0 0
      %772 = vmatprep.subr.bf16.mxu0 0
      %773 = vmatpush1.bf16.msra.mxu0 0
      %774 = vmatprep.subr.bf16.mxu0 0
      %775 = vmatpush1.bf16.msra.mxu0 0
      %776 = vmatprep.subr.bf16.mxu0 0
      %777 = vmatpush1.bf16.msra.mxu0 0
      %778 = vmatprep.subr.bf16.mxu0 0
      %779 = vmatpush1.bf16.msra.mxu0 0
      %780 = vmatprep.subr.bf16.mxu0 0
      %781 = vmatpush1.bf16.msra.mxu0 0
      %782 = vmatprep.subr.bf16.mxu0 0
      %783 = vmatpush1.bf16.msra.mxu0 0
      %784 = vmatprep.subr.bf16.mxu0 0
      %785 = vmatpush1.bf16.msra.mxu0 0
      %786 = vmatprep.subr.bf16.mxu0 0
      %787 = vmatpush1.bf16.msra.mxu0 0
      %788 = vmatprep.mubr.bf16.mxu0 0
      %789 = vmatmul.mubr.bf16.gmra.mrb[0].mxu0 %v705
      %v790 = vpop.f32.mrb[0].mxu0
      %v791 = vadd.f32 0.0, %v790
      %v792 = vpop.f32.mrb[0].mxu0
      %v793 = vpop.f32.mrb[0].mxu0
      %v794 = vadd.f32 0.0, %v793
      %v795 = vpop.f32.mrb[0].mxu0
      %796 = vmatprep.mubr.bf16.mxu0 0
      %797 = vmatmul.mubr.bf16.gmra.mrb[0].mxu0 %v708
      %v798 = vpop.f32.mrb[0].mxu0
      %v799 = vadd.f32 0.0, %v798
      %v800 = vpop.f32.mrb[0].mxu0
      %v801 = vpop.f32.mrb[0].mxu0
      %v802 = vadd.f32 0.0, %v801
      %v803 = vpop.f32.mrb[0].mxu0
      %804 = vmatprep.mubr.bf16.mxu0 0
      %805 = vmatmul.mubr.bf16.gmra.mrb[0].mxu0 %v711
      %v806 = vpop.f32.mrb[0].mxu0
      %v807 = vadd.f32 0.0, %v806
      %v808 = vpop.f32.mrb[0].mxu0
      %v809 = vpop.f32.mrb[0].mxu0
      %v810 = vadd.f32 0.0, %v809
      %v811 = vpop.f32.mrb[0].mxu0
      %812 = vmatprep.mubr.bf16.mxu0 0
      %813 = vmatmul.mubr.bf16.gmra.mrb[0].mxu0 %v714
      %v814 = vpop.f32.mrb[0].mxu0
      %v815 = vadd.f32 0.0, %v814
      %v816 = vpop.f32.mrb[0].mxu0
      %v817 = vpop.f32.mrb[0].mxu0
      %v818 = vadd.f32 0.0, %v817
      %v819 = vpop.f32.mrb[0].mxu0
      %820 = vmatprep.mubr.bf16.mxu0 0
      %821 = vmatmul.mubr.bf16.gmra.mrb[0].mxu0 %v717
      %v822 = vpop.f32.mrb[0].mxu0
      %v823 = vadd.f32 0.0, %v822
      %v824 = vpop.f32.mrb[0].mxu0
      %v825 = vpop.f32.mrb[0].mxu0
      %v826 = vadd.f32 0.0, %v825
      %v827 = vpop.f32.mrb[0].mxu0
      %828 = vmatprep.mubr.bf16.mxu0 0
      %829 = vmatmul.mubr.bf16.gmra.mrb[0].mxu0 %v720
      %v830 = vpop.f32.mrb[0].mxu0
      %v831 = vadd.f32 0.0, %v830
      %v832 = vpop.f32.mrb[0].mxu0
      %v833 = vpop.f32.mrb[0].mxu0
      %v834 = vadd.f32 0.0, %v833
      %v835 = vpop.f32.mrb[0].mxu0
      %836 = vmatprep.mubr.bf16.mxu0 0
      %837 = vmatmul.mubr.bf16.gmra.mrb[0].mxu0 %v723
      %v838 = vpop.f32.mrb[0].mxu0
      %v839 = vadd.f32 0.0, %v838
      %v840 = vpop.f32.mrb[0].mxu0
      %v841 = vpop.f32.mrb[0].mxu0
      %v842 = vadd.f32 0.0, %v841
      %v843 = vpop.f32.mrb[0].mxu0
      %844 = vmatprep.mubr.bf16.mxu0 0
      %845 = vmatmul.mubr.bf16.gmra.mrb[0].mxu0 %v726
      %v846 = vpop.f32.mrb[0].mxu0
      %v847 = vadd.f32 0.0, %v846
      %v848 = vpop.f32.mrb[0].mxu0
      %v849 = vpop.f32.mrb[0].mxu0
      %v850 = vadd.f32 0.0, %v849
      %v851 = vpop.f32.mrb[0].mxu0
      %852 = vmatprep.mubr.bf16.mxu0 0
      %853 = vmatmul.mubr.bf16.gmra.mrb[0].mxu0 %v729
      %v854 = vpop.f32.mrb[0].mxu0
      %v855 = vadd.f32 0.0, %v854
      %v856 = vpop.f32.mrb[0].mxu0
      %v857 = vpop.f32.mrb[0].mxu0
      %v858 = vadd.f32 0.0, %v857
      %v859 = vpop.f32.mrb[0].mxu0
      %860 = vmatprep.mubr.bf16.mxu0 0
      %861 = vmatmul.mubr.bf16.gmra.mrb[0].mxu0 %v732
      %v862 = vpop.f32.mrb[0].mxu0
      %v863 = vadd.f32 0.0, %v862
      %v864 = vpop.f32.mrb[0].mxu0
      %v865 = vpop.f32.mrb[0].mxu0
      %v866 = vadd.f32 0.0, %v865
      %v867 = vpop.f32.mrb[0].mxu0
      %868 = vmatprep.mubr.bf16.mxu0 0
      %869 = vmatmul.mubr.bf16.gmra.mrb[0].mxu0 %v735
      %v870 = vpop.f32.mrb[0].mxu0
      %v871 = vadd.f32 0.0, %v870
      %v872 = vpop.f32.mrb[0].mxu0
      %v873 = vpop.f32.mrb[0].mxu0
      %v874 = vadd.f32 0.0, %v873
      %v875 = vpop.f32.mrb[0].mxu0
      %876 = vmatprep.mubr.bf16.mxu0 0
      %877 = vmatmul.mubr.bf16.gmra.mrb[0].mxu0 %v738
      %v878 = vpop.f32.mrb[0].mxu0
      %v879 = vadd.f32 0.0, %v878
      %v880 = vpop.f32.mrb[0].mxu0
      %v881 = vpop.f32.mrb[0].mxu0
      %v882 = vadd.f32 0.0, %v881
      %v883 = vpop.f32.mrb[0].mxu0
      %884 = vmatprep.mubr.bf16.mxu0 0
      %885 = vmatmul.mubr.bf16.gmra.mrb[0].mxu0 %v741
      %v886 = vpop.f32.mrb[0].mxu0
      %v887 = vadd.f32 0.0, %v886
      %v888 = vpop.f32.mrb[0].mxu0
      %v889 = vpop.f32.mrb[0].mxu0
      %v890 = vadd.f32 0.0, %v889
      %v891 = vpop.f32.mrb[0].mxu0
      %892 = vmatprep.mubr.bf16.mxu0 0
      %893 = vmatmul.mubr.bf16.gmra.mrb[0].mxu0 %v744
      %v894 = vpop.f32.mrb[0].mxu0
      %v895 = vadd.f32 0.0, %v894
      %v896 = vpop.f32.mrb[0].mxu0
      %v897 = vpop.f32.mrb[0].mxu0
      %v898 = vadd.f32 0.0, %v897
      %v899 = vpop.f32.mrb[0].mxu0
      %900 = vmatprep.mubr.bf16.mxu0 0
      %901 = vmatmul.mubr.bf16.gmra.mrb[0].mxu0 %v747
      %v902 = vpop.f32.mrb[0].mxu0
      %v903 = vadd.f32 0.0, %v902
      %v904 = vpop.f32.mrb[0].mxu0
      %v905 = vpop.f32.mrb[0].mxu0
      %v906 = vadd.f32 0.0, %v905
      %v907 = vpop.f32.mrb[0].mxu0
      %908 = vdwg.mxu0
      %v909 = vpack.c.bf16 %v794, %v791
      %v910 = vpack.c.bf16 %v802, %v799
      %v911 = vpack.c.bf16 %v810, %v807
      %v912 = vpack.c.bf16 %v818, %v815
      %v913 = vpack.c.bf16 %v826, %v823
      %v914 = vpack.c.bf16 %v834, %v831
      %v915 = vpack.c.bf16 %v842, %v839
      %v916 = vpack.c.bf16 %v850, %v847
      %v917 = vpack.c.bf16 %v858, %v855
      %v918 = vpack.c.bf16 %v866, %v863
      %v919 = vpack.c.bf16 %v874, %v871
      %v920 = vpack.c.bf16 %v882, %v879
      %v921 = vpack.c.bf16 %v890, %v887
      %v922 = vpack.c.bf16 %v898, %v895
      %v923 = vpack.c.bf16 %v906, %v903
      %v924 = vld [vmem:[%s571] sm:$0xff]
      %v925 = vld [vmem:[%s571 + $0x8] sm:$0xff]
      %v926 = vld [vmem:[%s571 + $0x10] sm:$0xff]
      %v927 = vld [vmem:[%s571 + $0x18] sm:$0xff]
      %v928 = vld [vmem:[%s571 + $0x20] sm:$0xff]
      %v929 = vld [vmem:[%s571 + $0x28] sm:$0xff]
      %v930 = vld [vmem:[%s571 + $0x30] sm:$0xff]
      %v931 = vld [vmem:[%s571 + $0x38] sm:$0xff]
      %v932 = vld [vmem:[%s571 + $0x40] sm:$0xff]
      %v933 = vld [vmem:[%s571 + $0x48] sm:$0xff]
      %v934 = vld [vmem:[%s571 + $0x50] sm:$0xff]
      %v935 = vld [vmem:[%s571 + $0x58] sm:$0xff]
      %v936 = vld [vmem:[%s571 + $0x60] sm:$0xff]
      %v937 = vld [vmem:[%s571 + $0x68] sm:$0xff]
      %v938 = vld [vmem:[%s571 + $0x70] sm:$0xff]
      %v939 = vld [vmem:[%s571 + $0x78] sm:$0xff]
      %v940 = vld [vmem:[%s571 + $0x80] sm:$0xff]
      %v941 = vld [vmem:[%s571 + $0x88] sm:$0xff]
      %v942 = vld [vmem:[%s571 + $0x90] sm:$0xff]
      %v943 = vld [vmem:[%s571 + $0x98] sm:$0xff]
      %v944 = vld [vmem:[%s571 + $0xa0] sm:$0xff]
      %v945 = vld [vmem:[%s571 + $0xa8] sm:$0xff]
      %v946 = vld [vmem:[%s571 + $0xb0] sm:$0xff]
      %v947 = vld [vmem:[%s571 + $0xb8] sm:$0xff]
      %v948 = vld [vmem:[%s571 + $0xc0] sm:$0xff]
      %v949 = vld [vmem:[%s571 + $0xc8] sm:$0xff]
      %v950 = vld [vmem:[%s571 + $0xd0] sm:$0xff]
      %v951 = vld [vmem:[%s571 + $0xd8] sm:$0xff]
      %v952 = vld [vmem:[%s571 + $0xe0] sm:$0xff]
      %v953 = vld [vmem:[%s571 + $0xe8] sm:$0xff]
      %s954 = scalar_lea.vmem %s571, 240
      %v955 = vld [vmem:[%s954] sm:$0xff]
      %v956 = vld [vmem:[%s954 + $0x8] sm:$0xff]
      %v957 = vld [vmem:[%s954 + $0x10] sm:$0xff]
      %v958 = vld [vmem:[%s954 + $0x18] sm:$0xff]
      %v959 = vld [vmem:[%s954 + $0x20] sm:$0xff]
      %v960 = vld [vmem:[%s954 + $0x28] sm:$0xff]
      %v961 = vld [vmem:[%s954 + $0x30] sm:$0xff]
      %v962 = vld [vmem:[%s954 + $0x38] sm:$0xff]
      %v963 = vld [vmem:[%s954 + $0x40] sm:$0xff]
      %v964 = vld [vmem:[%s954 + $0x48] sm:$0xff]
      %v965 = vld [vmem:[%s954 + $0x50] sm:$0xff]
      %v966 = vld [vmem:[%s954 + $0x58] sm:$0xff]
      %v967 = vld [vmem:[%s954 + $0x60] sm:$0xff]
      %v968 = vld [vmem:[%s954 + $0x68] sm:$0xff]
      %v969 = vld [vmem:[%s954 + $0x70] sm:$0xff]
      %v970 = vld [vmem:[%s954 + $0x78] sm:$0xff]
      %v971 = vld [vmem:[%s954 + $0x80] sm:$0xff]
      %v972 = vld [vmem:[%s954 + $0x88] sm:$0xff]
      %v973 = vld [vmem:[%s954 + $0x90] sm:$0xff]
      %v974 = vld [vmem:[%s954 + $0x98] sm:$0xff]
      %v975 = vld [vmem:[%s954 + $0xa0] sm:$0xff]
      %v976 = vld [vmem:[%s954 + $0xa8] sm:$0xff]
      %v977 = vld [vmem:[%s954 + $0xb0] sm:$0xff]
      %v978 = vld [vmem:[%s954 + $0xb8] sm:$0xff]
      %v979 = vld [vmem:[%s954 + $0xc0] sm:$0xff]
      %v980 = vld [vmem:[%s954 + $0xc8] sm:$0xff]
      %v981 = vld [vmem:[%s954 + $0xd0] sm:$0xff]
      %v982 = vld [vmem:[%s954 + $0xd8] sm:$0xff]
      %v983 = vld [vmem:[%s954 + $0xe0] sm:$0xff]
      %v984 = vld [vmem:[%s954 + $0xe8] sm:$0xff]
      %v1015 = vunpack.c.l.b16 %v955
      %v1016 = vunpack.c.h.b16 %v955
      %v1017 = vunpack.c.l.b16 %v956
      %v1018 = vunpack.c.h.b16 %v956
      %v1019 = vunpack.c.l.b16 %v957
      %v1020 = vunpack.c.h.b16 %v957
      %v1021 = vunpack.c.l.b16 %v958
      %v1022 = vunpack.c.h.b16 %v958
      %v1023 = vunpack.c.l.b16 %v959
      %v1024 = vunpack.c.h.b16 %v959
      %v1025 = vunpack.c.l.b16 %v960
      %v1026 = vunpack.c.h.b16 %v960
      %v1027 = vunpack.c.l.b16 %v961
      %v1028 = vunpack.c.h.b16 %v961
      %v1029 = vunpack.c.l.b16 %v962
      %v1030 = vunpack.c.h.b16 %v962
      %v1031 = vunpack.c.l.b16 %v963
      %v1032 = vunpack.c.h.b16 %v963
      %v1033 = vunpack.c.l.b16 %v964
      %v1034 = vunpack.c.h.b16 %v964
      %v1035 = vunpack.c.l.b16 %v965
      %v1036 = vunpack.c.h.b16 %v965
      %v1037 = vunpack.c.l.b16 %v966
      %v1038 = vunpack.c.h.b16 %v966
      %v1039 = vunpack.c.l.b16 %v967
      %v1040 = vunpack.c.h.b16 %v967
      %v1041 = vunpack.c.l.b16 %v968
      %v1042 = vunpack.c.h.b16 %v968
      %v1043 = vunpack.c.l.b16 %v969
      %v1044 = vunpack.c.h.b16 %v969
      %v1045 = vunpack.c.l.b16 %v970
      %v1046 = vunpack.c.h.b16 %v970
      %v1047 = vunpack.c.l.b16 %v971
      %v1048 = vunpack.c.h.b16 %v971
      %v1049 = vunpack.c.l.b16 %v972
      %v1050 = vunpack.c.h.b16 %v972
      %v1051 = vunpack.c.l.b16 %v973
      %v1052 = vunpack.c.h.b16 %v973
      %v1053 = vunpack.c.l.b16 %v974
      %v1054 = vunpack.c.h.b16 %v974
      %v1055 = vunpack.c.l.b16 %v975
      %v1056 = vunpack.c.h.b16 %v975
      %v1057 = vunpack.c.l.b16 %v976
      %v1058 = vunpack.c.h.b16 %v976
      %v1059 = vunpack.c.l.b16 %v977
      %v1060 = vunpack.c.h.b16 %v977
      %v1061 = vunpack.c.l.b16 %v978
      %v1062 = vunpack.c.h.b16 %v978
      %v1063 = vunpack.c.l.b16 %v979
      %v1064 = vunpack.c.h.b16 %v979
      %v1065 = vunpack.c.l.b16 %v980
      %v1066 = vunpack.c.h.b16 %v980
      %v1067 = vunpack.c.l.b16 %v981
      %v1068 = vunpack.c.h.b16 %v981
      %v1069 = vunpack.c.l.b16 %v982
      %v1070 = vunpack.c.h.b16 %v982
      %v1071 = vunpack.c.l.b16 %v983
      %v1072 = vunpack.c.h.b16 %v983
      %v1073 = vunpack.c.l.b16 %v984
      %v1074 = vunpack.c.h.b16 %v984
      %v1075 = vpack.c.b16 %v1017, %v1015
      %v1076 = vpack.c.b16 %v1018, %v1016
      %v1077 = vpack.c.b16 %v1021, %v1019
      %v1078 = vpack.c.b16 %v1022, %v1020
      %v1079 = vpack.c.b16 %v1025, %v1023
      %v1080 = vpack.c.b16 %v1026, %v1024
      %v1081 = vpack.c.b16 %v1029, %v1027
      %v1082 = vpack.c.b16 %v1030, %v1028
      %v1083 = vpack.c.b16 %v1033, %v1031
      %v1084 = vpack.c.b16 %v1034, %v1032
      %v1085 = vpack.c.b16 %v1037, %v1035
      %v1086 = vpack.c.b16 %v1038, %v1036
      %v1087 = vpack.c.b16 %v1041, %v1039
      %v1088 = vpack.c.b16 %v1042, %v1040
      %v1089 = vpack.c.b16 %v1045, %v1043
      %v1090 = vpack.c.b16 %v1046, %v1044
      %v1091 = vpack.c.b16 %v1049, %v1047
      %v1092 = vpack.c.b16 %v1050, %v1048
      %v1093 = vpack.c.b16 %v1053, %v1051
      %v1094 = vpack.c.b16 %v1054, %v1052
      %v1095 = vpack.c.b16 %v1057, %v1055
      %v1096 = vpack.c.b16 %v1058, %v1056
      %v1097 = vpack.c.b16 %v1061, %v1059
      %v1098 = vpack.c.b16 %v1062, %v1060
      %v1099 = vpack.c.b16 %v1065, %v1063
      %v1100 = vpack.c.b16 %v1066, %v1064
      %v1101 = vpack.c.b16 %v1069, %v1067
      %v1102 = vpack.c.b16 %v1070, %v1068
      %v1103 = vpack.c.b16 %v1073, %v1071
      %v1104 = vpack.c.b16 %v1074, %v1072
      %1135 = vrot.lane.b32.xlu0 %v909, 96
      %v1136 = vpop.permute.xlu0 %1135
      %1137 = vrot.lane.b32.xlu0 %v910, 96
      %v1138 = vpop.permute.xlu0 %1137
      %1139 = vrot.lane.b32.xlu0 %v911, 96
      %v1140 = vpop.permute.xlu0 %1139
      %1141 = vrot.lane.b32.xlu0 %v912, 96
      %v1142 = vpop.permute.xlu0 %1141
      %1143 = vrot.lane.b32.xlu0 %v913, 96
      %v1144 = vpop.permute.xlu0 %1143
      %1145 = vrot.lane.b32.xlu0 %v914, 96
      %v1146 = vpop.permute.xlu0 %1145
      %1147 = vrot.lane.b32.xlu0 %v915, 96
      %v1148 = vpop.permute.xlu0 %1147
      %1149 = vrot.lane.b32.xlu0 %v916, 96
      %v1150 = vpop.permute.xlu0 %1149
      %1151 = vrot.lane.b32.xlu0 %v917, 96
      %v1152 = vpop.permute.xlu0 %1151
      %1153 = vrot.lane.b32.xlu0 %v918, 96
      %v1154 = vpop.permute.xlu0 %1153
      %1155 = vrot.lane.b32.xlu0 %v919, 96
      %v1156 = vpop.permute.xlu0 %1155
      %1157 = vrot.lane.b32.xlu0 %v920, 96
      %v1158 = vpop.permute.xlu0 %1157
      %1159 = vrot.lane.b32.xlu0 %v921, 96
      %v1160 = vpop.permute.xlu0 %1159
      %1161 = vrot.lane.b32.xlu0 %v922, 96
      %v1162 = vpop.permute.xlu0 %1161
      %1163 = vrot.lane.b32.xlu0 %v923, 96
      %v1164 = vpop.permute.xlu0 %1163
      %vm1180 = vcmask 916480
      %v1182 = vsel %vm1180, %v1076, 0
      %v1185 = vsel %vm1180, %v1078, 0
      %v1188 = vsel %vm1180, %v1080, 0
      %v1191 = vsel %vm1180, %v1082, 0
      %v1194 = vsel %vm1180, %v1084, 0
      %v1197 = vsel %vm1180, %v1086, 0
      %v1200 = vsel %vm1180, %v1088, 0
      %v1203 = vsel %vm1180, %v1090, 0
      %v1206 = vsel %vm1180, %v1092, 0
      %v1209 = vsel %vm1180, %v1094, 0
      %v1212 = vsel %vm1180, %v1096, 0
      %v1215 = vsel %vm1180, %v1098, 0
      %v1218 = vsel %vm1180, %v1100, 0
      %v1221 = vsel %vm1180, %v1102, 0
      %v1224 = vsel %vm1180, %v1104, 0
      %1226 = vmatprep.subr.bf16.mxu0 0
      %1227 = vmatpush1.bf16.msra.mxu0 %v1136
      %1228 = vmatprep.subr.bf16.mxu0 0
      %1229 = vmatpush1.bf16.msra.mxu0 %v1138
      %1230 = vmatprep.subr.bf16.mxu0 0
      %1231 = vmatpush1.bf16.msra.mxu0 %v1140
      %1232 = vmatprep.subr.bf16.mxu0 0
      %1233 = vmatpush1.bf16.msra.mxu0 %v1142
      %1234 = vmatprep.subr.bf16.mxu0 0
      %1235 = vmatpush1.bf16.msra.mxu0 %v1144
      %1236 = vmatprep.subr.bf16.mxu0 0
      %1237 = vmatpush1.bf16.msra.mxu0 %v1146
      %1238 = vmatprep.subr.bf16.mxu0 0
      %1239 = vmatpush1.bf16.msra.mxu0 %v1148
      %1240 = vmatprep.subr.bf16.mxu0 0
      %1241 = vmatpush1.bf16.msra.mxu0 %v1150
      %1242 = vmatprep.subr.bf16.mxu0 0
      %1243 = vmatpush1.bf16.msra.mxu0 %v1152
      %1244 = vmatprep.subr.bf16.mxu0 0
      %1245 = vmatpush1.bf16.msra.mxu0 %v1154
      %1246 = vmatprep.subr.bf16.mxu0 0
      %1247 = vmatpush1.bf16.msra.mxu0 %v1156
      %1248 = vmatprep.subr.bf16.mxu0 0
      %1249 = vmatpush1.bf16.msra.mxu0 %v1158
      %1250 = vmatprep.subr.bf16.mxu0 0
      %1251 = vmatpush1.bf16.msra.mxu0 %v1160
      %1252 = vmatprep.subr.bf16.mxu0 0
      %1253 = vmatpush1.bf16.msra.mxu0 %v1162
      %1254 = vmatprep.subr.bf16.mxu0 0
      %1255 = vmatpush1.bf16.msra.mxu0 %v1164
      %1256 = vmatprep.subr.bf16.mxu0 0
      %1257 = vmatpush1.bf16.msra.mxu0 0
      %1258 = vmatprep.mubr.bf16.mxu0 %v1182
      %1259 = vmatmul.mubr.bf16.gmra.mrb[0].mxu0 %v1075
      %v1260 = vpop.f32.mrb[0].mxu0
      %v1261 = vadd.f32 0.0, %v1260
      %v1262 = vpop.f32.mrb[0].mxu0
      %v1263 = vpop.f32.mrb[0].mxu0
      %v1264 = vadd.f32 0.0, %v1263
      %v1265 = vpop.f32.mrb[0].mxu0
      %1266 = vmatprep.mubr.bf16.mxu0 %v1185
      %1267 = vmatmul.mubr.bf16.gmra.mrb[0].mxu0 %v1077
      %v1268 = vpop.f32.mrb[0].mxu0
      %v1269 = vadd.f32 0.0, %v1268
      %v1270 = vpop.f32.mrb[0].mxu0
      %v1271 = vpop.f32.mrb[0].mxu0
      %v1272 = vadd.f32 0.0, %v1271
      %v1273 = vpop.f32.mrb[0].mxu0
      %1274 = vmatprep.mubr.bf16.mxu0 %v1188
      %1275 = vmatmul.mubr.bf16.gmra.mrb[0].mxu0 %v1079
      %v1276 = vpop.f32.mrb[0].mxu0
      %v1277 = vadd.f32 0.0, %v1276
      %v1278 = vpop.f32.mrb[0].mxu0
      %v1279 = vpop.f32.mrb[0].mxu0
      %v1280 = vadd.f32 0.0, %v1279
      %v1281 = vpop.f32.mrb[0].mxu0
      %1282 = vmatprep.mubr.bf16.mxu0 %v1191
      %1283 = vmatmul.mubr.bf16.gmra.mrb[0].mxu0 %v1081
      %v1284 = vpop.f32.mrb[0].mxu0
      %v1285 = vadd.f32 0.0, %v1284
      %v1286 = vpop.f32.mrb[0].mxu0
      %v1287 = vpop.f32.mrb[0].mxu0
      %v1288 = vadd.f32 0.0, %v1287
      %v1289 = vpop.f32.mrb[0].mxu0
      %1290 = vmatprep.mubr.bf16.mxu0 %v1194
      %1291 = vmatmul.mubr.bf16.gmra.mrb[0].mxu0 %v1083
      %v1292 = vpop.f32.mrb[0].mxu0
      %v1293 = vadd.f32 0.0, %v1292
      %v1294 = vpop.f32.mrb[0].mxu0
      %v1295 = vpop.f32.mrb[0].mxu0
      %v1296 = vadd.f32 0.0, %v1295
      %v1297 = vpop.f32.mrb[0].mxu0
      %1298 = vmatprep.mubr.bf16.mxu0 %v1197
      %1299 = vmatmul.mubr.bf16.gmra.mrb[0].mxu0 %v1085
      %v1300 = vpop.f32.mrb[0].mxu0
      %v1301 = vadd.f32 0.0, %v1300
      %v1302 = vpop.f32.mrb[0].mxu0
      %v1303 = vpop.f32.mrb[0].mxu0
      %v1304 = vadd.f32 0.0, %v1303
      %v1305 = vpop.f32.mrb[0].mxu0
      %1306 = vmatprep.mubr.bf16.mxu0 %v1200
      %1307 = vmatmul.mubr.bf16.gmra.mrb[0].mxu0 %v1087
      %v1308 = vpop.f32.mrb[0].mxu0
      %v1309 = vadd.f32 0.0, %v1308
      %v1310 = vpop.f32.mrb[0].mxu0
      %v1311 = vpop.f32.mrb[0].mxu0
      %v1312 = vadd.f32 0.0, %v1311
      %v1313 = vpop.f32.mrb[0].mxu0
      %1314 = vmatprep.mubr.bf16.mxu0 %v1203
      %1315 = vmatmul.mubr.bf16.gmra.mrb[0].mxu0 %v1089
      %v1316 = vpop.f32.mrb[0].mxu0
      %v1317 = vadd.f32 0.0, %v1316
      %v1318 = vpop.f32.mrb[0].mxu0
      %v1319 = vpop.f32.mrb[0].mxu0
      %v1320 = vadd.f32 0.0, %v1319
      %v1321 = vpop.f32.mrb[0].mxu0
      %1322 = vmatprep.mubr.bf16.mxu0 %v1206
      %1323 = vmatmul.mubr.bf16.gmra.mrb[0].mxu0 %v1091
      %v1324 = vpop.f32.mrb[0].mxu0
      %v1325 = vadd.f32 0.0, %v1324
      %v1326 = vpop.f32.mrb[0].mxu0
      %v1327 = vpop.f32.mrb[0].mxu0
      %v1328 = vadd.f32 0.0, %v1327
      %v1329 = vpop.f32.mrb[0].mxu0
      %1330 = vmatprep.mubr.bf16.mxu0 %v1209
      %1331 = vmatmul.mubr.bf16.gmra.mrb[0].mxu0 %v1093
      %v1332 = vpop.f32.mrb[0].mxu0
      %v1333 = vadd.f32 0.0, %v1332
      %v1334 = vpop.f32.mrb[0].mxu0
      %v1335 = vpop.f32.mrb[0].mxu0
      %v1336 = vadd.f32 0.0, %v1335
      %v1337 = vpop.f32.mrb[0].mxu0
      %1338 = vmatprep.mubr.bf16.mxu0 %v1212
      %1339 = vmatmul.mubr.bf16.gmra.mrb[0].mxu0 %v1095
      %v1340 = vpop.f32.mrb[0].mxu0
      %v1341 = vadd.f32 0.0, %v1340
      %v1342 = vpop.f32.mrb[0].mxu0
      %v1343 = vpop.f32.mrb[0].mxu0
      %v1344 = vadd.f32 0.0, %v1343
      %v1345 = vpop.f32.mrb[0].mxu0
      %1346 = vmatprep.mubr.bf16.mxu0 %v1215
      %1347 = vmatmul.mubr.bf16.gmra.mrb[0].mxu0 %v1097
      %v1348 = vpop.f32.mrb[0].mxu0
      %v1349 = vadd.f32 0.0, %v1348
      %v1350 = vpop.f32.mrb[0].mxu0
      %v1351 = vpop.f32.mrb[0].mxu0
      %v1352 = vadd.f32 0.0, %v1351
      %v1353 = vpop.f32.mrb[0].mxu0
      %1354 = vmatprep.mubr.bf16.mxu0 %v1218
      %1355 = vmatmul.mubr.bf16.gmra.mrb[0].mxu0 %v1099
      %v1356 = vpop.f32.mrb[0].mxu0
      %v1357 = vadd.f32 0.0, %v1356
      %v1358 = vpop.f32.mrb[0].mxu0
      %v1359 = vpop.f32.mrb[0].mxu0
      %v1360 = vadd.f32 0.0, %v1359
      %v1361 = vpop.f32.mrb[0].mxu0
      %1362 = vmatprep.mubr.bf16.mxu0 %v1221
      %1363 = vmatmul.mubr.bf16.gmra.mrb[0].mxu0 %v1101
      %v1364 = vpop.f32.mrb[0].mxu0
      %v1365 = vadd.f32 0.0, %v1364
      %v1366 = vpop.f32.mrb[0].mxu0
      %v1367 = vpop.f32.mrb[0].mxu0
      %v1368 = vadd.f32 0.0, %v1367
      %v1369 = vpop.f32.mrb[0].mxu0
      %1370 = vmatprep.mubr.bf16.mxu0 %v1224
      %1371 = vmatmul.mubr.bf16.gmra.mrb[0].mxu0 %v1103
      %v1372 = vpop.f32.mrb[0].mxu0
      %v1373 = vadd.f32 0.0, %v1372
      %v1374 = vpop.f32.mrb[0].mxu0
      %v1375 = vpop.f32.mrb[0].mxu0
      %v1376 = vadd.f32 0.0, %v1375
      %v1377 = vpop.f32.mrb[0].mxu0
      %1378 = vdwg.mxu0
      %v1409 = vunpack.c.l.b16 %v924
      %v1410 = vunpack.c.h.b16 %v924
      %v1411 = vunpack.c.l.b16 %v925
      %v1412 = vunpack.c.h.b16 %v925
      %v1413 = vunpack.c.l.b16 %v926
      %v1414 = vunpack.c.h.b16 %v926
      %v1415 = vunpack.c.l.b16 %v927
      %v1416 = vunpack.c.h.b16 %v927
      %v1417 = vunpack.c.l.b16 %v928
      %v1418 = vunpack.c.h.b16 %v928
      %v1419 = vunpack.c.l.b16 %v929
      %v1420 = vunpack.c.h.b16 %v929
      %v1421 = vunpack.c.l.b16 %v930
      %v1422 = vunpack.c.h.b16 %v930
      %v1423 = vunpack.c.l.b16 %v931
      %v1424 = vunpack.c.h.b16 %v931
      %v1425 = vunpack.c.l.b16 %v932
      %v1426 = vunpack.c.h.b16 %v932
      %v1427 = vunpack.c.l.b16 %v933
      %v1428 = vunpack.c.h.b16 %v933
      %v1429 = vunpack.c.l.b16 %v934
      %v1430 = vunpack.c.h.b16 %v934
      %v1431 = vunpack.c.l.b16 %v935
      %v1432 = vunpack.c.h.b16 %v935
      %v1433 = vunpack.c.l.b16 %v936
      %v1434 = vunpack.c.h.b16 %v936
      %v1435 = vunpack.c.l.b16 %v937
      %v1436 = vunpack.c.h.b16 %v937
      %v1437 = vunpack.c.l.b16 %v938
      %v1438 = vunpack.c.h.b16 %v938
      %v1439 = vunpack.c.l.b16 %v939
      %v1440 = vunpack.c.h.b16 %v939
      %v1441 = vunpack.c.l.b16 %v940
      %v1442 = vunpack.c.h.b16 %v940
      %v1443 = vunpack.c.l.b16 %v941
      %v1444 = vunpack.c.h.b16 %v941
      %v1445 = vunpack.c.l.b16 %v942
      %v1446 = vunpack.c.h.b16 %v942
      %v1447 = vunpack.c.l.b16 %v943
      %v1448 = vunpack.c.h.b16 %v943
      %v1449 = vunpack.c.l.b16 %v944
      %v1450 = vunpack.c.h.b16 %v944
      %v1451 = vunpack.c.l.b16 %v945
      %v1452 = vunpack.c.h.b16 %v945
      %v1453 = vunpack.c.l.b16 %v946
      %v1454 = vunpack.c.h.b16 %v946
      %v1455 = vunpack.c.l.b16 %v947
      %v1456 = vunpack.c.h.b16 %v947
      %v1457 = vunpack.c.l.b16 %v948
      %v1458 = vunpack.c.h.b16 %v948
      %v1459 = vunpack.c.l.b16 %v949
      %v1460 = vunpack.c.h.b16 %v949
      %v1461 = vunpack.c.l.b16 %v950
      %v1462 = vunpack.c.h.b16 %v950
      %v1463 = vunpack.c.l.b16 %v951
      %v1464 = vunpack.c.h.b16 %v951
      %v1465 = vunpack.c.l.b16 %v952
      %v1466 = vunpack.c.h.b16 %v952
      %v1467 = vunpack.c.l.b16 %v953
      %v1468 = vunpack.c.h.b16 %v953
      %v1469 = vpack.c.b16 %v1411, %v1409
      %v1470 = vpack.c.b16 %v1412, %v1410
      %v1471 = vpack.c.b16 %v1415, %v1413
      %v1472 = vpack.c.b16 %v1416, %v1414
      %v1473 = vpack.c.b16 %v1419, %v1417
      %v1474 = vpack.c.b16 %v1420, %v1418
      %v1475 = vpack.c.b16 %v1423, %v1421
      %v1476 = vpack.c.b16 %v1424, %v1422
      %v1477 = vpack.c.b16 %v1427, %v1425
      %v1478 = vpack.c.b16 %v1428, %v1426
      %v1479 = vpack.c.b16 %v1431, %v1429
      %v1480 = vpack.c.b16 %v1432, %v1430
      %v1481 = vpack.c.b16 %v1435, %v1433
      %v1482 = vpack.c.b16 %v1436, %v1434
      %v1483 = vpack.c.b16 %v1439, %v1437
      %v1484 = vpack.c.b16 %v1440, %v1438
      %v1485 = vpack.c.b16 %v1443, %v1441
      %v1486 = vpack.c.b16 %v1444, %v1442
      %v1487 = vpack.c.b16 %v1447, %v1445
      %v1488 = vpack.c.b16 %v1448, %v1446
      %v1489 = vpack.c.b16 %v1451, %v1449
      %v1490 = vpack.c.b16 %v1452, %v1450
      %v1491 = vpack.c.b16 %v1455, %v1453
      %v1492 = vpack.c.b16 %v1456, %v1454
      %v1493 = vpack.c.b16 %v1459, %v1457
      %v1494 = vpack.c.b16 %v1460, %v1458
      %v1495 = vpack.c.b16 %v1463, %v1461
      %v1496 = vpack.c.b16 %v1464, %v1462
      %v1497 = vpack.c.b16 %v1467, %v1465
      %v1498 = vpack.c.b16 %v1468, %v1466
      %v1515 = vsel %vm1180, %v1470, 0
      %v1518 = vsel %vm1180, %v1472, 0
      %v1521 = vsel %vm1180, %v1474, 0
      %v1524 = vsel %vm1180, %v1476, 0
      %v1527 = vsel %vm1180, %v1478, 0
      %v1530 = vsel %vm1180, %v1480, 0
      %v1533 = vsel %vm1180, %v1482, 0
      %v1536 = vsel %vm1180, %v1484, 0
      %v1539 = vsel %vm1180, %v1486, 0
      %v1542 = vsel %vm1180, %v1488, 0
      %v1545 = vsel %vm1180, %v1490, 0
      %v1548 = vsel %vm1180, %v1492, 0
      %v1551 = vsel %vm1180, %v1494, 0
      %v1554 = vsel %vm1180, %v1496, 0
      %v1557 = vsel %vm1180, %v1498, 0
      %1559 = vmatprep.subr.bf16.mxu0 0
      %1560 = vmatpush1.bf16.msra.mxu0 %v909
      %1561 = vmatprep.subr.bf16.mxu0 0
      %1562 = vmatpush1.bf16.msra.mxu0 %v910
      %1563 = vmatprep.subr.bf16.mxu0 0
      %1564 = vmatpush1.bf16.msra.mxu0 %v911
      %1565 = vmatprep.subr.bf16.mxu0 0
      %1566 = vmatpush1.bf16.msra.mxu0 %v912
      %1567 = vmatprep.subr.bf16.mxu0 0
      %1568 = vmatpush1.bf16.msra.mxu0 %v913
      %1569 = vmatprep.subr.bf16.mxu0 0
      %1570 = vmatpush1.bf16.msra.mxu0 %v914
      %1571 = vmatprep.subr.bf16.mxu0 0
      %1572 = vmatpush1.bf16.msra.mxu0 %v915
      %1573 = vmatprep.subr.bf16.mxu0 0
      %1574 = vmatpush1.bf16.msra.mxu0 %v916
      %1575 = vmatprep.subr.bf16.mxu0 0
      %1576 = vmatpush1.bf16.msra.mxu0 %v917
      %1577 = vmatprep.subr.bf16.mxu0 0
      %1578 = vmatpush1.bf16.msra.mxu0 %v918
      %1579 = vmatprep.subr.bf16.mxu0 0
      %1580 = vmatpush1.bf16.msra.mxu0 %v919
      %1581 = vmatprep.subr.bf16.mxu0 0
      %1582 = vmatpush1.bf16.msra.mxu0 %v920
      %1583 = vmatprep.subr.bf16.mxu0 0
      %1584 = vmatpush1.bf16.msra.mxu0 %v921
      %1585 = vmatprep.subr.bf16.mxu0 0
      %1586 = vmatpush1.bf16.msra.mxu0 %v922
      %1587 = vmatprep.subr.bf16.mxu0 0
      %1588 = vmatpush1.bf16.msra.mxu0 %v923
      %1589 = vmatprep.subr.bf16.mxu0 0
      %1590 = vmatpush1.bf16.msra.mxu0 0
      %1591 = vmatprep.mubr.bf16.mxu0 %v1515
      %1592 = vmatmul.mubr.bf16.gmra.mrb[0].mxu0 %v1469
      %v1593 = vpop.f32.mrb[0].mxu0
      %v1594 = vadd.f32 %v1261, %v1593
      %v1595 = vpop.f32.mrb[0].mxu0
      %v1596 = vpop.f32.mrb[0].mxu0
      %v1597 = vadd.f32 %v1264, %v1596
      %v1598 = vpop.f32.mrb[0].mxu0
      %1599 = vmatprep.mubr.bf16.mxu0 %v1518
      %1600 = vmatmul.mubr.bf16.gmra.mrb[0].mxu0 %v1471
      %v1601 = vpop.f32.mrb[0].mxu0
      %v1602 = vadd.f32 %v1269, %v1601
      %v1603 = vpop.f32.mrb[0].mxu0
      %v1604 = vpop.f32.mrb[0].mxu0
      %v1605 = vadd.f32 %v1272, %v1604
      %v1606 = vpop.f32.mrb[0].mxu0
      %1607 = vmatprep.mubr.bf16.mxu0 %v1521
      %1608 = vmatmul.mubr.bf16.gmra.mrb[0].mxu0 %v1473
      %v1609 = vpop.f32.mrb[0].mxu0
      %v1610 = vadd.f32 %v1277, %v1609
      %v1611 = vpop.f32.mrb[0].mxu0
      %v1612 = vpop.f32.mrb[0].mxu0
      %v1613 = vadd.f32 %v1280, %v1612
      %v1614 = vpop.f32.mrb[0].mxu0
      %1615 = vmatprep.mubr.bf16.mxu0 %v1524
      %1616 = vmatmul.mubr.bf16.gmra.mrb[0].mxu0 %v1475
      %v1617 = vpop.f32.mrb[0].mxu0
      %v1618 = vadd.f32 %v1285, %v1617
      %v1619 = vpop.f32.mrb[0].mxu0
      %v1620 = vpop.f32.mrb[0].mxu0
      %v1621 = vadd.f32 %v1288, %v1620
      %v1622 = vpop.f32.mrb[0].mxu0
      %1623 = vmatprep.mubr.bf16.mxu0 %v1527
      %1624 = vmatmul.mubr.bf16.gmra.mrb[0].mxu0 %v1477
      %v1625 = vpop.f32.mrb[0].mxu0
      %v1626 = vadd.f32 %v1293, %v1625
      %v1627 = vpop.f32.mrb[0].mxu0
      %v1628 = vpop.f32.mrb[0].mxu0
      %v1629 = vadd.f32 %v1296, %v1628
      %v1630 = vpop.f32.mrb[0].mxu0
      %1631 = vmatprep.mubr.bf16.mxu0 %v1530
      %1632 = vmatmul.mubr.bf16.gmra.mrb[0].mxu0 %v1479
      %v1633 = vpop.f32.mrb[0].mxu0
      %v1634 = vadd.f32 %v1301, %v1633
      %v1635 = vpop.f32.mrb[0].mxu0
      %v1636 = vpop.f32.mrb[0].mxu0
      %v1637 = vadd.f32 %v1304, %v1636
      %v1638 = vpop.f32.mrb[0].mxu0
      %1639 = vmatprep.mubr.bf16.mxu0 %v1533
      %1640 = vmatmul.mubr.bf16.gmra.mrb[0].mxu0 %v1481
      %v1641 = vpop.f32.mrb[0].mxu0
      %v1642 = vadd.f32 %v1309, %v1641
      %v1643 = vpop.f32.mrb[0].mxu0
      %v1644 = vpop.f32.mrb[0].mxu0
      %v1645 = vadd.f32 %v1312, %v1644
      %v1646 = vpop.f32.mrb[0].mxu0
      %1647 = vmatprep.mubr.bf16.mxu0 %v1536
      %1648 = vmatmul.mubr.bf16.gmra.mrb[0].mxu0 %v1483
      %v1649 = vpop.f32.mrb[0].mxu0
      %v1650 = vadd.f32 %v1317, %v1649
      %v1651 = vpop.f32.mrb[0].mxu0
      %v1652 = vpop.f32.mrb[0].mxu0
      %v1653 = vadd.f32 %v1320, %v1652
      %v1654 = vpop.f32.mrb[0].mxu0
      %1655 = vmatprep.mubr.bf16.mxu0 %v1539
      %1656 = vmatmul.mubr.bf16.gmra.mrb[0].mxu0 %v1485
      %v1657 = vpop.f32.mrb[0].mxu0
      %v1658 = vadd.f32 %v1325, %v1657
      %v1659 = vpop.f32.mrb[0].mxu0
      %v1660 = vpop.f32.mrb[0].mxu0
      %v1661 = vadd.f32 %v1328, %v1660
      %v1662 = vpop.f32.mrb[0].mxu0
      %1663 = vmatprep.mubr.bf16.mxu0 %v1542
      %1664 = vmatmul.mubr.bf16.gmra.mrb[0].mxu0 %v1487
      %v1665 = vpop.f32.mrb[0].mxu0
      %v1666 = vadd.f32 %v1333, %v1665
      %v1667 = vpop.f32.mrb[0].mxu0
      %v1668 = vpop.f32.mrb[0].mxu0
      %v1669 = vadd.f32 %v1336, %v1668
      %v1670 = vpop.f32.mrb[0].mxu0
      %1671 = vmatprep.mubr.bf16.mxu0 %v1545
      %1672 = vmatmul.mubr.bf16.gmra.mrb[0].mxu0 %v1489
      %v1673 = vpop.f32.mrb[0].mxu0
      %v1674 = vadd.f32 %v1341, %v1673
      %v1675 = vpop.f32.mrb[0].mxu0
      %v1676 = vpop.f32.mrb[0].mxu0
      %v1677 = vadd.f32 %v1344, %v1676
      %v1678 = vpop.f32.mrb[0].mxu0
      %1679 = vmatprep.mubr.bf16.mxu0 %v1548
      %1680 = vmatmul.mubr.bf16.gmra.mrb[0].mxu0 %v1491
      %v1681 = vpop.f32.mrb[0].mxu0
      %v1682 = vadd.f32 %v1349, %v1681
      %v1683 = vpop.f32.mrb[0].mxu0
      %v1684 = vpop.f32.mrb[0].mxu0
      %v1685 = vadd.f32 %v1352, %v1684
      %v1686 = vpop.f32.mrb[0].mxu0
      %1687 = vmatprep.mubr.bf16.mxu0 %v1551
      %1688 = vmatmul.mubr.bf16.gmra.mrb[0].mxu0 %v1493
      %v1689 = vpop.f32.mrb[0].mxu0
      %v1690 = vadd.f32 %v1357, %v1689
      %v1691 = vpop.f32.mrb[0].mxu0
      %v1692 = vpop.f32.mrb[0].mxu0
      %v1693 = vadd.f32 %v1360, %v1692
      %v1694 = vpop.f32.mrb[0].mxu0
      %1695 = vmatprep.mubr.bf16.mxu0 %v1554
      %1696 = vmatmul.mubr.bf16.gmra.mrb[0].mxu0 %v1495
      %v1697 = vpop.f32.mrb[0].mxu0
      %v1698 = vadd.f32 %v1365, %v1697
      %v1699 = vpop.f32.mrb[0].mxu0
      %v1700 = vpop.f32.mrb[0].mxu0
      %v1701 = vadd.f32 %v1368, %v1700
      %v1702 = vpop.f32.mrb[0].mxu0
      %1703 = vmatprep.mubr.bf16.mxu0 %v1557
      %1704 = vmatmul.mubr.bf16.gmra.mrb[0].mxu0 %v1497
      %v1705 = vpop.f32.mrb[0].mxu0
      %v1706 = vadd.f32 %v1373, %v1705
      %v1707 = vpop.f32.mrb[0].mxu0
      %v1708 = vpop.f32.mrb[0].mxu0
      %v1709 = vadd.f32 %v1376, %v1708
      %v1710 = vpop.f32.mrb[0].mxu0
      %1711 = vdwg.mxu0
      %s1712 = scalar_lea.vmem %s571, 480
      %v1713 = vld [vmem:[%s1712] sm:$0xff]
      %v1714 = vld [vmem:[%s1712 + $0x8] sm:$0xff]
      %v1715 = vld [vmem:[%s1712 + $0x10] sm:$0xff]
      %v1716 = vld [vmem:[%s1712 + $0x18] sm:$0xff]
      %v1717 = vld [vmem:[%s1712 + $0x20] sm:$0xff]
      %v1718 = vld [vmem:[%s1712 + $0x28] sm:$0xff]
      %v1719 = vld [vmem:[%s1712 + $0x30] sm:$0xff]
      %v1720 = vld [vmem:[%s1712 + $0x38] sm:$0xff]
      %v1721 = vld [vmem:[%s1712 + $0x40] sm:$0xff]
      %v1722 = vld [vmem:[%s1712 + $0x48] sm:$0xff]
      %v1723 = vld [vmem:[%s1712 + $0x50] sm:$0xff]
      %v1724 = vld [vmem:[%s1712 + $0x58] sm:$0xff]
      %v1725 = vld [vmem:[%s1712 + $0x60] sm:$0xff]
      %v1726 = vld [vmem:[%s1712 + $0x68] sm:$0xff]
      %v1727 = vld [vmem:[%s1712 + $0x70] sm:$0xff]
      %v1728 = vld [vmem:[%s1712 + $0x78] sm:$0xff]
      %v1729 = vld [vmem:[%s1712 + $0x80] sm:$0xff]
      %v1730 = vld [vmem:[%s1712 + $0x88] sm:$0xff]
      %v1731 = vld [vmem:[%s1712 + $0x90] sm:$0xff]
      %v1732 = vld [vmem:[%s1712 + $0x98] sm:$0xff]
      %v1733 = vld [vmem:[%s1712 + $0xa0] sm:$0xff]
      %v1734 = vld [vmem:[%s1712 + $0xa8] sm:$0xff]
      %v1735 = vld [vmem:[%s1712 + $0xb0] sm:$0xff]
      %v1736 = vld [vmem:[%s1712 + $0xb8] sm:$0xff]
      %v1737 = vld [vmem:[%s1712 + $0xc0] sm:$0xff]
      %v1738 = vld [vmem:[%s1712 + $0xc8] sm:$0xff]
      %v1739 = vld [vmem:[%s1712 + $0xd0] sm:$0xff]
      %v1740 = vld [vmem:[%s1712 + $0xd8] sm:$0xff]
      %v1741 = vld [vmem:[%s1712 + $0xe0] sm:$0xff]
      %v1742 = vld [vmem:[%s1712 + $0xe8] sm:$0xff]
      %v1773 = vunpack.c.l.b16 %v1713
      %v1774 = vunpack.c.h.b16 %v1713
      %v1775 = vunpack.c.l.b16 %v1714
      %v1776 = vunpack.c.h.b16 %v1714
      %v1777 = vunpack.c.l.b16 %v1715
      %v1778 = vunpack.c.h.b16 %v1715
      %v1779 = vunpack.c.l.b16 %v1716
      %v1780 = vunpack.c.h.b16 %v1716
      %v1781 = vunpack.c.l.b16 %v1717
      %v1782 = vunpack.c.h.b16 %v1717
      %v1783 = vunpack.c.l.b16 %v1718
      %v1784 = vunpack.c.h.b16 %v1718
      %v1785 = vunpack.c.l.b16 %v1719
      %v1786 = vunpack.c.h.b16 %v1719
      %v1787 = vunpack.c.l.b16 %v1720
      %v1788 = vunpack.c.h.b16 %v1720
      %v1789 = vunpack.c.l.b16 %v1721
      %v1790 = vunpack.c.h.b16 %v1721
      %v1791 = vunpack.c.l.b16 %v1722
      %v1792 = vunpack.c.h.b16 %v1722
      %v1793 = vunpack.c.l.b16 %v1723
      %v1794 = vunpack.c.h.b16 %v1723
      %v1795 = vunpack.c.l.b16 %v1724
      %v1796 = vunpack.c.h.b16 %v1724
      %v1797 = vunpack.c.l.b16 %v1725
      %v1798 = vunpack.c.h.b16 %v1725
      %v1799 = vunpack.c.l.b16 %v1726
      %v1800 = vunpack.c.h.b16 %v1726
      %v1801 = vunpack.c.l.b16 %v1727
      %v1802 = vunpack.c.h.b16 %v1727
      %v1803 = vunpack.c.l.b16 %v1728
      %v1804 = vunpack.c.h.b16 %v1728
      %v1805 = vunpack.c.l.b16 %v1729
      %v1806 = vunpack.c.h.b16 %v1729
      %v1807 = vunpack.c.l.b16 %v1730
      %v1808 = vunpack.c.h.b16 %v1730
      %v1809 = vunpack.c.l.b16 %v1731
      %v1810 = vunpack.c.h.b16 %v1731
      %v1811 = vunpack.c.l.b16 %v1732
      %v1812 = vunpack.c.h.b16 %v1732
      %v1813 = vunpack.c.l.b16 %v1733
      %v1814 = vunpack.c.h.b16 %v1733
      %v1815 = vunpack.c.l.b16 %v1734
      %v1816 = vunpack.c.h.b16 %v1734
      %v1817 = vunpack.c.l.b16 %v1735
      %v1818 = vunpack.c.h.b16 %v1735
      %v1819 = vunpack.c.l.b16 %v1736
      %v1820 = vunpack.c.h.b16 %v1736
      %v1821 = vunpack.c.l.b16 %v1737
      %v1822 = vunpack.c.h.b16 %v1737
      %v1823 = vunpack.c.l.b16 %v1738
      %v1824 = vunpack.c.h.b16 %v1738
      %v1825 = vunpack.c.l.b16 %v1739
      %v1826 = vunpack.c.h.b16 %v1739
      %v1827 = vunpack.c.l.b16 %v1740
      %v1828 = vunpack.c.h.b16 %v1740
      %v1829 = vunpack.c.l.b16 %v1741
      %v1830 = vunpack.c.h.b16 %v1741
      %v1831 = vunpack.c.l.b16 %v1742
      %v1832 = vunpack.c.h.b16 %v1742
      %v1833 = vpack.c.b16 %v1775, %v1773
      %v1834 = vpack.c.b16 %v1776, %v1774
      %v1835 = vpack.c.b16 %v1779, %v1777
      %v1836 = vpack.c.b16 %v1780, %v1778
      %v1837 = vpack.c.b16 %v1783, %v1781
      %v1838 = vpack.c.b16 %v1784, %v1782
      %v1839 = vpack.c.b16 %v1787, %v1785
      %v1840 = vpack.c.b16 %v1788, %v1786
      %v1841 = vpack.c.b16 %v1791, %v1789
      %v1842 = vpack.c.b16 %v1792, %v1790
      %v1843 = vpack.c.b16 %v1795, %v1793
      %v1844 = vpack.c.b16 %v1796, %v1794
      %v1845 = vpack.c.b16 %v1799, %v1797
      %v1846 = vpack.c.b16 %v1800, %v1798
      %v1847 = vpack.c.b16 %v1803, %v1801
      %v1848 = vpack.c.b16 %v1804, %v1802
      %v1849 = vpack.c.b16 %v1807, %v1805
      %v1850 = vpack.c.b16 %v1808, %v1806
      %v1851 = vpack.c.b16 %v1811, %v1809
      %v1852 = vpack.c.b16 %v1812, %v1810
      %v1853 = vpack.c.b16 %v1815, %v1813
      %v1854 = vpack.c.b16 %v1816, %v1814
      %v1855 = vpack.c.b16 %v1819, %v1817
      %v1856 = vpack.c.b16 %v1820, %v1818
      %v1857 = vpack.c.b16 %v1823, %v1821
      %v1858 = vpack.c.b16 %v1824, %v1822
      %v1859 = vpack.c.b16 %v1827, %v1825
      %v1860 = vpack.c.b16 %v1828, %v1826
      %v1861 = vpack.c.b16 %v1831, %v1829
      %v1862 = vpack.c.b16 %v1832, %v1830
      %1878 = vrot.lane.b32.xlu0 %v909, 64
      %v1879 = vpop.permute.xlu0 %1878
      %1880 = vrot.lane.b32.xlu0 %v910, 64
      %v1881 = vpop.permute.xlu0 %1880
      %1882 = vrot.lane.b32.xlu0 %v911, 64
      %v1883 = vpop.permute.xlu0 %1882
      %1884 = vrot.lane.b32.xlu0 %v912, 64
      %v1885 = vpop.permute.xlu0 %1884
      %1886 = vrot.lane.b32.xlu0 %v913, 64
      %v1887 = vpop.permute.xlu0 %1886
      %1888 = vrot.lane.b32.xlu0 %v914, 64
      %v1889 = vpop.permute.xlu0 %1888
      %1890 = vrot.lane.b32.xlu0 %v915, 64
      %v1891 = vpop.permute.xlu0 %1890
      %1892 = vrot.lane.b32.xlu0 %v916, 64
      %v1893 = vpop.permute.xlu0 %1892
      %1894 = vrot.lane.b32.xlu0 %v917, 64
      %v1895 = vpop.permute.xlu0 %1894
      %1896 = vrot.lane.b32.xlu0 %v918, 64
      %v1897 = vpop.permute.xlu0 %1896
      %1898 = vrot.lane.b32.xlu0 %v919, 64
      %v1899 = vpop.permute.xlu0 %1898
      %1900 = vrot.lane.b32.xlu0 %v920, 64
      %v1901 = vpop.permute.xlu0 %1900
      %1902 = vrot.lane.b32.xlu0 %v921, 64
      %v1903 = vpop.permute.xlu0 %1902
      %1904 = vrot.lane.b32.xlu0 %v922, 64
      %v1905 = vpop.permute.xlu0 %1904
      %1906 = vrot.lane.b32.xlu0 %v923, 64
      %v1907 = vpop.permute.xlu0 %1906
      %v1924 = vsel %vm1180, %v1834, 0
      %v1927 = vsel %vm1180, %v1836, 0
      %v1930 = vsel %vm1180, %v1838, 0
      %v1933 = vsel %vm1180, %v1840, 0
      %v1936 = vsel %vm1180, %v1842, 0
      %v1939 = vsel %vm1180, %v1844, 0
      %v1942 = vsel %vm1180, %v1846, 0
      %v1945 = vsel %vm1180, %v1848, 0
      %v1948 = vsel %vm1180, %v1850, 0
      %v1951 = vsel %vm1180, %v1852, 0
      %v1954 = vsel %vm1180, %v1854, 0
      %v1957 = vsel %vm1180, %v1856, 0
      %v1960 = vsel %vm1180, %v1858, 0
      %v1963 = vsel %vm1180, %v1860, 0
      %v1966 = vsel %vm1180, %v1862, 0
      %1968 = vmatprep.subr.bf16.mxu0 0
      %1969 = vmatpush1.bf16.msra.mxu0 %v1879
      %1970 = vmatprep.subr.bf16.mxu0 0
      %1971 = vmatpush1.bf16.msra.mxu0 %v1881
      %1972 = vmatprep.subr.bf16.mxu0 0
      %1973 = vmatpush1.bf16.msra.mxu0 %v1883
      %1974 = vmatprep.subr.bf16.mxu0 0
      %1975 = vmatpush1.bf16.msra.mxu0 %v1885
      %1976 = vmatprep.subr.bf16.mxu0 0
      %1977 = vmatpush1.bf16.msra.mxu0 %v1887
      %1978 = vmatprep.subr.bf16.mxu0 0
      %1979 = vmatpush1.bf16.msra.mxu0 %v1889
      %1980 = vmatprep.subr.bf16.mxu0 0
      %1981 = vmatpush1.bf16.msra.mxu0 %v1891
      %1982 = vmatprep.subr.bf16.mxu0 0
      %1983 = vmatpush1.bf16.msra.mxu0 %v1893
      %1984 = vmatprep.subr.bf16.mxu0 0
      %1985 = vmatpush1.bf16.msra.mxu0 %v1895
      %1986 = vmatprep.subr.bf16.mxu0 0
      %1987 = vmatpush1.bf16.msra.mxu0 %v1897
      %1988 = vmatprep.subr.bf16.mxu0 0
      %1989 = vmatpush1.bf16.msra.mxu0 %v1899
      %1990 = vmatprep.subr.bf16.mxu0 0
      %1991 = vmatpush1.bf16.msra.mxu0 %v1901
      %1992 = vmatprep.subr.bf16.mxu0 0
      %1993 = vmatpush1.bf16.msra.mxu0 %v1903
      %1994 = vmatprep.subr.bf16.mxu0 0
      %1995 = vmatpush1.bf16.msra.mxu0 %v1905
      %1996 = vmatprep.subr.bf16.mxu0 0
      %1997 = vmatpush1.bf16.msra.mxu0 %v1907
      %1998 = vmatprep.subr.bf16.mxu0 0
      %1999 = vmatpush1.bf16.msra.mxu0 0
      %2000 = vmatprep.mubr.bf16.mxu0 %v1924
      %2001 = vmatmul.mubr.bf16.gmra.mrb[0].mxu0 %v1833
      %v2002 = vpop.f32.mrb[0].mxu0
      %v2003 = vadd.f32 0.0, %v2002
      %v2004 = vpop.f32.mrb[0].mxu0
      %v2005 = vpop.f32.mrb[0].mxu0
      %v2006 = vadd.f32 0.0, %v2005
      %v2007 = vpop.f32.mrb[0].mxu0
      %2008 = vmatprep.mubr.bf16.mxu0 %v1927
      %2009 = vmatmul.mubr.bf16.gmra.mrb[0].mxu0 %v1835
      %v2010 = vpop.f32.mrb[0].mxu0
      %v2011 = vadd.f32 0.0, %v2010
      %v2012 = vpop.f32.mrb[0].mxu0
      %v2013 = vpop.f32.mrb[0].mxu0
      %v2014 = vadd.f32 0.0, %v2013
      %v2015 = vpop.f32.mrb[0].mxu0
      %2016 = vmatprep.mubr.bf16.mxu0 %v1930
      %2017 = vmatmul.mubr.bf16.gmra.mrb[0].mxu0 %v1837
      %v2018 = vpop.f32.mrb[0].mxu0
      %v2019 = vadd.f32 0.0, %v2018
      %v2020 = vpop.f32.mrb[0].mxu0
      %v2021 = vpop.f32.mrb[0].mxu0
      %v2022 = vadd.f32 0.0, %v2021
      %v2023 = vpop.f32.mrb[0].mxu0
      %2024 = vmatprep.mubr.bf16.mxu0 %v1933
      %2025 = vmatmul.mubr.bf16.gmra.mrb[0].mxu0 %v1839
      %v2026 = vpop.f32.mrb[0].mxu0
      %v2027 = vadd.f32 0.0, %v2026
      %v2028 = vpop.f32.mrb[0].mxu0
      %v2029 = vpop.f32.mrb[0].mxu0
      %v2030 = vadd.f32 0.0, %v2029
      %v2031 = vpop.f32.mrb[0].mxu0
      %2032 = vmatprep.mubr.bf16.mxu0 %v1936
      %2033 = vmatmul.mubr.bf16.gmra.mrb[0].mxu0 %v1841
      %v2034 = vpop.f32.mrb[0].mxu0
      %v2035 = vadd.f32 0.0, %v2034
      %v2036 = vpop.f32.mrb[0].mxu0
      %v2037 = vpop.f32.mrb[0].mxu0
      %v2038 = vadd.f32 0.0, %v2037
      %v2039 = vpop.f32.mrb[0].mxu0
      %2040 = vmatprep.mubr.bf16.mxu0 %v1939
      %2041 = vmatmul.mubr.bf16.gmra.mrb[0].mxu0 %v1843
      %v2042 = vpop.f32.mrb[0].mxu0
      %v2043 = vadd.f32 0.0, %v2042
      %v2044 = vpop.f32.mrb[0].mxu0
      %v2045 = vpop.f32.mrb[0].mxu0
      %v2046 = vadd.f32 0.0, %v2045
      %v2047 = vpop.f32.mrb[0].mxu0
      %2048 = vmatprep.mubr.bf16.mxu0 %v1942
      %2049 = vmatmul.mubr.bf16.gmra.mrb[0].mxu0 %v1845
      %v2050 = vpop.f32.mrb[0].mxu0
      %v2051 = vadd.f32 0.0, %v2050
      %v2052 = vpop.f32.mrb[0].mxu0
      %v2053 = vpop.f32.mrb[0].mxu0
      %v2054 = vadd.f32 0.0, %v2053
      %v2055 = vpop.f32.mrb[0].mxu0
      %2056 = vmatprep.mubr.bf16.mxu0 %v1945
      %2057 = vmatmul.mubr.bf16.gmra.mrb[0].mxu0 %v1847
      %v2058 = vpop.f32.mrb[0].mxu0
      %v2059 = vadd.f32 0.0, %v2058
      %v2060 = vpop.f32.mrb[0].mxu0
      %v2061 = vpop.f32.mrb[0].mxu0
      %v2062 = vadd.f32 0.0, %v2061
      %v2063 = vpop.f32.mrb[0].mxu0
      %2064 = vmatprep.mubr.bf16.mxu0 %v1948
      %2065 = vmatmul.mubr.bf16.gmra.mrb[0].mxu0 %v1849
      %v2066 = vpop.f32.mrb[0].mxu0
      %v2067 = vadd.f32 0.0, %v2066
      %v2068 = vpop.f32.mrb[0].mxu0
      %v2069 = vpop.f32.mrb[0].mxu0
      %v2070 = vadd.f32 0.0, %v2069
      %v2071 = vpop.f32.mrb[0].mxu0
      %2072 = vmatprep.mubr.bf16.mxu0 %v1951
      %2073 = vmatmul.mubr.bf16.gmra.mrb[0].mxu0 %v1851
      %v2074 = vpop.f32.mrb[0].mxu0
      %v2075 = vadd.f32 0.0, %v2074
      %v2076 = vpop.f32.mrb[0].mxu0
      %v2077 = vpop.f32.mrb[0].mxu0
      %v2078 = vadd.f32 0.0, %v2077
      %v2079 = vpop.f32.mrb[0].mxu0
      %2080 = vmatprep.mubr.bf16.mxu0 %v1954
      %2081 = vmatmul.mubr.bf16.gmra.mrb[0].mxu0 %v1853
      %v2082 = vpop.f32.mrb[0].mxu0
      %v2083 = vadd.f32 0.0, %v2082
      %v2084 = vpop.f32.mrb[0].mxu0
      %v2085 = vpop.f32.mrb[0].mxu0
      %v2086 = vadd.f32 0.0, %v2085
      %v2087 = vpop.f32.mrb[0].mxu0
      %2088 = vmatprep.mubr.bf16.mxu0 %v1957
      %2089 = vmatmul.mubr.bf16.gmra.mrb[0].mxu0 %v1855
      %v2090 = vpop.f32.mrb[0].mxu0
      %v2091 = vadd.f32 0.0, %v2090
      %v2092 = vpop.f32.mrb[0].mxu0
      %v2093 = vpop.f32.mrb[0].mxu0
      %v2094 = vadd.f32 0.0, %v2093
      %v2095 = vpop.f32.mrb[0].mxu0
      %2096 = vmatprep.mubr.bf16.mxu0 %v1960
      %2097 = vmatmul.mubr.bf16.gmra.mrb[0].mxu0 %v1857
      %v2098 = vpop.f32.mrb[0].mxu0
      %v2099 = vadd.f32 0.0, %v2098
      %v2100 = vpop.f32.mrb[0].mxu0
      %v2101 = vpop.f32.mrb[0].mxu0
      %v2102 = vadd.f32 0.0, %v2101
      %v2103 = vpop.f32.mrb[0].mxu0
      %2104 = vmatprep.mubr.bf16.mxu0 %v1963
      %2105 = vmatmul.mubr.bf16.gmra.mrb[0].mxu0 %v1859
      %v2106 = vpop.f32.mrb[0].mxu0
      %v2107 = vadd.f32 0.0, %v2106
      %v2108 = vpop.f32.mrb[0].mxu0
      %v2109 = vpop.f32.mrb[0].mxu0
      %v2110 = vadd.f32 0.0, %v2109
      %v2111 = vpop.f32.mrb[0].mxu0
      %2112 = vmatprep.mubr.bf16.mxu0 %v1966
      %2113 = vmatmul.mubr.bf16.gmra.mrb[0].mxu0 %v1861
      %v2114 = vpop.f32.mrb[0].mxu0
      %v2115 = vadd.f32 0.0, %v2114
      %v2116 = vpop.f32.mrb[0].mxu0
      %v2117 = vpop.f32.mrb[0].mxu0
      %v2118 = vadd.f32 0.0, %v2117
      %v2119 = vpop.f32.mrb[0].mxu0
      %2120 = vdwg.mxu0
      %v2121 = vadd.f32 %v1594, %v2003
      %v2122 = vadd.f32 %v1597, %v2006
      %v2123 = vadd.f32 %v1602, %v2011
      %v2124 = vadd.f32 %v1605, %v2014
      %v2125 = vadd.f32 %v1610, %v2019
      %v2126 = vadd.f32 %v1613, %v2022
      %v2127 = vadd.f32 %v1618, %v2027
      %v2128 = vadd.f32 %v1621, %v2030
      %v2129 = vadd.f32 %v1626, %v2035
      %v2130 = vadd.f32 %v1629, %v2038
      %v2131 = vadd.f32 %v1634, %v2043
      %v2132 = vadd.f32 %v1637, %v2046
      %v2133 = vadd.f32 %v1642, %v2051
      %v2134 = vadd.f32 %v1645, %v2054
      %v2135 = vadd.f32 %v1650, %v2059
      %v2136 = vadd.f32 %v1653, %v2062
      %v2137 = vadd.f32 %v1658, %v2067
      %v2138 = vadd.f32 %v1661, %v2070
      %v2139 = vadd.f32 %v1666, %v2075
      %v2140 = vadd.f32 %v1669, %v2078
      %v2141 = vadd.f32 %v1674, %v2083
      %v2142 = vadd.f32 %v1677, %v2086
      %v2143 = vadd.f32 %v1682, %v2091
      %v2144 = vadd.f32 %v1685, %v2094
      %v2145 = vadd.f32 %v1690, %v2099
      %v2146 = vadd.f32 %v1693, %v2102
      %v2147 = vadd.f32 %v1698, %v2107
      %v2148 = vadd.f32 %v1701, %v2110
      %v2149 = vadd.f32 %v1706, %v2115
      %v2150 = vadd.f32 %v1709, %v2118
      %v2151 = vmax.f32 %v2121, 0.0
      %v2152 = vmax.f32 %v2122, 0.0
      %v2153 = vmax.f32 %v2123, 0.0
      %v2154 = vmax.f32 %v2124, 0.0
      %v2155 = vmax.f32 %v2125, 0.0
      %v2156 = vmax.f32 %v2126, 0.0
      %v2157 = vmax.f32 %v2127, 0.0
      %v2158 = vmax.f32 %v2128, 0.0
      %v2159 = vmax.f32 %v2129, 0.0
      %v2160 = vmax.f32 %v2130, 0.0
      %v2161 = vmax.f32 %v2131, 0.0
      %v2162 = vmax.f32 %v2132, 0.0
      %v2163 = vmax.f32 %v2133, 0.0
      %v2164 = vmax.f32 %v2134, 0.0
      %v2165 = vmax.f32 %v2135, 0.0
      %v2166 = vmax.f32 %v2136, 0.0
      %v2167 = vmax.f32 %v2137, 0.0
      %v2168 = vmax.f32 %v2138, 0.0
      %v2169 = vmax.f32 %v2139, 0.0
      %v2170 = vmax.f32 %v2140, 0.0
      %v2171 = vmax.f32 %v2141, 0.0
      %v2172 = vmax.f32 %v2142, 0.0
      %v2173 = vmax.f32 %v2143, 0.0
      %v2174 = vmax.f32 %v2144, 0.0
      %v2175 = vmax.f32 %v2145, 0.0
      %v2176 = vmax.f32 %v2146, 0.0
      %v2177 = vmax.f32 %v2147, 0.0
      %v2178 = vmax.f32 %v2148, 0.0
      %v2179 = vmax.f32 %v2149, 0.0
      %v2180 = vmax.f32 %v2150, 0.0
      %v2181 = vpack.c.bf16 %v2152, %v2151
      %v2182 = vpack.c.bf16 %v2154, %v2153
      %v2183 = vpack.c.bf16 %v2156, %v2155
      %v2184 = vpack.c.bf16 %v2158, %v2157
      %v2185 = vpack.c.bf16 %v2160, %v2159
      %v2186 = vpack.c.bf16 %v2162, %v2161
      %v2187 = vpack.c.bf16 %v2164, %v2163
      %v2188 = vpack.c.bf16 %v2166, %v2165
      %v2189 = vpack.c.bf16 %v2168, %v2167
      %v2190 = vpack.c.bf16 %v2170, %v2169
      %v2191 = vpack.c.bf16 %v2172, %v2171
      %v2192 = vpack.c.bf16 %v2174, %v2173
      %v2193 = vpack.c.bf16 %v2176, %v2175
      %v2194 = vpack.c.bf16 %v2178, %v2177
      %v2195 = vpack.c.bf16 %v2180, %v2179
      %v2196 = vld [vmem:[%s6] sm:$0xf]
      %v2197 = vld [vmem:[%s6 + $0x4] sm:$0xf]
      %v2198 = vld [vmem:[%s6 + $0x8] sm:$0xf]
      %v2199 = vld [vmem:[%s6 + $0xc] sm:$0xf]
      %v2204 = vunpack.c.l.b16 %v2196
      %v2205 = vunpack.c.l.b16 %v2197
      %v2206 = vunpack.c.l.b16 %v2198
      %v2207 = vunpack.c.l.b16 %v2199
      %v2208 = vpack.c.b16 %v2205, %v2204
      %v2209 = vpack.c.b16 %v2207, %v2206
      %vm2212 = vcmask 261120
      %v2214 = vsel %vm2212, %v2181, 0
      %v2217 = vsel %vm2212, %v2182, 0
      %v2220 = vsel %vm2212, %v2183, 0
      %v2223 = vsel %vm2212, %v2184, 0
      %v2226 = vsel %vm2212, %v2185, 0
      %v2229 = vsel %vm2212, %v2186, 0
      %v2232 = vsel %vm2212, %v2187, 0
      %v2235 = vsel %vm2212, %v2188, 0
      %v2238 = vsel %vm2212, %v2189, 0
      %v2241 = vsel %vm2212, %v2190, 0
      %v2244 = vsel %vm2212, %v2191, 0
      %v2247 = vsel %vm2212, %v2192, 0
      %v2250 = vsel %vm2212, %v2193, 0
      %v2253 = vsel %vm2212, %v2194, 0
      %v2256 = vsel %vm2212, %v2195, 0
      %2258 = vmatprep.subr.bf16.mxu0 0
      %2259 = vmatpush1.bf16.msra.mxu0 %v2208
      %2260 = vmatprep.subr.bf16.mxu0 0
      %2261 = vmatpush1.bf16.msra.mxu0 %v2209
      %2262 = vmatprep.subr.bf16.mxu0 0
      %2263 = vmatpush1.bf16.msra.mxu0 0
      %2264 = vmatprep.subr.bf16.mxu0 0
      %2265 = vmatpush1.bf16.msra.mxu0 0
      %2266 = vmatprep.subr.bf16.mxu0 0
      %2267 = vmatpush1.bf16.msra.mxu0 0
      %2268 = vmatprep.subr.bf16.mxu0 0
      %2269 = vmatpush1.bf16.msra.mxu0 0
      %2270 = vmatprep.subr.bf16.mxu0 0
      %2271 = vmatpush1.bf16.msra.mxu0 0
      %2272 = vmatprep.subr.bf16.mxu0 0
      %2273 = vmatpush1.bf16.msra.mxu0 0
      %2274 = vmatprep.subr.bf16.mxu0 0
      %2275 = vmatpush1.bf16.msra.mxu0 0
      %2276 = vmatprep.subr.bf16.mxu0 0
      %2277 = vmatpush1.bf16.msra.mxu0 0
      %2278 = vmatprep.subr.bf16.mxu0 0
      %2279 = vmatpush1.bf16.msra.mxu0 0
      %2280 = vmatprep.subr.bf16.mxu0 0
      %2281 = vmatpush1.bf16.msra.mxu0 0
      %2282 = vmatprep.subr.bf16.mxu0 0
      %2283 = vmatpush1.bf16.msra.mxu0 0
      %2284 = vmatprep.subr.bf16.mxu0 0
      %2285 = vmatpush1.bf16.msra.mxu0 0
      %2286 = vmatprep.subr.bf16.mxu0 0
      %2287 = vmatpush1.bf16.msra.mxu0 0
      %2288 = vmatprep.subr.bf16.mxu0 0
      %2289 = vmatpush1.bf16.msra.mxu0 0
      %2290 = vmatprep.mubr.bf16.mxu0 0
      %2291 = vmatmul.mubr.bf16.gmra.mrb[0].mxu0 %v2214
      %v2292 = vpop.f32.mrb[0].mxu0
      %v2293 = vadd.f32 0.0, %v2292
      %v2294 = vpop.f32.mrb[0].mxu0
      %v2295 = vpop.f32.mrb[0].mxu0
      %v2296 = vadd.f32 0.0, %v2295
      %v2297 = vpop.f32.mrb[0].mxu0
      %2298 = vmatprep.mubr.bf16.mxu0 0
      %2299 = vmatmul.mubr.bf16.gmra.mrb[0].mxu0 %v2217
      %v2300 = vpop.f32.mrb[0].mxu0
      %v2301 = vadd.f32 0.0, %v2300
      %v2302 = vpop.f32.mrb[0].mxu0
      %v2303 = vpop.f32.mrb[0].mxu0
      %v2304 = vadd.f32 0.0, %v2303
      %v2305 = vpop.f32.mrb[0].mxu0
      %2306 = vmatprep.mubr.bf16.mxu0 0
      %2307 = vmatmul.mubr.bf16.gmra.mrb[0].mxu0 %v2220
      %v2308 = vpop.f32.mrb[0].mxu0
      %v2309 = vadd.f32 0.0, %v2308
      %v2310 = vpop.f32.mrb[0].mxu0
      %v2311 = vpop.f32.mrb[0].mxu0
      %v2312 = vadd.f32 0.0, %v2311
      %v2313 = vpop.f32.mrb[0].mxu0
      %2314 = vmatprep.mubr.bf16.mxu0 0
      %2315 = vmatmul.mubr.bf16.gmra.mrb[0].mxu0 %v2223
      %v2316 = vpop.f32.mrb[0].mxu0
      %v2317 = vadd.f32 0.0, %v2316
      %v2318 = vpop.f32.mrb[0].mxu0
      %v2319 = vpop.f32.mrb[0].mxu0
      %v2320 = vadd.f32 0.0, %v2319
      %v2321 = vpop.f32.mrb[0].mxu0
      %2322 = vmatprep.mubr.bf16.mxu0 0
      %2323 = vmatmul.mubr.bf16.gmra.mrb[0].mxu0 %v2226
      %v2324 = vpop.f32.mrb[0].mxu0
      %v2325 = vadd.f32 0.0, %v2324
      %v2326 = vpop.f32.mrb[0].mxu0
      %v2327 = vpop.f32.mrb[0].mxu0
      %v2328 = vadd.f32 0.0, %v2327
      %v2329 = vpop.f32.mrb[0].mxu0
      %2330 = vmatprep.mubr.bf16.mxu0 0
      %2331 = vmatmul.mubr.bf16.gmra.mrb[0].mxu0 %v2229
      %v2332 = vpop.f32.mrb[0].mxu0
      %v2333 = vadd.f32 0.0, %v2332
      %v2334 = vpop.f32.mrb[0].mxu0
      %v2335 = vpop.f32.mrb[0].mxu0
      %v2336 = vadd.f32 0.0, %v2335
      %v2337 = vpop.f32.mrb[0].mxu0
      %2338 = vmatprep.mubr.bf16.mxu0 0
      %2339 = vmatmul.mubr.bf16.gmra.mrb[0].mxu0 %v2232
      %v2340 = vpop.f32.mrb[0].mxu0
      %v2341 = vadd.f32 0.0, %v2340
      %v2342 = vpop.f32.mrb[0].mxu0
      %v2343 = vpop.f32.mrb[0].mxu0
      %v2344 = vadd.f32 0.0, %v2343
      %v2345 = vpop.f32.mrb[0].mxu0
      %2346 = vmatprep.mubr.bf16.mxu0 0
      %2347 = vmatmul.mubr.bf16.gmra.mrb[0].mxu0 %v2235
      %v2348 = vpop.f32.mrb[0].mxu0
      %v2349 = vadd.f32 0.0, %v2348
      %v2350 = vpop.f32.mrb[0].mxu0
      %v2351 = vpop.f32.mrb[0].mxu0
      %v2352 = vadd.f32 0.0, %v2351
      %v2353 = vpop.f32.mrb[0].mxu0
      %2354 = vmatprep.mubr.bf16.mxu0 0
      %2355 = vmatmul.mubr.bf16.gmra.mrb[0].mxu0 %v2238
      %v2356 = vpop.f32.mrb[0].mxu0
      %v2357 = vadd.f32 0.0, %v2356
      %v2358 = vpop.f32.mrb[0].mxu0
      %v2359 = vpop.f32.mrb[0].mxu0
      %v2360 = vadd.f32 0.0, %v2359
      %v2361 = vpop.f32.mrb[0].mxu0
      %2362 = vmatprep.mubr.bf16.mxu0 0
      %2363 = vmatmul.mubr.bf16.gmra.mrb[0].mxu0 %v2241
      %v2364 = vpop.f32.mrb[0].mxu0
      %v2365 = vadd.f32 0.0, %v2364
      %v2366 = vpop.f32.mrb[0].mxu0
      %v2367 = vpop.f32.mrb[0].mxu0
      %v2368 = vadd.f32 0.0, %v2367
      %v2369 = vpop.f32.mrb[0].mxu0
      %2370 = vmatprep.mubr.bf16.mxu0 0
      %2371 = vmatmul.mubr.bf16.gmra.mrb[0].mxu0 %v2244
      %v2372 = vpop.f32.mrb[0].mxu0
      %v2373 = vadd.f32 0.0, %v2372
      %v2374 = vpop.f32.mrb[0].mxu0
      %v2375 = vpop.f32.mrb[0].mxu0
      %v2376 = vadd.f32 0.0, %v2375
      %v2377 = vpop.f32.mrb[0].mxu0
      %2378 = vmatprep.mubr.bf16.mxu0 0
      %2379 = vmatmul.mubr.bf16.gmra.mrb[0].mxu0 %v2247
      %v2380 = vpop.f32.mrb[0].mxu0
      %v2381 = vadd.f32 0.0, %v2380
      %v2382 = vpop.f32.mrb[0].mxu0
      %v2383 = vpop.f32.mrb[0].mxu0
      %v2384 = vadd.f32 0.0, %v2383
      %v2385 = vpop.f32.mrb[0].mxu0
      %2386 = vmatprep.mubr.bf16.mxu0 0
      %2387 = vmatmul.mubr.bf16.gmra.mrb[0].mxu0 %v2250
      %v2388 = vpop.f32.mrb[0].mxu0
      %v2389 = vadd.f32 0.0, %v2388
      %v2390 = vpop.f32.mrb[0].mxu0
      %v2391 = vpop.f32.mrb[0].mxu0
      %v2392 = vadd.f32 0.0, %v2391
      %v2393 = vpop.f32.mrb[0].mxu0
      %2394 = vmatprep.mubr.bf16.mxu0 0
      %2395 = vmatmul.mubr.bf16.gmra.mrb[0].mxu0 %v2253
      %v2396 = vpop.f32.mrb[0].mxu0
      %v2397 = vadd.f32 0.0, %v2396
      %v2398 = vpop.f32.mrb[0].mxu0
      %v2399 = vpop.f32.mrb[0].mxu0
      %v2400 = vadd.f32 0.0, %v2399
      %v2401 = vpop.f32.mrb[0].mxu0
      %2402 = vmatprep.mubr.bf16.mxu0 0
      %2403 = vmatmul.mubr.bf16.gmra.mrb[0].mxu0 %v2256
      %v2404 = vpop.f32.mrb[0].mxu0
      %v2405 = vadd.f32 0.0, %v2404
      %v2406 = vpop.f32.mrb[0].mxu0
      %v2407 = vpop.f32.mrb[0].mxu0
      %v2408 = vadd.f32 0.0, %v2407
      %v2409 = vpop.f32.mrb[0].mxu0
      %2410 = vdwg.mxu0
      %v2411 = vpack.c.bf16 %v2296, %v2293
      %v2412 = vpack.c.bf16 %v2304, %v2301
      %v2413 = vpack.c.bf16 %v2312, %v2309
      %v2414 = vpack.c.bf16 %v2320, %v2317
      %v2415 = vpack.c.bf16 %v2328, %v2325
      %v2416 = vpack.c.bf16 %v2336, %v2333
      %v2417 = vpack.c.bf16 %v2344, %v2341
      %v2418 = vpack.c.bf16 %v2352, %v2349
      %v2419 = vpack.c.bf16 %v2360, %v2357
      %v2420 = vpack.c.bf16 %v2368, %v2365
      %v2421 = vpack.c.bf16 %v2376, %v2373
      %v2422 = vpack.c.bf16 %v2384, %v2381
      %v2423 = vpack.c.bf16 %v2392, %v2389
      %v2424 = vpack.c.bf16 %v2400, %v2397
      %v2425 = vpack.c.bf16 %v2408, %v2405
      %2441 = vrot.lane.b32.xlu0 %v2411, 96
      %v2442 = vpop.permute.xlu0 %2441
      %2443 = vrot.lane.b32.xlu0 %v2412, 96
      %v2444 = vpop.permute.xlu0 %2443
      %2445 = vrot.lane.b32.xlu0 %v2413, 96
      %v2446 = vpop.permute.xlu0 %2445
      %2447 = vrot.lane.b32.xlu0 %v2414, 96
      %v2448 = vpop.permute.xlu0 %2447
      %2449 = vrot.lane.b32.xlu0 %v2415, 96
      %v2450 = vpop.permute.xlu0 %2449
      %2451 = vrot.lane.b32.xlu0 %v2416, 96
      %v2452 = vpop.permute.xlu0 %2451
      %2453 = vrot.lane.b32.xlu0 %v2417, 96
      %v2454 = vpop.permute.xlu0 %2453
      %2455 = vrot.lane.b32.xlu0 %v2418, 96
      %v2456 = vpop.permute.xlu0 %2455
      %2457 = vrot.lane.b32.xlu0 %v2419, 96
      %v2458 = vpop.permute.xlu0 %2457
      %2459 = vrot.lane.b32.xlu0 %v2420, 96
      %v2460 = vpop.permute.xlu0 %2459
      %2461 = vrot.lane.b32.xlu0 %v2421, 96
      %v2462 = vpop.permute.xlu0 %2461
      %2463 = vrot.lane.b32.xlu0 %v2422, 96
      %v2464 = vpop.permute.xlu0 %2463
      %2465 = vrot.lane.b32.xlu0 %v2423, 96
      %v2466 = vpop.permute.xlu0 %2465
      %2467 = vrot.lane.b32.xlu0 %v2424, 96
      %v2468 = vpop.permute.xlu0 %2467
      %2469 = vrot.lane.b32.xlu0 %v2425, 96
      %v2470 = vpop.permute.xlu0 %2469
      %2486 = vmatprep.subr.bf16.mxu0 0
      %2487 = vmatpush1.bf16.msra.mxu0 %v2442
      %2488 = vmatprep.subr.bf16.mxu0 0
      %2489 = vmatpush1.bf16.msra.mxu0 %v2444
      %2490 = vmatprep.subr.bf16.mxu0 0
      %2491 = vmatpush1.bf16.msra.mxu0 %v2446
      %2492 = vmatprep.subr.bf16.mxu0 0
      %2493 = vmatpush1.bf16.msra.mxu0 %v2448
      %2494 = vmatprep.subr.bf16.mxu0 0
      %2495 = vmatpush1.bf16.msra.mxu0 %v2450
      %2496 = vmatprep.subr.bf16.mxu0 0
      %2497 = vmatpush1.bf16.msra.mxu0 %v2452
      %2498 = vmatprep.subr.bf16.mxu0 0
      %2499 = vmatpush1.bf16.msra.mxu0 %v2454
      %2500 = vmatprep.subr.bf16.mxu0 0
      %2501 = vmatpush1.bf16.msra.mxu0 %v2456
      %2502 = vmatprep.subr.bf16.mxu0 0
      %2503 = vmatpush1.bf16.msra.mxu0 %v2458
      %2504 = vmatprep.subr.bf16.mxu0 0
      %2505 = vmatpush1.bf16.msra.mxu0 %v2460
      %2506 = vmatprep.subr.bf16.mxu0 0
      %2507 = vmatpush1.bf16.msra.mxu0 %v2462
      %2508 = vmatprep.subr.bf16.mxu0 0
      %2509 = vmatpush1.bf16.msra.mxu0 %v2464
      %2510 = vmatprep.subr.bf16.mxu0 0
      %2511 = vmatpush1.bf16.msra.mxu0 %v2466
      %2512 = vmatprep.subr.bf16.mxu0 0
      %2513 = vmatpush1.bf16.msra.mxu0 %v2468
      %2514 = vmatprep.subr.bf16.mxu0 0
      %2515 = vmatpush1.bf16.msra.mxu0 %v2470
      %2516 = vmatprep.subr.bf16.mxu0 0
      %2517 = vmatpush1.bf16.msra.mxu0 0
      %2518 = vmatprep.mubr.bf16.mxu0 %v1182
      %2519 = vmatmul.mubr.bf16.gmra.mrb[0].mxu0 %v1075
      %v2520 = vpop.f32.mrb[0].mxu0
      %v2521 = vadd.f32 0.0, %v2520
      %v2522 = vpop.f32.mrb[0].mxu0
      %v2523 = vpop.f32.mrb[0].mxu0
      %v2524 = vadd.f32 0.0, %v2523
      %v2525 = vpop.f32.mrb[0].mxu0
      %2526 = vmatprep.mubr.bf16.mxu0 %v1185
      %2527 = vmatmul.mubr.bf16.gmra.mrb[0].mxu0 %v1077
      %v2528 = vpop.f32.mrb[0].mxu0
      %v2529 = vadd.f32 0.0, %v2528
      %v2530 = vpop.f32.mrb[0].mxu0
      %v2531 = vpop.f32.mrb[0].mxu0
      %v2532 = vadd.f32 0.0, %v2531
      %v2533 = vpop.f32.mrb[0].mxu0
      %2534 = vmatprep.mubr.bf16.mxu0 %v1188
      %2535 = vmatmul.mubr.bf16.gmra.mrb[0].mxu0 %v1079
      %v2536 = vpop.f32.mrb[0].mxu0
      %v2537 = vadd.f32 0.0, %v2536
      %v2538 = vpop.f32.mrb[0].mxu0
      %v2539 = vpop.f32.mrb[0].mxu0
      %v2540 = vadd.f32 0.0, %v2539
      %v2541 = vpop.f32.mrb[0].mxu0
      %2542 = vmatprep.mubr.bf16.mxu0 %v1191
      %2543 = vmatmul.mubr.bf16.gmra.mrb[0].mxu0 %v1081
      %v2544 = vpop.f32.mrb[0].mxu0
      %v2545 = vadd.f32 0.0, %v2544
      %v2546 = vpop.f32.mrb[0].mxu0
      %v2547 = vpop.f32.mrb[0].mxu0
      %v2548 = vadd.f32 0.0, %v2547
      %v2549 = vpop.f32.mrb[0].mxu0
      %2550 = vmatprep.mubr.bf16.mxu0 %v1194
      %2551 = vmatmul.mubr.bf16.gmra.mrb[0].mxu0 %v1083
      %v2552 = vpop.f32.mrb[0].mxu0
      %v2553 = vadd.f32 0.0, %v2552
      %v2554 = vpop.f32.mrb[0].mxu0
      %v2555 = vpop.f32.mrb[0].mxu0
      %v2556 = vadd.f32 0.0, %v2555
      %v2557 = vpop.f32.mrb[0].mxu0
      %2558 = vmatprep.mubr.bf16.mxu0 %v1197
      %2559 = vmatmul.mubr.bf16.gmra.mrb[0].mxu0 %v1085
      %v2560 = vpop.f32.mrb[0].mxu0
      %v2561 = vadd.f32 0.0, %v2560
      %v2562 = vpop.f32.mrb[0].mxu0
      %v2563 = vpop.f32.mrb[0].mxu0
      %v2564 = vadd.f32 0.0, %v2563
      %v2565 = vpop.f32.mrb[0].mxu0
      %2566 = vmatprep.mubr.bf16.mxu0 %v1200
      %2567 = vmatmul.mubr.bf16.gmra.mrb[0].mxu0 %v1087
      %v2568 = vpop.f32.mrb[0].mxu0
      %v2569 = vadd.f32 0.0, %v2568
      %v2570 = vpop.f32.mrb[0].mxu0
      %v2571 = vpop.f32.mrb[0].mxu0
      %v2572 = vadd.f32 0.0, %v2571
      %v2573 = vpop.f32.mrb[0].mxu0
      %2574 = vmatprep.mubr.bf16.mxu0 %v1203
      %2575 = vmatmul.mubr.bf16.gmra.mrb[0].mxu0 %v1089
      %v2576 = vpop.f32.mrb[0].mxu0
      %v2577 = vadd.f32 0.0, %v2576
      %v2578 = vpop.f32.mrb[0].mxu0
      %v2579 = vpop.f32.mrb[0].mxu0
      %v2580 = vadd.f32 0.0, %v2579
      %v2581 = vpop.f32.mrb[0].mxu0
      %2582 = vmatprep.mubr.bf16.mxu0 %v1206
      %2583 = vmatmul.mubr.bf16.gmra.mrb[0].mxu0 %v1091
      %v2584 = vpop.f32.mrb[0].mxu0
      %v2585 = vadd.f32 0.0, %v2584
      %v2586 = vpop.f32.mrb[0].mxu0
      %v2587 = vpop.f32.mrb[0].mxu0
      %v2588 = vadd.f32 0.0, %v2587
      %v2589 = vpop.f32.mrb[0].mxu0
      %2590 = vmatprep.mubr.bf16.mxu0 %v1209
      %2591 = vmatmul.mubr.bf16.gmra.mrb[0].mxu0 %v1093
      %v2592 = vpop.f32.mrb[0].mxu0
      %v2593 = vadd.f32 0.0, %v2592
      %v2594 = vpop.f32.mrb[0].mxu0
      %v2595 = vpop.f32.mrb[0].mxu0
      %v2596 = vadd.f32 0.0, %v2595
      %v2597 = vpop.f32.mrb[0].mxu0
      %2598 = vmatprep.mubr.bf16.mxu0 %v1212
      %2599 = vmatmul.mubr.bf16.gmra.mrb[0].mxu0 %v1095
      %v2600 = vpop.f32.mrb[0].mxu0
      %v2601 = vadd.f32 0.0, %v2600
      %v2602 = vpop.f32.mrb[0].mxu0
      %v2603 = vpop.f32.mrb[0].mxu0
      %v2604 = vadd.f32 0.0, %v2603
      %v2605 = vpop.f32.mrb[0].mxu0
      %2606 = vmatprep.mubr.bf16.mxu0 %v1215
      %2607 = vmatmul.mubr.bf16.gmra.mrb[0].mxu0 %v1097
      %v2608 = vpop.f32.mrb[0].mxu0
      %v2609 = vadd.f32 0.0, %v2608
      %v2610 = vpop.f32.mrb[0].mxu0
      %v2611 = vpop.f32.mrb[0].mxu0
      %v2612 = vadd.f32 0.0, %v2611
      %v2613 = vpop.f32.mrb[0].mxu0
      %2614 = vmatprep.mubr.bf16.mxu0 %v1218
      %2615 = vmatmul.mubr.bf16.gmra.mrb[0].mxu0 %v1099
      %v2616 = vpop.f32.mrb[0].mxu0
      %v2617 = vadd.f32 0.0, %v2616
      %v2618 = vpop.f32.mrb[0].mxu0
      %v2619 = vpop.f32.mrb[0].mxu0
      %v2620 = vadd.f32 0.0, %v2619
      %v2621 = vpop.f32.mrb[0].mxu0
      %2622 = vmatprep.mubr.bf16.mxu0 %v1221
      %2623 = vmatmul.mubr.bf16.gmra.mrb[0].mxu0 %v1101
      %v2624 = vpop.f32.mrb[0].mxu0
      %v2625 = vadd.f32 0.0, %v2624
      %v2626 = vpop.f32.mrb[0].mxu0
      %v2627 = vpop.f32.mrb[0].mxu0
      %v2628 = vadd.f32 0.0, %v2627
      %v2629 = vpop.f32.mrb[0].mxu0
      %2630 = vmatprep.mubr.bf16.mxu0 %v1224
      %2631 = vmatmul.mubr.bf16.gmra.mrb[0].mxu0 %v1103
      %v2632 = vpop.f32.mrb[0].mxu0
      %v2633 = vadd.f32 0.0, %v2632
      %v2634 = vpop.f32.mrb[0].mxu0
      %v2635 = vpop.f32.mrb[0].mxu0
      %v2636 = vadd.f32 0.0, %v2635
      %v2637 = vpop.f32.mrb[0].mxu0
      %2638 = vdwg.mxu0
      %2639 = vmatprep.subr.bf16.mxu0 0
      %2640 = vmatpush1.bf16.msra.mxu0 %v2411
      %2641 = vmatprep.subr.bf16.mxu0 0
      %2642 = vmatpush1.bf16.msra.mxu0 %v2412
      %2643 = vmatprep.subr.bf16.mxu0 0
      %2644 = vmatpush1.bf16.msra.mxu0 %v2413
      %2645 = vmatprep.subr.bf16.mxu0 0
      %2646 = vmatpush1.bf16.msra.mxu0 %v2414
      %2647 = vmatprep.subr.bf16.mxu0 0
      %2648 = vmatpush1.bf16.msra.mxu0 %v2415
      %2649 = vmatprep.subr.bf16.mxu0 0
      %2650 = vmatpush1.bf16.msra.mxu0 %v2416
      %2651 = vmatprep.subr.bf16.mxu0 0
      %2652 = vmatpush1.bf16.msra.mxu0 %v2417
      %2653 = vmatprep.subr.bf16.mxu0 0
      %2654 = vmatpush1.bf16.msra.mxu0 %v2418
      %2655 = vmatprep.subr.bf16.mxu0 0
      %2656 = vmatpush1.bf16.msra.mxu0 %v2419
      %2657 = vmatprep.subr.bf16.mxu0 0
      %2658 = vmatpush1.bf16.msra.mxu0 %v2420
      %2659 = vmatprep.subr.bf16.mxu0 0
      %2660 = vmatpush1.bf16.msra.mxu0 %v2421
      %2661 = vmatprep.subr.bf16.mxu0 0
      %2662 = vmatpush1.bf16.msra.mxu0 %v2422
      %2663 = vmatprep.subr.bf16.mxu0 0
      %2664 = vmatpush1.bf16.msra.mxu0 %v2423
      %2665 = vmatprep.subr.bf16.mxu0 0
      %2666 = vmatpush1.bf16.msra.mxu0 %v2424
      %2667 = vmatprep.subr.bf16.mxu0 0
      %2668 = vmatpush1.bf16.msra.mxu0 %v2425
      %2669 = vmatprep.subr.bf16.mxu0 0
      %2670 = vmatpush1.bf16.msra.mxu0 0
      %2671 = vmatprep.mubr.bf16.mxu0 %v1515
      %2672 = vmatmul.mubr.bf16.gmra.mrb[0].mxu0 %v1469
      %v2673 = vpop.f32.mrb[0].mxu0
      %v2674 = vadd.f32 %v2521, %v2673
      %v2675 = vpop.f32.mrb[0].mxu0
      %v2676 = vpop.f32.mrb[0].mxu0
      %v2677 = vadd.f32 %v2524, %v2676
      %v2678 = vpop.f32.mrb[0].mxu0
      %2679 = vmatprep.mubr.bf16.mxu0 %v1518
      %2680 = vmatmul.mubr.bf16.gmra.mrb[0].mxu0 %v1471
      %v2681 = vpop.f32.mrb[0].mxu0
      %v2682 = vadd.f32 %v2529, %v2681
      %v2683 = vpop.f32.mrb[0].mxu0
      %v2684 = vpop.f32.mrb[0].mxu0
      %v2685 = vadd.f32 %v2532, %v2684
      %v2686 = vpop.f32.mrb[0].mxu0
      %2687 = vmatprep.mubr.bf16.mxu0 %v1521
      %2688 = vmatmul.mubr.bf16.gmra.mrb[0].mxu0 %v1473
      %v2689 = vpop.f32.mrb[0].mxu0
      %v2690 = vadd.f32 %v2537, %v2689
      %v2691 = vpop.f32.mrb[0].mxu0
      %v2692 = vpop.f32.mrb[0].mxu0
      %v2693 = vadd.f32 %v2540, %v2692
      %v2694 = vpop.f32.mrb[0].mxu0
      %2695 = vmatprep.mubr.bf16.mxu0 %v1524
      %2696 = vmatmul.mubr.bf16.gmra.mrb[0].mxu0 %v1475
      %v2697 = vpop.f32.mrb[0].mxu0
      %v2698 = vadd.f32 %v2545, %v2697
      %v2699 = vpop.f32.mrb[0].mxu0
      %v2700 = vpop.f32.mrb[0].mxu0
      %v2701 = vadd.f32 %v2548, %v2700
      %v2702 = vpop.f32.mrb[0].mxu0
      %2703 = vmatprep.mubr.bf16.mxu0 %v1527
      %2704 = vmatmul.mubr.bf16.gmra.mrb[0].mxu0 %v1477
      %v2705 = vpop.f32.mrb[0].mxu0
      %v2706 = vadd.f32 %v2553, %v2705
      %v2707 = vpop.f32.mrb[0].mxu0
      %v2708 = vpop.f32.mrb[0].mxu0
      %v2709 = vadd.f32 %v2556, %v2708
      %v2710 = vpop.f32.mrb[0].mxu0
      %2711 = vmatprep.mubr.bf16.mxu0 %v1530
      %2712 = vmatmul.mubr.bf16.gmra.mrb[0].mxu0 %v1479
      %v2713 = vpop.f32.mrb[0].mxu0
      %v2714 = vadd.f32 %v2561, %v2713
      %v2715 = vpop.f32.mrb[0].mxu0
      %v2716 = vpop.f32.mrb[0].mxu0
      %v2717 = vadd.f32 %v2564, %v2716
      %v2718 = vpop.f32.mrb[0].mxu0
      %2719 = vmatprep.mubr.bf16.mxu0 %v1533
      %2720 = vmatmul.mubr.bf16.gmra.mrb[0].mxu0 %v1481
      %v2721 = vpop.f32.mrb[0].mxu0
      %v2722 = vadd.f32 %v2569, %v2721
      %v2723 = vpop.f32.mrb[0].mxu0
      %v2724 = vpop.f32.mrb[0].mxu0
      %v2725 = vadd.f32 %v2572, %v2724
      %v2726 = vpop.f32.mrb[0].mxu0
      %2727 = vmatprep.mubr.bf16.mxu0 %v1536
      %2728 = vmatmul.mubr.bf16.gmra.mrb[0].mxu0 %v1483
      %v2729 = vpop.f32.mrb[0].mxu0
      %v2730 = vadd.f32 %v2577, %v2729
      %v2731 = vpop.f32.mrb[0].mxu0
      %v2732 = vpop.f32.mrb[0].mxu0
      %v2733 = vadd.f32 %v2580, %v2732
      %v2734 = vpop.f32.mrb[0].mxu0
      %2735 = vmatprep.mubr.bf16.mxu0 %v1539
      %2736 = vmatmul.mubr.bf16.gmra.mrb[0].mxu0 %v1485
      %v2737 = vpop.f32.mrb[0].mxu0
      %v2738 = vadd.f32 %v2585, %v2737
      %v2739 = vpop.f32.mrb[0].mxu0
      %v2740 = vpop.f32.mrb[0].mxu0
      %v2741 = vadd.f32 %v2588, %v2740
      %v2742 = vpop.f32.mrb[0].mxu0
      %2743 = vmatprep.mubr.bf16.mxu0 %v1542
      %2744 = vmatmul.mubr.bf16.gmra.mrb[0].mxu0 %v1487
      %v2745 = vpop.f32.mrb[0].mxu0
      %v2746 = vadd.f32 %v2593, %v2745
      %v2747 = vpop.f32.mrb[0].mxu0
      %v2748 = vpop.f32.mrb[0].mxu0
      %v2749 = vadd.f32 %v2596, %v2748
      %v2750 = vpop.f32.mrb[0].mxu0
      %2751 = vmatprep.mubr.bf16.mxu0 %v1545
      %2752 = vmatmul.mubr.bf16.gmra.mrb[0].mxu0 %v1489
      %v2753 = vpop.f32.mrb[0].mxu0
      %v2754 = vadd.f32 %v2601, %v2753
      %v2755 = vpop.f32.mrb[0].mxu0
      %v2756 = vpop.f32.mrb[0].mxu0
      %v2757 = vadd.f32 %v2604, %v2756
      %v2758 = vpop.f32.mrb[0].mxu0
      %2759 = vmatprep.mubr.bf16.mxu0 %v1548
      %2760 = vmatmul.mubr.bf16.gmra.mrb[0].mxu0 %v1491
      %v2761 = vpop.f32.mrb[0].mxu0
      %v2762 = vadd.f32 %v2609, %v2761
      %v2763 = vpop.f32.mrb[0].mxu0
      %v2764 = vpop.f32.mrb[0].mxu0
      %v2765 = vadd.f32 %v2612, %v2764
      %v2766 = vpop.f32.mrb[0].mxu0
      %2767 = vmatprep.mubr.bf16.mxu0 %v1551
      %2768 = vmatmul.mubr.bf16.gmra.mrb[0].mxu0 %v1493
      %v2769 = vpop.f32.mrb[0].mxu0
      %v2770 = vadd.f32 %v2617, %v2769
      %v2771 = vpop.f32.mrb[0].mxu0
      %v2772 = vpop.f32.mrb[0].mxu0
      %v2773 = vadd.f32 %v2620, %v2772
      %v2774 = vpop.f32.mrb[0].mxu0
      %2775 = vmatprep.mubr.bf16.mxu0 %v1554
      %2776 = vmatmul.mubr.bf16.gmra.mrb[0].mxu0 %v1495
      %v2777 = vpop.f32.mrb[0].mxu0
      %v2778 = vadd.f32 %v2625, %v2777
      %v2779 = vpop.f32.mrb[0].mxu0
      %v2780 = vpop.f32.mrb[0].mxu0
      %v2781 = vadd.f32 %v2628, %v2780
      %v2782 = vpop.f32.mrb[0].mxu0
      %2783 = vmatprep.mubr.bf16.mxu0 %v1557
      %2784 = vmatmul.mubr.bf16.gmra.mrb[0].mxu0 %v1497
      %v2785 = vpop.f32.mrb[0].mxu0
      %v2786 = vadd.f32 %v2633, %v2785
      %v2787 = vpop.f32.mrb[0].mxu0
      %v2788 = vpop.f32.mrb[0].mxu0
      %v2789 = vadd.f32 %v2636, %v2788
      %v2790 = vpop.f32.mrb[0].mxu0
      %2791 = vdwg.mxu0
      %2792 = vrot.lane.b32.xlu0 %v2411, 64
      %v2793 = vpop.permute.xlu0 %2792
      %2794 = vrot.lane.b32.xlu0 %v2412, 64
      %v2795 = vpop.permute.xlu0 %2794
      %2796 = vrot.lane.b32.xlu0 %v2413, 64
      %v2797 = vpop.permute.xlu0 %2796
      %2798 = vrot.lane.b32.xlu0 %v2414, 64
      %v2799 = vpop.permute.xlu0 %2798
      %2800 = vrot.lane.b32.xlu0 %v2415, 64
      %v2801 = vpop.permute.xlu0 %2800
      %2802 = vrot.lane.b32.xlu0 %v2416, 64
      %v2803 = vpop.permute.xlu0 %2802
      %2804 = vrot.lane.b32.xlu0 %v2417, 64
      %v2805 = vpop.permute.xlu0 %2804
      %2806 = vrot.lane.b32.xlu0 %v2418, 64
      %v2807 = vpop.permute.xlu0 %2806
      %2808 = vrot.lane.b32.xlu0 %v2419, 64
      %v2809 = vpop.permute.xlu0 %2808
      %2810 = vrot.lane.b32.xlu0 %v2420, 64
      %v2811 = vpop.permute.xlu0 %2810
      %2812 = vrot.lane.b32.xlu0 %v2421, 64
      %v2813 = vpop.permute.xlu0 %2812
      %2814 = vrot.lane.b32.xlu0 %v2422, 64
      %v2815 = vpop.permute.xlu0 %2814
      %2816 = vrot.lane.b32.xlu0 %v2423, 64
      %v2817 = vpop.permute.xlu0 %2816
      %2818 = vrot.lane.b32.xlu0 %v2424, 64
      %v2819 = vpop.permute.xlu0 %2818
      %2820 = vrot.lane.b32.xlu0 %v2425, 64
      %v2821 = vpop.permute.xlu0 %2820
      %2837 = vmatprep.subr.bf16.mxu0 0
      %2838 = vmatpush1.bf16.msra.mxu0 %v2793
      %2839 = vmatprep.subr.bf16.mxu0 0
      %2840 = vmatpush1.bf16.msra.mxu0 %v2795
      %2841 = vmatprep.subr.bf16.mxu0 0
      %2842 = vmatpush1.bf16.msra.mxu0 %v2797
      %2843 = vmatprep.subr.bf16.mxu0 0
      %2844 = vmatpush1.bf16.msra.mxu0 %v2799
      %2845 = vmatprep.subr.bf16.mxu0 0
      %2846 = vmatpush1.bf16.msra.mxu0 %v2801
      %2847 = vmatprep.subr.bf16.mxu0 0
      %2848 = vmatpush1.bf16.msra.mxu0 %v2803
      %2849 = vmatprep.subr.bf16.mxu0 0
      %2850 = vmatpush1.bf16.msra.mxu0 %v2805
      %2851 = vmatprep.subr.bf16.mxu0 0
      %2852 = vmatpush1.bf16.msra.mxu0 %v2807
      %2853 = vmatprep.subr.bf16.mxu0 0
      %2854 = vmatpush1.bf16.msra.mxu0 %v2809
      %2855 = vmatprep.subr.bf16.mxu0 0
      %2856 = vmatpush1.bf16.msra.mxu0 %v2811
      %2857 = vmatprep.subr.bf16.mxu0 0
      %2858 = vmatpush1.bf16.msra.mxu0 %v2813
      %2859 = vmatprep.subr.bf16.mxu0 0
      %2860 = vmatpush1.bf16.msra.mxu0 %v2815
      %2861 = vmatprep.subr.bf16.mxu0 0
      %2862 = vmatpush1.bf16.msra.mxu0 %v2817
      %2863 = vmatprep.subr.bf16.mxu0 0
      %2864 = vmatpush1.bf16.msra.mxu0 %v2819
      %2865 = vmatprep.subr.bf16.mxu0 0
      %2866 = vmatpush1.bf16.msra.mxu0 %v2821
      %2867 = vmatprep.subr.bf16.mxu0 0
      %2868 = vmatpush1.bf16.msra.mxu0 0
      %2869 = vmatprep.mubr.bf16.mxu0 %v1924
      %2870 = vmatmul.mubr.bf16.gmra.mrb[0].mxu0 %v1833
      %v2871 = vpop.f32.mrb[0].mxu0
      %v2872 = vadd.f32 0.0, %v2871
      %v2873 = vpop.f32.mrb[0].mxu0
      %v2874 = vpop.f32.mrb[0].mxu0
      %v2875 = vadd.f32 0.0, %v2874
      %v2876 = vpop.f32.mrb[0].mxu0
      %2877 = vmatprep.mubr.bf16.mxu0 %v1927
      %2878 = vmatmul.mubr.bf16.gmra.mrb[0].mxu0 %v1835
      %v2879 = vpop.f32.mrb[0].mxu0
      %v2880 = vadd.f32 0.0, %v2879
      %v2881 = vpop.f32.mrb[0].mxu0
      %v2882 = vpop.f32.mrb[0].mxu0
      %v2883 = vadd.f32 0.0, %v2882
      %v2884 = vpop.f32.mrb[0].mxu0
      %2885 = vmatprep.mubr.bf16.mxu0 %v1930
      %2886 = vmatmul.mubr.bf16.gmra.mrb[0].mxu0 %v1837
      %v2887 = vpop.f32.mrb[0].mxu0
      %v2888 = vadd.f32 0.0, %v2887
      %v2889 = vpop.f32.mrb[0].mxu0
      %v2890 = vpop.f32.mrb[0].mxu0
      %v2891 = vadd.f32 0.0, %v2890
      %v2892 = vpop.f32.mrb[0].mxu0
      %2893 = vmatprep.mubr.bf16.mxu0 %v1933
      %2894 = vmatmul.mubr.bf16.gmra.mrb[0].mxu0 %v1839
      %v2895 = vpop.f32.mrb[0].mxu0
      %v2896 = vadd.f32 0.0, %v2895
      %v2897 = vpop.f32.mrb[0].mxu0
      %v2898 = vpop.f32.mrb[0].mxu0
      %v2899 = vadd.f32 0.0, %v2898
      %v2900 = vpop.f32.mrb[0].mxu0
      %2901 = vmatprep.mubr.bf16.mxu0 %v1936
      %2902 = vmatmul.mubr.bf16.gmra.mrb[0].mxu0 %v1841
      %v2903 = vpop.f32.mrb[0].mxu0
      %v2904 = vadd.f32 0.0, %v2903
      %v2905 = vpop.f32.mrb[0].mxu0
      %v2906 = vpop.f32.mrb[0].mxu0
      %v2907 = vadd.f32 0.0, %v2906
      %v2908 = vpop.f32.mrb[0].mxu0
      %2909 = vmatprep.mubr.bf16.mxu0 %v1939
      %2910 = vmatmul.mubr.bf16.gmra.mrb[0].mxu0 %v1843
      %v2911 = vpop.f32.mrb[0].mxu0
      %v2912 = vadd.f32 0.0, %v2911
      %v2913 = vpop.f32.mrb[0].mxu0
      %v2914 = vpop.f32.mrb[0].mxu0
      %v2915 = vadd.f32 0.0, %v2914
      %v2916 = vpop.f32.mrb[0].mxu0
      %2917 = vmatprep.mubr.bf16.mxu0 %v1942
      %2918 = vmatmul.mubr.bf16.gmra.mrb[0].mxu0 %v1845
      %v2919 = vpop.f32.mrb[0].mxu0
      %v2920 = vadd.f32 0.0, %v2919
      %v2921 = vpop.f32.mrb[0].mxu0
      %v2922 = vpop.f32.mrb[0].mxu0
      %v2923 = vadd.f32 0.0, %v2922
      %v2924 = vpop.f32.mrb[0].mxu0
      %2925 = vmatprep.mubr.bf16.mxu0 %v1945
      %2926 = vmatmul.mubr.bf16.gmra.mrb[0].mxu0 %v1847
      %v2927 = vpop.f32.mrb[0].mxu0
      %v2928 = vadd.f32 0.0, %v2927
      %v2929 = vpop.f32.mrb[0].mxu0
      %v2930 = vpop.f32.mrb[0].mxu0
      %v2931 = vadd.f32 0.0, %v2930
      %v2932 = vpop.f32.mrb[0].mxu0
      %2933 = vmatprep.mubr.bf16.mxu0 %v1948
      %2934 = vmatmul.mubr.bf16.gmra.mrb[0].mxu0 %v1849
      %v2935 = vpop.f32.mrb[0].mxu0
      %v2936 = vadd.f32 0.0, %v2935
      %v2937 = vpop.f32.mrb[0].mxu0
      %v2938 = vpop.f32.mrb[0].mxu0
      %v2939 = vadd.f32 0.0, %v2938
      %v2940 = vpop.f32.mrb[0].mxu0
      %2941 = vmatprep.mubr.bf16.mxu0 %v1951
      %2942 = vmatmul.mubr.bf16.gmra.mrb[0].mxu0 %v1851
      %v2943 = vpop.f32.mrb[0].mxu0
      %v2944 = vadd.f32 0.0, %v2943
      %v2945 = vpop.f32.mrb[0].mxu0
      %v2946 = vpop.f32.mrb[0].mxu0
      %v2947 = vadd.f32 0.0, %v2946
      %v2948 = vpop.f32.mrb[0].mxu0
      %2949 = vmatprep.mubr.bf16.mxu0 %v1954
      %2950 = vmatmul.mubr.bf16.gmra.mrb[0].mxu0 %v1853
      %v2951 = vpop.f32.mrb[0].mxu0
      %v2952 = vadd.f32 0.0, %v2951
      %v2953 = vpop.f32.mrb[0].mxu0
      %v2954 = vpop.f32.mrb[0].mxu0
      %v2955 = vadd.f32 0.0, %v2954
      %v2956 = vpop.f32.mrb[0].mxu0
      %2957 = vmatprep.mubr.bf16.mxu0 %v1957
      %2958 = vmatmul.mubr.bf16.gmra.mrb[0].mxu0 %v1855
      %v2959 = vpop.f32.mrb[0].mxu0
      %v2960 = vadd.f32 0.0, %v2959
      %v2961 = vpop.f32.mrb[0].mxu0
      %v2962 = vpop.f32.mrb[0].mxu0
      %v2963 = vadd.f32 0.0, %v2962
      %v2964 = vpop.f32.mrb[0].mxu0
      %2965 = vmatprep.mubr.bf16.mxu0 %v1960
      %2966 = vmatmul.mubr.bf16.gmra.mrb[0].mxu0 %v1857
      %v2967 = vpop.f32.mrb[0].mxu0
      %v2968 = vadd.f32 0.0, %v2967
      %v2969 = vpop.f32.mrb[0].mxu0
      %v2970 = vpop.f32.mrb[0].mxu0
      %v2971 = vadd.f32 0.0, %v2970
      %v2972 = vpop.f32.mrb[0].mxu0
      %2973 = vmatprep.mubr.bf16.mxu0 %v1963
      %2974 = vmatmul.mubr.bf16.gmra.mrb[0].mxu0 %v1859
      %v2975 = vpop.f32.mrb[0].mxu0
      %v2976 = vadd.f32 0.0, %v2975
      %v2977 = vpop.f32.mrb[0].mxu0
      %v2978 = vpop.f32.mrb[0].mxu0
      %v2979 = vadd.f32 0.0, %v2978
      %v2980 = vpop.f32.mrb[0].mxu0
      %2981 = vmatprep.mubr.bf16.mxu0 %v1966
      %2982 = vmatmul.mubr.bf16.gmra.mrb[0].mxu0 %v1861
      %v2983 = vpop.f32.mrb[0].mxu0
      %v2984 = vadd.f32 0.0, %v2983
      %v2985 = vpop.f32.mrb[0].mxu0
      %v2986 = vpop.f32.mrb[0].mxu0
      %v2987 = vadd.f32 0.0, %v2986
      %v2988 = vpop.f32.mrb[0].mxu0
      %2989 = vdwg.mxu0
      %v2990 = vadd.f32 %v2674, %v2872
      %v2991 = vadd.f32 %v2677, %v2875
      %v2992 = vadd.f32 %v2682, %v2880
      %v2993 = vadd.f32 %v2685, %v2883
      %v2994 = vadd.f32 %v2690, %v2888
      %v2995 = vadd.f32 %v2693, %v2891
      %v2996 = vadd.f32 %v2698, %v2896
      %v2997 = vadd.f32 %v2701, %v2899
      %v2998 = vadd.f32 %v2706, %v2904
      %v2999 = vadd.f32 %v2709, %v2907
      %v3000 = vadd.f32 %v2714, %v2912
      %v3001 = vadd.f32 %v2717, %v2915
      %v3002 = vadd.f32 %v2722, %v2920
      %v3003 = vadd.f32 %v2725, %v2923
      %v3004 = vadd.f32 %v2730, %v2928
      %v3005 = vadd.f32 %v2733, %v2931
      %v3006 = vadd.f32 %v2738, %v2936
      %v3007 = vadd.f32 %v2741, %v2939
      %v3008 = vadd.f32 %v2746, %v2944
      %v3009 = vadd.f32 %v2749, %v2947
      %v3010 = vadd.f32 %v2754, %v2952
      %v3011 = vadd.f32 %v2757, %v2955
      %v3012 = vadd.f32 %v2762, %v2960
      %v3013 = vadd.f32 %v2765, %v2963
      %v3014 = vadd.f32 %v2770, %v2968
      %v3015 = vadd.f32 %v2773, %v2971
      %v3016 = vadd.f32 %v2778, %v2976
      %v3017 = vadd.f32 %v2781, %v2979
      %v3018 = vadd.f32 %v2786, %v2984
      %v3019 = vadd.f32 %v2789, %v2987
      %v3020 = vld [vmem:[%s4] sm:$0xff]
      %v3021 = vld [vmem:[%s4 + $0x8] sm:$0xff]
      %v3022 = vld [vmem:[%s4 + $0x10] sm:$0xff]
      %v3023 = vld [vmem:[%s4 + $0x18] sm:$0xff]
      %v3024 = vld [vmem:[%s4 + $0x20] sm:$0xff]
      %v3025 = vld [vmem:[%s4 + $0x28] sm:$0xff]
      %v3026 = vld [vmem:[%s4 + $0x30] sm:$0xff]
      %v3027 = vld [vmem:[%s4 + $0x38] sm:$0xff]
      %v3028 = vld [vmem:[%s4 + $0x40] sm:$0xff]
      %v3029 = vld [vmem:[%s4 + $0x48] sm:$0xff]
      %v3030 = vpack.c.bf16 %v2991, %v2990
      %v3031 = vpack.c.bf16 %v2993, %v2992
      %v3032 = vpack.c.bf16 %v2995, %v2994
      %v3033 = vpack.c.bf16 %v2997, %v2996
      %v3034 = vpack.c.bf16 %v2999, %v2998
      %v3035 = vpack.c.bf16 %v3001, %v3000
      %v3036 = vpack.c.bf16 %v3003, %v3002
      %v3037 = vpack.c.bf16 %v3005, %v3004
      %v3038 = vpack.c.bf16 %v3007, %v3006
      %v3039 = vpack.c.bf16 %v3009, %v3008
      %v3040 = vpack.c.bf16 %v3011, %v3010
      %v3041 = vpack.c.bf16 %v3013, %v3012
      %v3042 = vpack.c.bf16 %v3015, %v3014
      %v3043 = vpack.c.bf16 %v3017, %v3016
      %v3044 = vpack.c.bf16 %v3019, %v3018
      %v3055 = vunpack.c.l.b16 %v3020
      %v3056 = vunpack.c.h.b16 %v3020
      %v3057 = vunpack.c.l.b16 %v3021
      %v3058 = vunpack.c.h.b16 %v3021
      %v3059 = vunpack.c.l.b16 %v3022
      %v3060 = vunpack.c.h.b16 %v3022
      %v3061 = vunpack.c.l.b16 %v3023
      %v3062 = vunpack.c.h.b16 %v3023
      %v3063 = vunpack.c.l.b16 %v3024
      %v3064 = vunpack.c.h.b16 %v3024
      %v3065 = vunpack.c.l.b16 %v3025
      %v3066 = vunpack.c.h.b16 %v3025
      %v3067 = vunpack.c.l.b16 %v3026
      %v3068 = vunpack.c.h.b16 %v3026
      %v3069 = vunpack.c.l.b16 %v3027
      %v3070 = vunpack.c.h.b16 %v3027
      %v3071 = vunpack.c.l.b16 %v3028
      %v3072 = vunpack.c.h.b16 %v3028
      %v3073 = vunpack.c.l.b16 %v3029
      %v3074 = vunpack.c.h.b16 %v3029
      %v3075 = vpack.c.b16 %v3057, %v3055
      %v3076 = vpack.c.b16 %v3058, %v3056
      %v3077 = vpack.c.b16 %v3061, %v3059
      %v3078 = vpack.c.b16 %v3062, %v3060
      %v3079 = vpack.c.b16 %v3065, %v3063
      %v3080 = vpack.c.b16 %v3066, %v3064
      %v3081 = vpack.c.b16 %v3069, %v3067
      %v3082 = vpack.c.b16 %v3070, %v3068
      %v3083 = vpack.c.b16 %v3073, %v3071
      %v3084 = vpack.c.b16 %v3074, %v3072
      %v3091 = vsel %vm1180, %v3076, 0
      %v3094 = vsel %vm1180, %v3078, 0
      %v3097 = vsel %vm1180, %v3080, 0
      %v3100 = vsel %vm1180, %v3082, 0
      %v3103 = vsel %vm1180, %v3084, 0
      %3105 = vmatprep.subr.bf16.mxu0 0
      %3106 = vmatpush1.bf16.msra.mxu0 %v3030
      %3107 = vmatprep.subr.bf16.mxu0 0
      %3108 = vmatpush1.bf16.msra.mxu0 %v3031
      %3109 = vmatprep.subr.bf16.mxu0 0
      %3110 = vmatpush1.bf16.msra.mxu0 %v3032
      %3111 = vmatprep.subr.bf16.mxu0 0
      %3112 = vmatpush1.bf16.msra.mxu0 %v3033
      %3113 = vmatprep.subr.bf16.mxu0 0
      %3114 = vmatpush1.bf16.msra.mxu0 %v3034
      %3115 = vmatprep.subr.bf16.mxu0 0
      %3116 = vmatpush1.bf16.msra.mxu0 %v3035
      %3117 = vmatprep.subr.bf16.mxu0 0
      %3118 = vmatpush1.bf16.msra.mxu0 %v3036
      %3119 = vmatprep.subr.bf16.mxu0 0
      %3120 = vmatpush1.bf16.msra.mxu0 %v3037
      %3121 = vmatprep.subr.bf16.mxu0 0
      %3122 = vmatpush1.bf16.msra.mxu0 %v3038
      %3123 = vmatprep.subr.bf16.mxu0 0
      %3124 = vmatpush1.bf16.msra.mxu0 %v3039
      %3125 = vmatprep.subr.bf16.mxu0 0
      %3126 = vmatpush1.bf16.msra.mxu0 %v3040
      %3127 = vmatprep.subr.bf16.mxu0 0
      %3128 = vmatpush1.bf16.msra.mxu0 %v3041
      %3129 = vmatprep.subr.bf16.mxu0 0
      %3130 = vmatpush1.bf16.msra.mxu0 %v3042
      %3131 = vmatprep.subr.bf16.mxu0 0
      %3132 = vmatpush1.bf16.msra.mxu0 %v3043
      %3133 = vmatprep.subr.bf16.mxu0 0
      %3134 = vmatpush1.bf16.msra.mxu0 %v3044
      %3135 = vmatprep.subr.bf16.mxu0 0
      %3136 = vmatpush1.bf16.msra.mxu0 0
      %3137 = vmatprep.mubr.bf16.mxu0 %v3091
      %3138 = vmatmul.mubr.bf16.gmra.mrb[0].mxu0 %v3075
      %v3139 = vpop.f32.mrb[0].mxu0
      %v3140 = vadd.f32 0.0, %v3139
      %v3141 = vpop.f32.mrb[0].mxu0
      %v3142 = vpop.f32.mrb[0].mxu0
      %v3143 = vadd.f32 0.0, %v3142
      %v3144 = vpop.f32.mrb[0].mxu0
      %3145 = vmatprep.mubr.bf16.mxu0 %v3094
      %3146 = vmatmul.mubr.bf16.gmra.mrb[0].mxu0 %v3077
      %v3147 = vpop.f32.mrb[0].mxu0
      %v3148 = vadd.f32 0.0, %v3147
      %v3149 = vpop.f32.mrb[0].mxu0
      %v3150 = vpop.f32.mrb[0].mxu0
      %v3151 = vadd.f32 0.0, %v3150
      %v3152 = vpop.f32.mrb[0].mxu0
      %3153 = vmatprep.mubr.bf16.mxu0 %v3097
      %3154 = vmatmul.mubr.bf16.gmra.mrb[0].mxu0 %v3079
      %v3155 = vpop.f32.mrb[0].mxu0
      %v3156 = vadd.f32 0.0, %v3155
      %v3157 = vpop.f32.mrb[0].mxu0
      %v3158 = vpop.f32.mrb[0].mxu0
      %v3159 = vadd.f32 0.0, %v3158
      %v3160 = vpop.f32.mrb[0].mxu0
      %3161 = vmatprep.mubr.bf16.mxu0 %v3100
      %3162 = vmatmul.mubr.bf16.gmra.mrb[0].mxu0 %v3081
      %v3163 = vpop.f32.mrb[0].mxu0
      %v3164 = vadd.f32 0.0, %v3163
      %v3165 = vpop.f32.mrb[0].mxu0
      %v3166 = vpop.f32.mrb[0].mxu0
      %v3167 = vadd.f32 0.0, %v3166
      %v3168 = vpop.f32.mrb[0].mxu0
      %3169 = vmatprep.mubr.bf16.mxu0 %v3103
      %3170 = vmatmul.mubr.bf16.gmra.mrb[0].mxu0 %v3083
      %v3171 = vpop.f32.mrb[0].mxu0
      %v3172 = vadd.f32 0.0, %v3171
      %v3173 = vpop.f32.mrb[0].mxu0
      %v3174 = vpop.f32.mrb[0].mxu0
      %v3175 = vadd.f32 0.0, %v3174
      %v3176 = vpop.f32.mrb[0].mxu0
      %3177 = vdwg.mxu0
      %3178 = vst.msk [vmem:[#allocation2] sm:$0xff] %vm2212, %v3156
      %3179 = vst.msk [vmem:[#allocation2 + $0x8] sm:$0xff] %vm2212, %v3159
      %vm3180 = vcmask 259072
      %3181 = vst.msk [vmem:[#allocation2 + $0x10] sm:$0x3f] %vm3180, %v3164
      %3185 = vrot.lane.b32.xlu0 %v3167, 32
      %v3186 = vpop.permute.xlu0 %3185
      %3187 = vrot.lane.b32.xlu0 %v3172, 32
      %v3188 = vpop.permute.xlu0 %3187
      %3189 = vrot.lane.b32.xlu0 %v3175, 32
      %v3190 = vpop.permute.xlu0 %3189
      %vm3194 = vcmask 523520
      %3195 = vst.msk [vmem:[#allocation2] sm:$0xff] %vm3194, %v3186
      %3196 = vst.msk [vmem:[#allocation2 + $0x8] sm:$0xff] %vm3194, %v3188
      %vm3197 = vcmask 521472
      %3198 = vst.msk [vmem:[#allocation2 + $0x10] sm:$0x3f] %vm3197, %v3190
      %3202 = vrot.lane.b32.xlu0 %v3143, 64
      %v3203 = vpop.permute.xlu0 %3202
      %3204 = vrot.lane.b32.xlu0 %v3148, 64
      %v3205 = vpop.permute.xlu0 %3204
      %3206 = vrot.lane.b32.xlu0 %v3151, 64
      %v3207 = vpop.permute.xlu0 %3206
      %vm3211 = vcmask 785920
      %3212 = vst.msk [vmem:[#allocation2] sm:$0xff] %vm3211, %v3203
      %3213 = vst.msk [vmem:[#allocation2 + $0x8] sm:$0xff] %vm3211, %v3205
      %vm3214 = vcmask 783872
      %3215 = vst.msk [vmem:[#allocation2 + $0x10] sm:$0x3f] %vm3214, %v3207
      %v3216 = vpack.c.bf16 %v3140, %v3140
      %v3217 = vld [vmem:[%s7] sm:$0xf]
      %v3218 = vld [vmem:[%s7 + $0x4] sm:$0xf]
      %v3219 = vld [vmem:[%s7 + $0x8] sm:$0xf]
      %v3220 = vld [vmem:[%s7 + $0xc] sm:$0xf]
      %v3221 = vld [vmem:[%s8] sm:$0x1]
      %v3223 = vlaneseq
      %v3224 = vshrl.u32 %v3223, 7
      %v3225 = vsub.s32 0, %v3224
      %v3226 = vrot.slane %v3221, %v3225
      %v3232 = vunpack.c.l.b16 %v3217
      %v3233 = vunpack.c.l.b16 %v3218
      %v3234 = vunpack.c.l.b16 %v3219
      %v3235 = vunpack.c.l.b16 %v3220
      %v3236 = vpack.c.b16 %v3233, %v3232
      %v3237 = vpack.c.b16 %v3235, %v3234
      %v3241 = vsel %vm2212, %v3216, 0
      %3243 = vmatprep.subr.bf16.mxu0 0
      %3244 = vmatpush1.bf16.msra.mxu0 %v3236
      %3245 = vmatprep.subr.bf16.mxu0 0
      %3246 = vmatpush1.bf16.msra.mxu0 %v3237
      %3247 = vmatprep.subr.bf16.mxu0 0
      %3248 = vmatpush1.bf16.msra.mxu0 0
      %3249 = vmatprep.subr.bf16.mxu0 0
      %3250 = vmatpush1.bf16.msra.mxu0 0
      %3251 = vmatprep.subr.bf16.mxu0 0
      %3252 = vmatpush1.bf16.msra.mxu0 0
      %3253 = vmatprep.subr.bf16.mxu0 0
      %3254 = vmatpush1.bf16.msra.mxu0 0
      %3255 = vmatprep.subr.bf16.mxu0 0
      %3256 = vmatpush1.bf16.msra.mxu0 0
      %3257 = vmatprep.subr.bf16.mxu0 0
      %3258 = vmatpush1.bf16.msra.mxu0 0
      %3259 = vmatprep.subr.bf16.mxu0 0
      %3260 = vmatpush1.bf16.msra.mxu0 0
      %3261 = vmatprep.subr.bf16.mxu0 0
      %3262 = vmatpush1.bf16.msra.mxu0 0
      %3263 = vmatprep.subr.bf16.mxu0 0
      %3264 = vmatpush1.bf16.msra.mxu0 0
      %3265 = vmatprep.subr.bf16.mxu0 0
      %3266 = vmatpush1.bf16.msra.mxu0 0
      %3267 = vmatprep.subr.bf16.mxu0 0
      %3268 = vmatpush1.bf16.msra.mxu0 0
      %3269 = vmatprep.subr.bf16.mxu0 0
      %3270 = vmatpush1.bf16.msra.mxu0 0
      %3271 = vmatprep.subr.bf16.mxu0 0
      %3272 = vmatpush1.bf16.msra.mxu0 0
      %3273 = vmatprep.subr.bf16.mxu0 0
      %3274 = vmatpush1.bf16.msra.mxu0 0
      %3275 = vmatprep.mubr.bf16.mxu0 0
      %3276 = vmatmul.mubr.bf16.gmra.mrb[0].mxu0 %v3241
      %v3277 = vpop.f32.mrb[0].mxu0
      %v3278 = vadd.f32 %v3226, %v3277
      %v3279 = vpop.f32.mrb[0].mxu0
      %v3280 = vpop.f32.mrb[0].mxu0
      %v3281 = vpop.f32.mrb[0].mxu0
      %3282 = vdwg.mxu0
      %v3283 = vtanh.pop %v3278
      %v3284 = vpack.c.bf16 %v3283, %v3283
      %v3285 = vld [vmem:[%s9] sm:$0xf]
      %v3286 = vld [vmem:[%s9 + $0x4] sm:$0xf]
      %v3287 = vld [vmem:[%s9 + $0x8] sm:$0xf]
      %v3288 = vld [vmem:[%s9 + $0xc] sm:$0xf]
      %v3289 = vld [vmem:[%s9 + $0x10] sm:$0xf]
      %v3290 = vld [vmem:[%s9 + $0x14] sm:$0xf]
      %v3291 = vld [vmem:[%s9 + $0x18] sm:$0xf]
      %v3292 = vld [vmem:[%s9 + $0x1c] sm:$0xf]
      %v3293 = vld [vmem:[%s10] sm:$0x1]
      %v3295 = vlaneseq
      %v3296 = vshrl.u32 %v3295, 7
      %v3297 = vsub.s32 0, %v3296
      %v3298 = vrot.slane %v3293, %v3297
      %v3308 = vunpack.c.l.b16 %v3285
      %v3309 = vunpack.c.l.b16 %v3286
      %v3310 = vunpack.c.l.b16 %v3287
      %v3311 = vunpack.c.l.b16 %v3288
      %v3312 = vunpack.c.l.b16 %v3289
      %v3313 = vunpack.c.l.b16 %v3290
      %v3314 = vunpack.c.l.b16 %v3291
      %v3315 = vunpack.c.l.b16 %v3292
      %v3316 = vpack.c.b16 %v3309, %v3308
      %v3317 = vpack.c.b16 %v3311, %v3310
      %v3318 = vpack.c.b16 %v3313, %v3312
      %v3319 = vpack.c.b16 %v3315, %v3314
      %vm3324 = vcmask 523264
      %v3326 = vsel %vm3324, %v3284, 0
      %3328 = vmatprep.subr.bf16.mxu0 0
      %3329 = vmatpush1.bf16.msra.mxu0 %v3316
      %3330 = vmatprep.subr.bf16.mxu0 0
      %3331 = vmatpush1.bf16.msra.mxu0 %v3317
      %3332 = vmatprep.subr.bf16.mxu0 0
      %3333 = vmatpush1.bf16.msra.mxu0 %v3318
      %3334 = vmatprep.subr.bf16.mxu0 0
      %3335 = vmatpush1.bf16.msra.mxu0 %v3319
      %3336 = vmatprep.subr.bf16.mxu0 0
      %3337 = vmatpush1.bf16.msra.mxu0 0
      %3338 = vmatprep.subr.bf16.mxu0 0
      %3339 = vmatpush1.bf16.msra.mxu0 0
      %3340 = vmatprep.subr.bf16.mxu0 0
      %3341 = vmatpush1.bf16.msra.mxu0 0
      %3342 = vmatprep.subr.bf16.mxu0 0
      %3343 = vmatpush1.bf16.msra.mxu0 0
      %3344 = vmatprep.subr.bf16.mxu0 0
      %3345 = vmatpush1.bf16.msra.mxu0 0
      %3346 = vmatprep.subr.bf16.mxu0 0
      %3347 = vmatpush1.bf16.msra.mxu0 0
      %3348 = vmatprep.subr.bf16.mxu0 0
      %3349 = vmatpush1.bf16.msra.mxu0 0
      %3350 = vmatprep.subr.bf16.mxu0 0
      %3351 = vmatpush1.bf16.msra.mxu0 0
      %3352 = vmatprep.subr.bf16.mxu0 0
      %3353 = vmatpush1.bf16.msra.mxu0 0
      %3354 = vmatprep.subr.bf16.mxu0 0
      %3355 = vmatpush1.bf16.msra.mxu0 0
      %3356 = vmatprep.subr.bf16.mxu0 0
      %3357 = vmatpush1.bf16.msra.mxu0 0
      %3358 = vmatprep.subr.bf16.mxu0 0
      %3359 = vmatpush1.bf16.msra.mxu0 0
      %3360 = vmatprep.mubr.bf16.mxu0 0
      %3361 = vmatmul.mubr.bf16.gmra.mrb[0].mxu0 %v3326
      %v3362 = vpop.f32.mrb[0].mxu0
      %v3363 = vadd.f32 %v3298, %v3362
      %v3364 = vpop.f32.mrb[0].mxu0
      %v3365 = vpop.f32.mrb[0].mxu0
      %v3366 = vpop.f32.mrb[0].mxu0
      %3367 = vdwg.mxu0
      %v3368 = vld [vmem:[#allocation2] sm:$0xff]
      %v3369 = vld [vmem:[#allocation2 + $0x8] sm:$0xff]
      %v3370 = vld [vmem:[#allocation2 + $0x10] sm:$0x3f]
      %v3371 = vpack.c.bf16 %v3369, %v3368
      %v3372 = vpack.c.bf16 %v3370, %v3370
      %v3373 = vld [vmem:[%s11] sm:$0xf]
      %v3374 = vld [vmem:[%s11 + $0x4] sm:$0xf]
      %v3375 = vld [vmem:[%s11 + $0x8] sm:$0xf]
      %v3376 = vld [vmem:[%s11 + $0xc] sm:$0xf]
      %v3377 = vld [vmem:[%s11 + $0x10] sm:$0xf]
      %v3378 = vld [vmem:[%s11 + $0x14] sm:$0xf]
      %v3379 = vld [vmem:[%s11 + $0x18] sm:$0xf]
      %v3380 = vld [vmem:[%s11 + $0x1c] sm:$0xf]
      %v3381 = vld [vmem:[%s11 + $0x20] sm:$0xf]
      %v3382 = vld [vmem:[%s11 + $0x24] sm:$0xf]
      %v3383 = vld [vmem:[%s11 + $0x28] sm:$0xf]
      %v3384 = vld [vmem:[%s11 + $0x2c] sm:$0xf]
      %v3385 = vld [vmem:[%s12] sm:$0x1]
      %v3387 = vlaneseq
      %v3388 = vshrl.u32 %v3387, 7
      %v3389 = vsub.s32 0, %v3388
      %v3390 = vrot.slane %v3385, %v3389
      %v3404 = vunpack.c.l.b16 %v3373
      %v3405 = vunpack.c.l.b16 %v3374
      %v3406 = vunpack.c.l.b16 %v3375
      %v3407 = vunpack.c.l.b16 %v3376
      %v3408 = vunpack.c.l.b16 %v3377
      %v3409 = vunpack.c.l.b16 %v3378
      %v3410 = vunpack.c.l.b16 %v3379
      %v3411 = vunpack.c.l.b16 %v3380
      %v3412 = vunpack.c.l.b16 %v3381
      %v3413 = vunpack.c.l.b16 %v3382
      %v3414 = vunpack.c.l.b16 %v3383
      %v3415 = vunpack.c.l.b16 %v3384
      %v3416 = vpack.c.b16 %v3405, %v3404
      %v3417 = vpack.c.b16 %v3407, %v3406
      %v3418 = vpack.c.b16 %v3409, %v3408
      %v3419 = vpack.c.b16 %v3411, %v3410
      %v3420 = vpack.c.b16 %v3413, %v3412
      %v3421 = vpack.c.b16 %v3415, %v3414
      %vm3428 = vcmask 785408
      %v3430 = vsel %vm3428, %v3371, 0
      %v3433 = vsel %vm3428, %v3372, 0
      %3435 = vmatprep.subr.bf16.mxu0 0
      %3436 = vmatpush1.bf16.msra.mxu0 %v3416
      %3437 = vmatprep.subr.bf16.mxu0 0
      %3438 = vmatpush1.bf16.msra.mxu0 %v3417
      %3439 = vmatprep.subr.bf16.mxu0 0
      %3440 = vmatpush1.bf16.msra.mxu0 %v3418
      %3441 = vmatprep.subr.bf16.mxu0 0
      %3442 = vmatpush1.bf16.msra.mxu0 %v3419
      %3443 = vmatprep.subr.bf16.mxu0 0
      %3444 = vmatpush1.bf16.msra.mxu0 %v3420
      %3445 = vmatprep.subr.bf16.mxu0 0
      %3446 = vmatpush1.bf16.msra.mxu0 %v3421
      %3447 = vmatprep.subr.bf16.mxu0 0
      %3448 = vmatpush1.bf16.msra.mxu0 0
      %3449 = vmatprep.subr.bf16.mxu0 0
      %3450 = vmatpush1.bf16.msra.mxu0 0
      %3451 = vmatprep.subr.bf16.mxu0 0
      %3452 = vmatpush1.bf16.msra.mxu0 0
      %3453 = vmatprep.subr.bf16.mxu0 0
      %3454 = vmatpush1.bf16.msra.mxu0 0
      %3455 = vmatprep.subr.bf16.mxu0 0
      %3456 = vmatpush1.bf16.msra.mxu0 0
      %3457 = vmatprep.subr.bf16.mxu0 0
      %3458 = vmatpush1.bf16.msra.mxu0 0
      %3459 = vmatprep.subr.bf16.mxu0 0
      %3460 = vmatpush1.bf16.msra.mxu0 0
      %3461 = vmatprep.subr.bf16.mxu0 0
      %3462 = vmatpush1.bf16.msra.mxu0 0
      %3463 = vmatprep.subr.bf16.mxu0 0
      %3464 = vmatpush1.bf16.msra.mxu0 0
      %3465 = vmatprep.subr.bf16.mxu0 0
      %3466 = vmatpush1.bf16.msra.mxu0 0
      %3467 = vmatprep.mubr.bf16.mxu0 0
      %3468 = vmatmul.mubr.bf16.gmra.mrb[0].mxu0 %v3430
      %v3469 = vpop.f32.mrb[0].mxu0
      %v3470 = vadd.f32 %v3390, %v3469
      %v3471 = vpop.f32.mrb[0].mxu0
      %v3472 = vpop.f32.mrb[0].mxu0
      %v3473 = vadd.f32 %v3390, %v3472
      %v3474 = vpop.f32.mrb[0].mxu0
      %3475 = vmatprep.mubr.bf16.mxu0 0
      %3476 = vmatmul.mubr.bf16.gmra.mrb[0].mxu0 %v3433
      %v3477 = vpop.f32.mrb[0].mxu0
      %v3478 = vadd.f32 %v3390, %v3477
      %v3479 = vpop.f32.mrb[0].mxu0
      %v3480 = vpop.f32.mrb[0].mxu0
      %v3481 = vpop.f32.mrb[0].mxu0
      %3482 = vdwg.mxu0
      %v3483 = vtanh.pop %v3470
      %v3484 = vtanh.pop %v3473
      %v3485 = vtanh.pop %v3478
      %v3486 = vpack.c.bf16 %v3484, %v3483
      %v3487 = vpack.c.bf16 %v3485, %v3485
      %v3488 = vld [vmem:[%s13] sm:$0xf]
      %v3489 = vld [vmem:[%s13 + $0x4] sm:$0xf]
      %v3490 = vld [vmem:[%s13 + $0x8] sm:$0xf]
      %v3491 = vld [vmem:[%s13 + $0xc] sm:$0xf]
      %v3492 = vld [vmem:[%s13 + $0x10] sm:$0xf]
      %v3493 = vld [vmem:[%s13 + $0x14] sm:$0xf]
      %v3494 = vld [vmem:[%s13 + $0x18] sm:$0xf]
      %v3495 = vld [vmem:[%s13 + $0x1c] sm:$0xf]
      %v3496 = vld [vmem:[%s14] sm:$0x1]
      %v3498 = vlaneseq
      %v3499 = vshrl.u32 %v3498, 7
      %v3500 = vsub.s32 0, %v3499
      %v3501 = vrot.slane %v3496, %v3500
      %v3511 = vunpack.c.l.b16 %v3488
      %v3512 = vunpack.c.l.b16 %v3489
      %v3513 = vunpack.c.l.b16 %v3490
      %v3514 = vunpack.c.l.b16 %v3491
      %v3515 = vunpack.c.l.b16 %v3492
      %v3516 = vunpack.c.l.b16 %v3493
      %v3517 = vunpack.c.l.b16 %v3494
      %v3518 = vunpack.c.l.b16 %v3495
      %v3519 = vpack.c.b16 %v3512, %v3511
      %v3520 = vpack.c.b16 %v3514, %v3513
      %v3521 = vpack.c.b16 %v3516, %v3515
      %v3522 = vpack.c.b16 %v3518, %v3517
      %v3528 = vsel %vm3324, %v3486, 0
      %v3531 = vsel %vm3324, %v3487, 0
      %3533 = vmatprep.subr.bf16.mxu0 0
      %3534 = vmatpush1.bf16.msra.mxu0 %v3519
      %3535 = vmatprep.subr.bf16.mxu0 0
      %3536 = vmatpush1.bf16.msra.mxu0 %v3520
      %3537 = vmatprep.subr.bf16.mxu0 0
      %3538 = vmatpush1.bf16.msra.mxu0 %v3521
      %3539 = vmatprep.subr.bf16.mxu0 0
      %3540 = vmatpush1.bf16.msra.mxu0 %v3522
      %3541 = vmatprep.subr.bf16.mxu0 0
      %3542 = vmatpush1.bf16.msra.mxu0 0
      %3543 = vmatprep.subr.bf16.mxu0 0
      %3544 = vmatpush1.bf16.msra.mxu0 0
      %3545 = vmatprep.subr.bf16.mxu0 0
      %3546 = vmatpush1.bf16.msra.mxu0 0
      %3547 = vmatprep.subr.bf16.mxu0 0
      %3548 = vmatpush1.bf16.msra.mxu0 0
      %3549 = vmatprep.subr.bf16.mxu0 0
      %3550 = vmatpush1.bf16.msra.mxu0 0
      %3551 = vmatprep.subr.bf16.mxu0 0
      %3552 = vmatpush1.bf16.msra.mxu0 0
      %3553 = vmatprep.subr.bf16.mxu0 0
      %3554 = vmatpush1.bf16.msra.mxu0 0
      %3555 = vmatprep.subr.bf16.mxu0 0
      %3556 = vmatpush1.bf16.msra.mxu0 0
      %3557 = vmatprep.subr.bf16.mxu0 0
      %3558 = vmatpush1.bf16.msra.mxu0 0
      %3559 = vmatprep.subr.bf16.mxu0 0
      %3560 = vmatpush1.bf16.msra.mxu0 0
      %3561 = vmatprep.subr.bf16.mxu0 0
      %3562 = vmatpush1.bf16.msra.mxu0 0
      %3563 = vmatprep.subr.bf16.mxu0 0
      %3564 = vmatpush1.bf16.msra.mxu0 0
      %3565 = vmatprep.mubr.bf16.mxu0 0
      %3566 = vmatmul.mubr.bf16.gmra.mrb[0].mxu0 %v3528
      %v3567 = vpop.f32.mrb[0].mxu0
      %v3568 = vadd.f32 %v3501, %v3567
      %v3569 = vpop.f32.mrb[0].mxu0
      %v3570 = vpop.f32.mrb[0].mxu0
      %v3571 = vadd.f32 %v3501, %v3570
      %v3572 = vpop.f32.mrb[0].mxu0
      %3573 = vmatprep.mubr.bf16.mxu0 0
      %3574 = vmatmul.mubr.bf16.gmra.mrb[0].mxu0 %v3531
      %v3575 = vpop.f32.mrb[0].mxu0
      %v3576 = vadd.f32 %v3501, %v3575
      %v3577 = vpop.f32.mrb[0].mxu0
      %v3578 = vpop.f32.mrb[0].mxu0
      %v3579 = vpop.f32.mrb[0].mxu0
      %3580 = vdwg.mxu0
      %v3581 = vld [vmem:[%s575] sm:$0xff]
      %v3582 = vsel %vm703, %v3581, -inf
      %3583 = vmax.xlane.f32.xlu0 %v3582
      %v3584 = vpop.xlane.xlu0 %3583
      %v3585 = vlaneseq
      %v3586 = vand.u32 %v3585, 127
      %vm3587 = vcmp.ge.f32.partialorder %v3581, %v3584
      %v3588 = vsel %vm3587, %v3586, 9
      %v3589 = vsel %vm703, %v3588, 2147483647
      %v3590 = vand.u32 %v3589, 65535
      %v3591 = vshra.s32 %v3589, 16
      %v3592 = vcvt.s32.f32 %v3590
      %v3593 = vcvt.s32.f32 %v3591
      %3594 = vmin.xlane.f32.xlu0 %v3593
      %v3595 = vpop.xlane.xlu0 %3594
      %vm3596 = vcmp.eq.f32.partialorder %v3593, %v3595
      %v3597 = vsel %vm3596, %v3592, inf
      %3598 = vmin.xlane.f32.xlu0 %v3597
      %v3599 = vpop.xlane.xlu0 %3598
      %v3600 = vcvt.f32.s32 %v3599
      %v3601 = vcvt.f32.s32 %v3595
      %v3602 = vshll.u32 %v3601, 16
      %v3603 = vadd.s32 %v3602, %v3600
      %v3604 = vld [vmem:[%s580] sm:$0xff]
      %v3605 = vld [vmem:[%s580 + $0x8] sm:$0xff]
      %v3606 = vld [vmem:[%s580 + $0x10] sm:$0x3f]
      %vm3607 = vcmask 31744
      %v3608 = vsel %vm3607, %v3604, -inf
      %3609 = vmax.xlane.f32.xlu0 %v3608
      %v3610 = vpop.xlane.xlu0 %3609
      %v3611 = vsel %vm3607, %v3605, -inf
      %3612 = vmax.xlane.f32.xlu0 %v3611
      %v3613 = vpop.xlane.xlu0 %3612
      %vm3614 = vcmask 29696
      %v3615 = vsel %vm3614, %v3606, -inf
      %3616 = vmax.xlane.f32.xlu0 %v3615
      %v3617 = vpop.xlane.xlu0 %3616
      %vm3618 = vcmp.ge.f32.partialorder %v3604, %v3610
      %vm3619 = vcmp.ge.f32.partialorder %v3605, %v3613
      %vm3620 = vcmp.ge.f32.partialorder %v3606, %v3617
      %v3621 = vsel %vm3618, %v3586, 4
      %v3622 = vsel %vm3619, %v3586, 4
      %v3623 = vsel %vm3620, %v3586, 4
      %v3624 = vsel %vm3607, %v3621, 2147483647
      %v3625 = vand.u32 %v3624, 65535
      %v3626 = vshra.s32 %v3624, 16
      %v3627 = vcvt.s32.f32 %v3625
      %v3628 = vcvt.s32.f32 %v3626
      %3629 = vmin.xlane.f32.xlu0 %v3628
      %v3630 = vpop.xlane.xlu0 %3629
      %vm3631 = vcmp.eq.f32.partialorder %v3628, %v3630
      %v3632 = vsel %vm3631, %v3627, inf
      %3633 = vmin.xlane.f32.xlu0 %v3632
      %v3634 = vpop.xlane.xlu0 %3633
      %v3635 = vcvt.f32.s32 %v3634
      %v3636 = vcvt.f32.s32 %v3630
      %v3637 = vshll.u32 %v3636, 16
      %v3638 = vadd.s32 %v3637, %v3635
      %v3639 = vsel %vm3607, %v3622, 2147483647
      %v3640 = vand.u32 %v3639, 65535
      %v3641 = vshra.s32 %v3639, 16
      %v3642 = vcvt.s32.f32 %v3640
      %v3643 = vcvt.s32.f32 %v3641
      %3644 = vmin.xlane.f32.xlu0 %v3643
      %v3645 = vpop.xlane.xlu0 %3644
      %vm3646 = vcmp.eq.f32.partialorder %v3643, %v3645
      %v3647 = vsel %vm3646, %v3642, inf
      %3648 = vmin.xlane.f32.xlu0 %v3647
      %v3649 = vpop.xlane.xlu0 %3648
      %v3650 = vcvt.f32.s32 %v3649
      %v3651 = vcvt.f32.s32 %v3645
      %v3652 = vshll.u32 %v3651, 16
      %v3653 = vadd.s32 %v3652, %v3650
      %v3654 = vsel %vm3614, %v3623, 2147483647
      %v3655 = vand.u32 %v3654, 65535
      %v3656 = vshra.s32 %v3654, 16
      %v3657 = vcvt.s32.f32 %v3655
      %v3658 = vcvt.s32.f32 %v3656
      %3659 = vmin.xlane.f32.xlu0 %v3658
      %v3660 = vpop.xlane.xlu0 %3659
      %vm3661 = vcmp.eq.f32.partialorder %v3658, %v3660
      %v3662 = vsel %vm3661, %v3657, inf
      %3663 = vmin.xlane.f32.xlu0 %v3662
      %v3664 = vpop.xlane.xlu0 %3663
      %v3665 = vcvt.f32.s32 %v3664
      %v3666 = vcvt.f32.s32 %v3660
      %v3667 = vshll.u32 %v3666, 16
      %v3668 = vadd.s32 %v3667, %v3665
      %v3669 = vsel %vm703, %v3363, -inf
      %3670 = vmax.xlane.f32.xlu0 %v3669
      %v3671 = vpop.xlane.xlu0 %3670
      %vm3672 = vcmp.ge.f32.partialorder %v3363, %v3671
      %v3673 = vsel %vm3672, %v3586, 9
      %v3674 = vsel %vm703, %v3673, 2147483647
      %v3675 = vand.u32 %v3674, 65535
      %v3676 = vshra.s32 %v3674, 16
      %v3677 = vcvt.s32.f32 %v3675
      %v3678 = vcvt.s32.f32 %v3676
      %3679 = vmin.xlane.f32.xlu0 %v3678
      %v3680 = vpop.xlane.xlu0 %3679
      %vm3681 = vcmp.eq.f32.partialorder %v3678, %v3680
      %v3682 = vsel %vm3681, %v3677, inf
      %3683 = vmin.xlane.f32.xlu0 %v3682
      %v3684 = vpop.xlane.xlu0 %3683
      %v3685 = vcvt.f32.s32 %v3684
      %v3686 = vcvt.f32.s32 %v3680
      %v3687 = vshll.u32 %v3686, 16
      %v3688 = vadd.s32 %v3687, %v3685
      %v3689 = vadd.s32 %v3603, %v3688
      %vm3690 = vcmp.ge.s32.totalorder %v3689, 9
      %v3691 = vsub.s32 %v3689, 9
      %v3692 = vsel %vm3690, %v3691, %v3689
      %v3693 = vsel %vm3607, %v3568, -inf
      %3694 = vmax.xlane.f32.xlu0 %v3693
      %v3695 = vpop.xlane.xlu0 %3694
      %v3696 = vsel %vm3607, %v3571, -inf
      %3697 = vmax.xlane.f32.xlu0 %v3696
      %v3698 = vpop.xlane.xlu0 %3697
      %v3699 = vsel %vm3614, %v3576, -inf
      %3700 = vmax.xlane.f32.xlu0 %v3699
      %v3701 = vpop.xlane.xlu0 %3700
      %vm3702 = vcmp.ge.f32.partialorder %v3568, %v3695
      %vm3703 = vcmp.ge.f32.partialorder %v3571, %v3698
      %vm3704 = vcmp.ge.f32.partialorder %v3576, %v3701
      %v3705 = vsel %vm3702, %v3586, 4
      %v3706 = vsel %vm3703, %v3586, 4
      %v3707 = vsel %vm3704, %v3586, 4
      %v3708 = vsel %vm3607, %v3705, 2147483647
      %v3709 = vand.u32 %v3708, 65535
      %v3710 = vshra.s32 %v3708, 16
      %v3711 = vcvt.s32.f32 %v3709
      %v3712 = vcvt.s32.f32 %v3710
      %3713 = vmin.xlane.f32.xlu0 %v3712
      %v3714 = vpop.xlane.xlu0 %3713
      %vm3715 = vcmp.eq.f32.partialorder %v3712, %v3714
      %v3716 = vsel %vm3715, %v3711, inf
      %3717 = vmin.xlane.f32.xlu0 %v3716
      %v3718 = vpop.xlane.xlu0 %3717
      %v3719 = vcvt.f32.s32 %v3718
      %v3720 = vcvt.f32.s32 %v3714
      %v3721 = vshll.u32 %v3720, 16
      %v3722 = vadd.s32 %v3721, %v3719
      %v3723 = vsel %vm3607, %v3706, 2147483647
      %v3724 = vand.u32 %v3723, 65535
      %v3725 = vshra.s32 %v3723, 16
      %v3726 = vcvt.s32.f32 %v3724
      %v3727 = vcvt.s32.f32 %v3725
      %3728 = vmin.xlane.f32.xlu0 %v3727
      %v3729 = vpop.xlane.xlu0 %3728
      %vm3730 = vcmp.eq.f32.partialorder %v3727, %v3729
      %v3731 = vsel %vm3730, %v3726, inf
      %3732 = vmin.xlane.f32.xlu0 %v3731
      %v3733 = vpop.xlane.xlu0 %3732
      %v3734 = vcvt.f32.s32 %v3733
      %v3735 = vcvt.f32.s32 %v3729
      %v3736 = vshll.u32 %v3735, 16
      %v3737 = vadd.s32 %v3736, %v3734
      %v3738 = vsel %vm3614, %v3707, 2147483647
      %v3739 = vand.u32 %v3738, 65535
      %v3740 = vshra.s32 %v3738, 16
      %v3741 = vcvt.s32.f32 %v3739
      %v3742 = vcvt.s32.f32 %v3740
      %3743 = vmin.xlane.f32.xlu0 %v3742
      %v3744 = vpop.xlane.xlu0 %3743
      %vm3745 = vcmp.eq.f32.partialorder %v3742, %v3744
      %v3746 = vsel %vm3745, %v3741, inf
      %3747 = vmin.xlane.f32.xlu0 %v3746
      %v3748 = vpop.xlane.xlu0 %3747
      %v3749 = vcvt.f32.s32 %v3748
      %v3750 = vcvt.f32.s32 %v3744
      %v3751 = vshll.u32 %v3750, 16
      %v3752 = vadd.s32 %v3751, %v3749
      %v3753 = vadd.s32 %v3638, %v3722
      %v3754 = vadd.s32 %v3653, %v3737
      %v3755 = vadd.s32 %v3668, %v3752
      %vm3756 = vcmp.ge.s32.totalorder %v3753, 4
      %vm3757 = vcmp.ge.s32.totalorder %v3754, 4
      %vm3758 = vcmp.ge.s32.totalorder %v3755, 4
      %v3759 = vsub.s32 %v3753, 4
      %v3760 = vsub.s32 %v3754, 4
      %v3761 = vsub.s32 %v3755, 4
      %v3762 = vsel %vm3756, %v3759, %v3753
      %v3763 = vsel %vm3757, %v3760, %v3754
      %v3764 = vsel %vm3758, %v3761, %v3755
      %vm3765 = vcmask 146504
      %v3766 = vsel %vm3765, %v3363, -inf
      %3767 = vmax.xlane.f32.xlu0 %v3766
      %v3768 = vpop.xlane.xlu0 %3767
      %vm3769 = vcmp.ge.f32.partialorder %v3363, %v3768
      %3770 = vrot.lane.b32.xlu0 %v3586, 9
      %v3771 = vpop.permute.xlu0 %3770
      %v3772 = vsel %vm3769, %v3771, 9
      %v3773 = vsel %vm3765, %v3772, 2147483647
      %v3774 = vand.u32 %v3773, 65535
      %v3775 = vshra.s32 %v3773, 16
      %v3776 = vcvt.s32.f32 %v3774
      %v3777 = vcvt.s32.f32 %v3775
      %3778 = vmin.xlane.f32.xlu0 %v3777
      %v3779 = vpop.xlane.xlu0 %3778
      %vm3780 = vcmp.eq.f32.partialorder %v3777, %v3779
      %v3781 = vsel %vm3780, %v3776, inf
      %3782 = vmin.xlane.f32.xlu0 %v3781
      %v3783 = vpop.xlane.xlu0 %3782
      %v3784 = vcvt.f32.s32 %v3783
      %v3785 = vcvt.f32.s32 %v3779
      %v3786 = vshll.u32 %v3785, 16
      %v3787 = vadd.s32 %v3786, %v3784
      %v3788 = vadd.s32 %v3692, %v3787
      %vm3789 = vcmp.ge.s32.totalorder %v3788, 9
      %v3790 = vsub.s32 %v3788, 9
      %v3791 = vsel %vm3789, %v3790, %v3788
      %vm3792 = vcmask 64544
      %v3793 = vsel %vm3792, %v3568, -inf
      %3794 = vmax.xlane.f32.xlu0 %v3793
      %v3795 = vpop.xlane.xlu0 %3794
      %v3796 = vsel %vm3792, %v3571, -inf
      %3797 = vmax.xlane.f32.xlu0 %v3796
      %v3798 = vpop.xlane.xlu0 %3797
      %vm3799 = vcmask 62496
      %v3800 = vsel %vm3799, %v3576, -inf
      %3801 = vmax.xlane.f32.xlu0 %v3800
      %v3802 = vpop.xlane.xlu0 %3801
      %vm3803 = vcmp.ge.f32.partialorder %v3568, %v3795
      %vm3804 = vcmp.ge.f32.partialorder %v3571, %v3798
      %vm3805 = vcmp.ge.f32.partialorder %v3576, %v3802
      %3806 = vrot.lane.b32.xlu0 %v3586, 4
      %v3807 = vpop.permute.xlu0 %3806
      %v3808 = vsel %vm3803, %v3807, 4
      %v3809 = vsel %vm3804, %v3807, 4
      %v3810 = vsel %vm3805, %v3807, 4
      %v3811 = vsel %vm3792, %v3808, 2147483647
      %v3812 = vand.u32 %v3811, 65535
      %v3813 = vshra.s32 %v3811, 16
      %v3814 = vcvt.s32.f32 %v3812
      %v3815 = vcvt.s32.f32 %v3813
      %3816 = vmin.xlane.f32.xlu0 %v3815
      %v3817 = vpop.xlane.xlu0 %3816
      %vm3818 = vcmp.eq.f32.partialorder %v3815, %v3817
      %v3819 = vsel %vm3818, %v3814, inf
      %3820 = vmin.xlane.f32.xlu0 %v3819
      %v3821 = vpop.xlane.xlu0 %3820
      %v3822 = vcvt.f32.s32 %v3821
      %v3823 = vcvt.f32.s32 %v3817
      %v3824 = vshll.u32 %v3823, 16
      %v3825 = vadd.s32 %v3824, %v3822
      %v3826 = vsel %vm3792, %v3809, 2147483647
      %v3827 = vand.u32 %v3826, 65535
      %v3828 = vshra.s32 %v3826, 16
      %v3829 = vcvt.s32.f32 %v3827
      %v3830 = vcvt.s32.f32 %v3828
      %3831 = vmin.xlane.f32.xlu0 %v3830
      %v3832 = vpop.xlane.xlu0 %3831
      %vm3833 = vcmp.eq.f32.partialorder %v3830, %v3832
      %v3834 = vsel %vm3833, %v3829, inf
      %3835 = vmin.xlane.f32.xlu0 %v3834
      %v3836 = vpop.xlane.xlu0 %3835
      %v3837 = vcvt.f32.s32 %v3836
      %v3838 = vcvt.f32.s32 %v3832
      %v3839 = vshll.u32 %v3838, 16
      %v3840 = vadd.s32 %v3839, %v3837
      %v3841 = vsel %vm3799, %v3810, 2147483647
      %v3842 = vand.u32 %v3841, 65535
      %v3843 = vshra.s32 %v3841, 16
      %v3844 = vcvt.s32.f32 %v3842
      %v3845 = vcvt.s32.f32 %v3843
      %3846 = vmin.xlane.f32.xlu0 %v3845
      %v3847 = vpop.xlane.xlu0 %3846
      %vm3848 = vcmp.eq.f32.partialorder %v3845, %v3847
      %v3849 = vsel %vm3848, %v3844, inf
      %3850 = vmin.xlane.f32.xlu0 %v3849
      %v3851 = vpop.xlane.xlu0 %3850
      %v3852 = vcvt.f32.s32 %v3851
      %v3853 = vcvt.f32.s32 %v3847
      %v3854 = vshll.u32 %v3853, 16
      %v3855 = vadd.s32 %v3854, %v3852
      %v3856 = vadd.s32 %v3762, %v3825
      %v3857 = vadd.s32 %v3763, %v3840
      %v3858 = vadd.s32 %v3764, %v3855
      %vm3859 = vcmp.ge.s32.totalorder %v3856, 4
      %vm3860 = vcmp.ge.s32.totalorder %v3857, 4
      %vm3861 = vcmp.ge.s32.totalorder %v3858, 4
      %v3862 = vsub.s32 %v3856, 4
      %v3863 = vsub.s32 %v3857, 4
      %v3864 = vsub.s32 %v3858, 4
      %v3865 = vsel %vm3859, %v3862, %v3856
      %v3866 = vsel %vm3860, %v3863, %v3857
      %v3867 = vsel %vm3861, %v3864, %v3858
      %vm3868 = vcmp.eq.s32.totalorder %v3586, %v3791
      %v3869 = vsel %vm3868, 1, 0
      %v3870 = vcvt.s32.f32 %v3869
      %3871 = vst.msk [vmem:[%s584] sm:$0xff] %vm703, %v3870
      %vm3872 = vcmp.eq.s32.totalorder %v3586, %v3865
      %vm3873 = vcmp.eq.s32.totalorder %v3586, %v3866
      %vm3874 = vcmp.eq.s32.totalorder %v3586, %v3867
      %v3875 = vsel %vm3872, 1, 0
      %v3876 = vsel %vm3873, 1, 0
      %v3877 = vsel %vm3874, 1, 0
      %v3878 = vcvt.s32.f32 %v3875
      %v3879 = vcvt.s32.f32 %v3876
      %v3880 = vcvt.s32.f32 %v3877
      %3881 = vst.msk [vmem:[%s589] sm:$0xff] %vm3607, %v3878
      %3882 = vst.msk [vmem:[%s589 + $0x8] sm:$0xff] %vm3607, %v3879
      %3883 = vst.msk [vmem:[%s589 + $0x10] sm:$0x3f] %vm3614, %v3880
      %p3884 = scmp.lt.s32.totalorder %s28, 1
      %s3885 = scalar_select %p3884, %s28, 1
      %s3886 = smul.addr %s3885, 8
      %s3887 = scalar_lea.vmem %s15, %s3886
      %p3888 = scmp.lt.s32.totalorder %s28, 1
      %s3889 = scalar_select %p3888, %s28, 1
      %s3890 = smul.addr %s3889, 3
      %s3891 = smul.addr %s3890, 8
      %s3892 = scalar_lea.vmem %s16, %s3891
      // Predicated region
      $region81: #{graphflow_forward.1} parent=79 // pred_check
        %p3893 = pneg %p381
      $region82: #{graphflow_forward.1} parent=79 // pred_check_branch
        %3895 = sbr.rel (%p3893) target = $region84
      $region83: #{graphflow_forward.1} parent=79 // pred_region
        _
      $region84: #{graphflow_forward.1} parent=79 // pred_fallthru
        _
      // Predicated region
      $region85: #{graphflow_forward.1} parent=79 // pred_check
        %p3896 = pneg %p407
      $region86: #{graphflow_forward.1} parent=79 // pred_check_branch
        %3898 = sbr.rel (%p3896) target = $region88
      $region87: #{graphflow_forward.1} parent=79 // pred_region
        _
      $region88: #{graphflow_forward.1} parent=79 // pred_fallthru
        _
    $region80: #{graphflow_forward.1} parent=5 // pred_fallthru
      _
    %p3899 = scmp.le.s32.totalorder 2, %s23
    // Predicated region
    $region89: #{graphflow_forward.1} parent=5 // pred_check
      %p3900 = pneg %p3899
    $region90: #{graphflow_forward.1} parent=5 // pred_check_branch
      %3902 = sbr.rel (%p3900) target = $region92
    $region91: #{graphflow_forward.1} parent=5 // pred_region
      %s3903 = ssub.s32 %s23, 2
      // Predicated region
      $region93: #{graphflow_forward.1} parent=91 // pred_check
        %p3904 = pneg %p387
      $region94: #{graphflow_forward.1} parent=91 // pred_check_branch
        %3906 = sbr.rel (%p3904) target = $region96
      $region95: #{graphflow_forward.1} parent=91 // pred_region
        %p3907 = scmp.lt.s32.totalorder %s29, 1
        %s3908 = scalar_select %p3907, %s29, 1
        %s3909 = smul.addr %s3908, 8
        %s3910 = scalar_lea.vmem %s15, %s3909
      $region96: #{graphflow_forward.1} parent=91 // pred_fallthru
        _
      // Predicated region
      $region97: #{graphflow_forward.1} parent=91 // pred_check
        %p3911 = pneg %p413
      $region98: #{graphflow_forward.1} parent=91 // pred_check_branch
        %3913 = sbr.rel (%p3911) target = $region100
      $region99: #{graphflow_forward.1} parent=91 // pred_region
        %p3914 = scmp.lt.s32.totalorder %s29, 1
        %s3915 = scalar_select %p3914, %s29, 1
        %s3916 = smul.addr %s3915, 3
        %s3917 = smul.addr %s3916, 8
        %s3918 = scalar_lea.vmem %s16, %s3917
      $region100: #{graphflow_forward.1} parent=91 // pred_fallthru
        _
    $region92: #{graphflow_forward.1} parent=5 // pred_fallthru
      _
  $region6: #{graphflow_forward.1} parent=0 // loop_footer
    %s27 = sadd.s32 1, %s23
  $region7: #{graphflow_forward.1} parent=0 // loop_footer_branch
    %22 = sbr.rel target = $region3
  $region8: #{graphflow_forward.1} parent=0 // loop_exit
    _

</llo_original>
